<compile_context>
chip_gen: v6e
topology: v6e:2x2x1
jax: 0.10.0
libtpu: 0.0.40
codegen_flags: <defaults>
</compile_context>

<pallas_src>
import functools

import jax
import jax.numpy as jnp
from jax.experimental import pallas as pl
from jax.experimental.pallas import tpu as pltpu


def _conv_bias_lrelu_kernel(x_ref, w_ref, b_ref, o_ref, acc_ref, *,
                            k, stride, tr, wo, negative_slope, apply_relu):
    """Fused conv (k*k accumulated matmuls) + bias + LeakyReLU for one tile.

    x_ref:   (1, Hp, Wp, Cin)   full padded image of the current batch element
    w_ref:   (k*k, Cin, TN)     weights for the current Cout tile
    b_ref:   (1, TN)            bias for the current Cout tile
    o_ref:   (1, tr, wo, TN)    output rows [r*tr, (r+1)*tr) of the Cout tile
    acc_ref: (tr*wo, TN) f32    VMEM accumulator scratch
    """
    cin = x_ref.shape[-1]
    tn = o_ref.shape[-1]
    row0 = pl.program_id(1) * (tr * stride)

    acc_ref[...] = jnp.zeros_like(acc_ref)
    for kh in range(k):
        for kw in range(k):
            if stride == 1:
                xs = x_ref[0, pl.ds(row0 + kh, tr), pl.ds(kw, wo), :]
            else:
                xs = x_ref[0, pl.ds(row0 + kh, tr, stride=stride),
                           pl.ds(kw, wo, stride=stride), :]
            acc_ref[...] += jnp.dot(xs.reshape(tr * wo, cin),
                                    w_ref[kh * k + kw],
                                    preferred_element_type=jnp.float32)
    res = acc_ref[...] + b_ref[...]
    if apply_relu:
        res = jnp.where(res > 0, res, negative_slope * res)
    o_ref[0] = res.reshape(tr, wo, tn).astype(o_ref.dtype)


def _pick_row_tile(ho, wo, target_pixels):
    """Largest divisor of Ho whose row-tile (tr*Wo output pixels) <= target."""
    best = 1
    for tr in range(1, ho + 1):
        if ho % tr == 0 and tr * wo <= target_pixels:
            best = tr
    return best


def conv2d_noli_forward(x_nchw, weight, bias, *, stride=1, relu=True,
                        same_padding=False, target_tile_pixels=512, tn=128):
    """Forward pass of Conv2d_Noli.

    x_nchw: (N, Cin, H, W)   weight: (Cout, Cin, k, k)   bias: (Cout,)
    """
    n, cin, h, w = x_nchw.shape
    cout, cin_w, k, k2 = weight.shape
    assert cin_w == cin and k == k2
    padding = int((k - 1) / 2) if same_padding else 0
    ho = (h + 2 * padding - k) // stride + 1
    wo = (w + 2 * padding - k) // stride + 1
    hp, wp = h + 2 * padding, w + 2 * padding

    # ---- glue: one HBM pass each, no im2col materialization ----
    x_nhwc = jnp.transpose(x_nchw, (0, 2, 3, 1))
    if padding > 0:
        x_nhwc = jnp.pad(
            x_nhwc, ((0, 0), (padding, padding), (padding, padding), (0, 0)))

    cout_pad = pl.cdiv(cout, tn) * tn            # lane-dense output channels
    # w_mat[kh*k+kw, ci, co] = weight[co, ci, kh, kw]
    w_mat = jnp.transpose(weight, (2, 3, 1, 0)).reshape(k * k, cin, cout)
    b_mat = bias.reshape(1, cout)
    if cout_pad != cout:
        w_mat = jnp.pad(w_mat, ((0, 0), (0, 0), (0, cout_pad - cout)))
        b_mat = jnp.pad(b_mat, ((0, 0), (0, cout_pad - cout)))

    tr = _pick_row_tile(ho, wo, target_tile_pixels)
    r_blocks = ho // tr
    c_blocks = cout_pad // tn

    kernel = functools.partial(
        _conv_bias_lrelu_kernel, k=k, stride=stride, tr=tr, wo=wo,
        negative_slope=0.1, apply_relu=relu)

    itemsize = jnp.dtype(x_nchw.dtype).itemsize
    cost = pl.CostEstimate(
        flops=2 * n * ho * wo * (k * k * cin) * cout_pad,
        transcendentals=0,
        bytes_accessed=(n * hp * wp * cin * itemsize
                        + (k * k * cin * cout_pad + cout_pad) * 4
                        + n * ho * wo * cout_pad * itemsize))

    out_nhwc = pl.pallas_call(
        kernel,
        out_shape=jax.ShapeDtypeStruct((n, ho, wo, cout_pad), x_nchw.dtype),
        grid_spec=pltpu.PrefetchScalarGridSpec(
            num_scalar_prefetch=0,
            grid=(n, r_blocks, c_blocks),
            in_specs=[
                # Whole padded image of batch b; index is constant across
                # (r, c) so it is only DMA'd when b changes.
                pl.BlockSpec((1, hp, wp, cin), lambda b, r, c: (b, 0, 0, 0)),
                # TODO(synk): for very deep darknet layers add a Cin (K) grid
                # axis and single-buffer the constant weight/bias blocks.
                pl.BlockSpec((k * k, cin, tn), lambda b, r, c: (0, 0, c)),
                pl.BlockSpec((1, tn), lambda b, r, c: (0, c)),
            ],
            out_specs=pl.BlockSpec((1, tr, wo, tn),
                                   lambda b, r, c: (b, r, 0, c)),
            scratch_shapes=[pltpu.VMEM((tr * wo, tn), jnp.float32)],
        ),
        compiler_params=pltpu.CompilerParams(
            dimension_semantics=("parallel", "parallel", "parallel"),
            vmem_limit_bytes=32 * 1024 * 1024),
        cost_estimate=cost,
    )(x_nhwc, w_mat, b_mat)

    out_nhwc = out_nhwc[..., :cout]
    return jnp.transpose(out_nhwc, (0, 3, 1, 2))     # back to NCHW


def _reference_forward(x_nchw, weight, bias, *, stride, relu, same_padding):
    k = weight.shape[-1]
    padding = int((k - 1) / 2) if same_padding else 0
    out = jax.lax.conv_general_dilated(
        x_nchw, weight, window_strides=(stride, stride),
        padding=[(padding, padding), (padding, padding)],
        dimension_numbers=("NCHW", "OIHW", "NCHW"),
        precision=jax.lax.Precision.HIGHEST)
    out = out + bias.reshape(1, -1, 1, 1)
    if relu:
        out = jnp.where(out > 0, out, 0.1 * out)
    return out


if __name__ == "__main__":
    # Conv2d_Noli(in_channels=4, out_channels=8, kernel_size=3,
    #             stride=1, relu=True, same_padding=True)
    N, CIN, H, W = 2, 4, 16, 16
    COUT, K = 8, 3
    STRIDE, RELU, SAME = 1, True, True

    key = jax.random.PRNGKey(0)
    kx, kw, kb = jax.random.split(key, 3)
    x = jax.random.normal(kx, (N, CIN, H, W), dtype=jnp.float32)
    # deterministic synthetic parameter init (PyTorch-like uniform bound)
    bound = 1.0 / (CIN * K * K) ** 0.5
    weight = jax.random.uniform(kw, (COUT, CIN, K, K), jnp.float32, -bound, bound)
    bias = jax.random.uniform(kb, (COUT,), jnp.float32, -bound, bound)

    out = conv2d_noli_forward(x, weight, bias, stride=STRIDE, relu=RELU,
                              same_padding=SAME)
    out = jax.block_until_ready(out)

    ref = _reference_forward(x, weight, bias, stride=STRIDE, relu=RELU,
                             same_padding=SAME)
    assert out.shape == (N, COUT, H, W), out.shape
    assert jnp.allclose(out, ref, atol=1e-5, rtol=1e-5), "mismatch vs reference"

    print("KERNEL_OK")
</pallas_src>

<mosaic_0001>
module attributes {stable_mosaic.version = 11 : i64} {
  func.func @_conv_bias_lrelu_kernel(%arg0: i32, %arg1: i32, %arg2: i32, %arg3: memref<1x18x18x4xf32, #tpu.memory_space<vmem>>, %arg4: memref<9x4x128xf32, #tpu.memory_space<vmem>>, %arg5: memref<1x128xf32, #tpu.memory_space<vmem>>, %arg6: memref<1x16x16x128xf32, #tpu.memory_space<vmem>>, %arg7: memref<256x128xf32, #tpu.memory_space<vmem>>) attributes {dimension_semantics = [#tpu.dimension_semantics<parallel>, #tpu.dimension_semantics<parallel>, #tpu.dimension_semantics<parallel>], iteration_bounds = array<i64: 2, 1, 1>, scalar_prefetch = 0 : i64, scratch_operands = 1 : i64, tpu.core_type = #tpu.core_type<tc>, window_params = [{transform_indices = @transform_0, window_bounds = array<i64: 1, 18, 18, 4>}, {transform_indices = @transform_1, window_bounds = array<i64: 9, 4, 128>}, {transform_indices = @transform_2, window_bounds = array<i64: 1, 128>}, {transform_indices = @transform_3, window_bounds = array<i64: 1, 16, 16, 128>}]} {
    %c16_i32 = arith.constant 16 : i32
    %0 = arith.muli %arg1, %c16_i32 : i32
    %cst = arith.constant 0.000000e+00 : f32
    %1 = vector.broadcast %cst : f32 to vector<256x128xf32>
    %c0 = arith.constant 0 : index
    %c0_0 = arith.constant 0 : index
    %2 = vector.load %arg7[%c0, %c0_0] : memref<256x128xf32, #tpu.memory_space<vmem>>, vector<256x128xf32>
    tpu.vector_store %arg7[%c0, %c0_0], %1 {strides = array<i32>} : memref<256x128xf32, #tpu.memory_space<vmem>>, vector<256x128xf32>,
    %c0_i32 = arith.constant 0 : i32
    %3 = arith.addi %0, %c0_i32 : i32
    %c0_1 = arith.constant 0 : index
    %4 = arith.index_cast %3 : i32 to index
    %c0_2 = arith.constant 0 : index
    %c0_3 = arith.constant 0 : index
    %5 = vector.load %arg3[%c0_1, %4, %c0_2, %c0_3] : memref<1x18x18x4xf32, #tpu.memory_space<vmem>>, vector<1x16x16x4xf32>
    %6 = vector.shape_cast %5 : vector<1x16x16x4xf32> to vector<16x16x4xf32>
    %c0_4 = arith.constant 0 : index
    %c0_5 = arith.constant 0 : index
    %7 = vector.load %arg7[%c0_4, %c0_5] : memref<256x128xf32, #tpu.memory_space<vmem>>, vector<256x128xf32>
    %8 = vector.shape_cast %6 : vector<16x16x4xf32> to vector<256x4xf32>
    %c0_6 = arith.constant 0 : index
    %c0_7 = arith.constant 0 : index
    %c0_8 = arith.constant 0 : index
    %9 = vector.load %arg4[%c0_6, %c0_7, %c0_8] : memref<9x4x128xf32, #tpu.memory_space<vmem>>, vector<1x4x128xf32>
    %10 = vector.shape_cast %9 : vector<1x4x128xf32> to vector<4x128xf32>
    %cst_9 = arith.constant dense<0.000000e+00> : vector<256x128xf32>
    %11 = tpu.matmul %8, %10, %cst_9 {dimension_numbers = #tpu.dot_dimension_numbers<[1], [0], [0], [1], [0, 0, 1, 1], [], []>} : vector<256x4xf32>, vector<4x128xf32>, vector<256x128xf32> -> vector<256x128xf32>
    %12 = arith.addf %7, %11 : vector<256x128xf32>
    %c0_10 = arith.constant 0 : index
    %c0_11 = arith.constant 0 : index
    %13 = vector.load %arg7[%c0_10, %c0_11] : memref<256x128xf32, #tpu.memory_space<vmem>>, vector<256x128xf32>
    tpu.vector_store %arg7[%c0_10, %c0_11], %12 {strides = array<i32>} : memref<256x128xf32, #tpu.memory_space<vmem>>, vector<256x128xf32>,
    %c0_i32_12 = arith.constant 0 : i32
    %14 = arith.addi %0, %c0_i32_12 : i32
    %c0_13 = arith.constant 0 : index
    %15 = arith.index_cast %14 : i32 to index
    %c1 = arith.constant 1 : index
    %c0_14 = arith.constant 0 : index
    %16 = vector.load %arg3[%c0_13, %15, %c1, %c0_14] : memref<1x18x18x4xf32, #tpu.memory_space<vmem>>, vector<1x16x16x4xf32>
    %17 = vector.shape_cast %16 : vector<1x16x16x4xf32> to vector<16x16x4xf32>
    %c0_15 = arith.constant 0 : index
    %c0_16 = arith.constant 0 : index
    %18 = vector.load %arg7[%c0_15, %c0_16] : memref<256x128xf32, #tpu.memory_space<vmem>>, vector<256x128xf32>
    %19 = vector.shape_cast %17 : vector<16x16x4xf32> to vector<256x4xf32>
    %c1_17 = arith.constant 1 : index
    %c0_18 = arith.constant 0 : index
    %c0_19 = arith.constant 0 : index
    %20 = vector.load %arg4[%c1_17, %c0_18, %c0_19] : memref<9x4x128xf32, #tpu.memory_space<vmem>>, vector<1x4x128xf32>
    %21 = vector.shape_cast %20 : vector<1x4x128xf32> to vector<4x128xf32>
    %cst_20 = arith.constant dense<0.000000e+00> : vector<256x128xf32>
    %22 = tpu.matmul %19, %21, %cst_20 {dimension_numbers = #tpu.dot_dimension_numbers<[1], [0], [0], [1], [0, 0, 1, 1], [], []>} : vector<256x4xf32>, vector<4x128xf32>, vector<256x128xf32> -> vector<256x128xf32>
    %23 = arith.addf %18, %22 : vector<256x128xf32>
    %c0_21 = arith.constant 0 : index
    %c0_22 = arith.constant 0 : index
    %24 = vector.load %arg7[%c0_21, %c0_22] : memref<256x128xf32, #tpu.memory_space<vmem>>, vector<256x128xf32>
    tpu.vector_store %arg7[%c0_21, %c0_22], %23 {strides = array<i32>} : memref<256x128xf32, #tpu.memory_space<vmem>>, vector<256x128xf32>,
    %c0_i32_23 = arith.constant 0 : i32
    %25 = arith.addi %0, %c0_i32_23 : i32
    %c0_24 = arith.constant 0 : index
    %26 = arith.index_cast %25 : i32 to index
    %c2 = arith.constant 2 : index
    %c0_25 = arith.constant 0 : index
    %27 = vector.load %arg3[%c0_24, %26, %c2, %c0_25] : memref<1x18x18x4xf32, #tpu.memory_space<vmem>>, vector<1x16x16x4xf32>
    %28 = vector.shape_cast %27 : vector<1x16x16x4xf32> to vector<16x16x4xf32>
    %c0_26 = arith.constant 0 : index
    %c0_27 = arith.constant 0 : index
    %29 = vector.load %arg7[%c0_26, %c0_27] : memref<256x128xf32, #tpu.memory_space<vmem>>, vector<256x128xf32>
    %30 = vector.shape_cast %28 : vector<16x16x4xf32> to vector<256x4xf32>
    %c2_28 = arith.constant 2 : index
    %c0_29 = arith.constant 0 : index
    %c0_30 = arith.constant 0 : index
    %31 = vector.load %arg4[%c2_28, %c0_29, %c0_30] : memref<9x4x128xf32, #tpu.memory_space<vmem>>, vector<1x4x128xf32>
    %32 = vector.shape_cast %31 : vector<1x4x128xf32> to vector<4x128xf32>
    %cst_31 = arith.constant dense<0.000000e+00> : vector<256x128xf32>
    %33 = tpu.matmul %30, %32, %cst_31 {dimension_numbers = #tpu.dot_dimension_numbers<[1], [0], [0], [1], [0, 0, 1, 1], [], []>} : vector<256x4xf32>, vector<4x128xf32>, vector<256x128xf32> -> vector<256x128xf32>
    %34 = arith.addf %29, %33 : vector<256x128xf32>
    %c0_32 = arith.constant 0 : index
    %c0_33 = arith.constant 0 : index
    %35 = vector.load %arg7[%c0_32, %c0_33] : memref<256x128xf32, #tpu.memory_space<vmem>>, vector<256x128xf32>
    tpu.vector_store %arg7[%c0_32, %c0_33], %34 {strides = array<i32>} : memref<256x128xf32, #tpu.memory_space<vmem>>, vector<256x128xf32>,
    %c1_i32 = arith.constant 1 : i32
    %36 = arith.addi %0, %c1_i32 : i32
    %c0_34 = arith.constant 0 : index
    %37 = arith.index_cast %36 : i32 to index
    %c0_35 = arith.constant 0 : index
    %c0_36 = arith.constant 0 : index
    %38 = vector.load %arg3[%c0_34, %37, %c0_35, %c0_36] : memref<1x18x18x4xf32, #tpu.memory_space<vmem>>, vector<1x16x16x4xf32>
    %39 = vector.shape_cast %38 : vector<1x16x16x4xf32> to vector<16x16x4xf32>
    %c0_37 = arith.constant 0 : index
    %c0_38 = arith.constant 0 : index
    %40 = vector.load %arg7[%c0_37, %c0_38] : memref<256x128xf32, #tpu.memory_space<vmem>>, vector<256x128xf32>
    %41 = vector.shape_cast %39 : vector<16x16x4xf32> to vector<256x4xf32>
    %c3 = arith.constant 3 : index
    %c0_39 = arith.constant 0 : index
    %c0_40 = arith.constant 0 : index
    %42 = vector.load %arg4[%c3, %c0_39, %c0_40] : memref<9x4x128xf32, #tpu.memory_space<vmem>>, vector<1x4x128xf32>
    %43 = vector.shape_cast %42 : vector<1x4x128xf32> to vector<4x128xf32>
    %cst_41 = arith.constant dense<0.000000e+00> : vector<256x128xf32>
    %44 = tpu.matmul %41, %43, %cst_41 {dimension_numbers = #tpu.dot_dimension_numbers<[1], [0], [0], [1], [0, 0, 1, 1], [], []>} : vector<256x4xf32>, vector<4x128xf32>, vector<256x128xf32> -> vector<256x128xf32>
    %45 = arith.addf %40, %44 : vector<256x128xf32>
    %c0_42 = arith.constant 0 : index
    %c0_43 = arith.constant 0 : index
    %46 = vector.load %arg7[%c0_42, %c0_43] : memref<256x128xf32, #tpu.memory_space<vmem>>, vector<256x128xf32>
    tpu.vector_store %arg7[%c0_42, %c0_43], %45 {strides = array<i32>} : memref<256x128xf32, #tpu.memory_space<vmem>>, vector<256x128xf32>,
    %c1_i32_44 = arith.constant 1 : i32
    %47 = arith.addi %0, %c1_i32_44 : i32
    %c0_45 = arith.constant 0 : index
    %48 = arith.index_cast %47 : i32 to index
    %c1_46 = arith.constant 1 : index
    %c0_47 = arith.constant 0 : index
    %49 = vector.load %arg3[%c0_45, %48, %c1_46, %c0_47] : memref<1x18x18x4xf32, #tpu.memory_space<vmem>>, vector<1x16x16x4xf32>
    %50 = vector.shape_cast %49 : vector<1x16x16x4xf32> to vector<16x16x4xf32>
    %c0_48 = arith.constant 0 : index
    %c0_49 = arith.constant 0 : index
    %51 = vector.load %arg7[%c0_48, %c0_49] : memref<256x128xf32, #tpu.memory_space<vmem>>, vector<256x128xf32>
    %52 = vector.shape_cast %50 : vector<16x16x4xf32> to vector<256x4xf32>
    %c4 = arith.constant 4 : index
    %c0_50 = arith.constant 0 : index
    %c0_51 = arith.constant 0 : index
    %53 = vector.load %arg4[%c4, %c0_50, %c0_51] : memref<9x4x128xf32, #tpu.memory_space<vmem>>, vector<1x4x128xf32>
    %54 = vector.shape_cast %53 : vector<1x4x128xf32> to vector<4x128xf32>
    %cst_52 = arith.constant dense<0.000000e+00> : vector<256x128xf32>
    %55 = tpu.matmul %52, %54, %cst_52 {dimension_numbers = #tpu.dot_dimension_numbers<[1], [0], [0], [1], [0, 0, 1, 1], [], []>} : vector<256x4xf32>, vector<4x128xf32>, vector<256x128xf32> -> vector<256x128xf32>
    %56 = arith.addf %51, %55 : vector<256x128xf32>
    %c0_53 = arith.constant 0 : index
    %c0_54 = arith.constant 0 : index
    %57 = vector.load %arg7[%c0_53, %c0_54] : memref<256x128xf32, #tpu.memory_space<vmem>>, vector<256x128xf32>
    tpu.vector_store %arg7[%c0_53, %c0_54], %56 {strides = array<i32>} : memref<256x128xf32, #tpu.memory_space<vmem>>, vector<256x128xf32>,
    %c1_i32_55 = arith.constant 1 : i32
    %58 = arith.addi %0, %c1_i32_55 : i32
    %c0_56 = arith.constant 0 : index
    %59 = arith.index_cast %58 : i32 to index
    %c2_57 = arith.constant 2 : index
    %c0_58 = arith.constant 0 : index
    %60 = vector.load %arg3[%c0_56, %59, %c2_57, %c0_58] : memref<1x18x18x4xf32, #tpu.memory_space<vmem>>, vector<1x16x16x4xf32>
    %61 = vector.shape_cast %60 : vector<1x16x16x4xf32> to vector<16x16x4xf32>
    %c0_59 = arith.constant 0 : index
    %c0_60 = arith.constant 0 : index
    %62 = vector.load %arg7[%c0_59, %c0_60] : memref<256x128xf32, #tpu.memory_space<vmem>>, vector<256x128xf32>
    %63 = vector.shape_cast %61 : vector<16x16x4xf32> to vector<256x4xf32>
    %c5 = arith.constant 5 : index
    %c0_61 = arith.constant 0 : index
    %c0_62 = arith.constant 0 : index
    %64 = vector.load %arg4[%c5, %c0_61, %c0_62] : memref<9x4x128xf32, #tpu.memory_space<vmem>>, vector<1x4x128xf32>
    %65 = vector.shape_cast %64 : vector<1x4x128xf32> to vector<4x128xf32>
    %cst_63 = arith.constant dense<0.000000e+00> : vector<256x128xf32>
    %66 = tpu.matmul %63, %65, %cst_63 {dimension_numbers = #tpu.dot_dimension_numbers<[1], [0], [0], [1], [0, 0, 1, 1], [], []>} : vector<256x4xf32>, vector<4x128xf32>, vector<256x128xf32> -> vector<256x128xf32>
    %67 = arith.addf %62, %66 : vector<256x128xf32>
    %c0_64 = arith.constant 0 : index
    %c0_65 = arith.constant 0 : index
    %68 = vector.load %arg7[%c0_64, %c0_65] : memref<256x128xf32, #tpu.memory_space<vmem>>, vector<256x128xf32>
    tpu.vector_store %arg7[%c0_64, %c0_65], %67 {strides = array<i32>} : memref<256x128xf32, #tpu.memory_space<vmem>>, vector<256x128xf32>,
    %c2_i32 = arith.constant 2 : i32
    %69 = arith.addi %0, %c2_i32 : i32
    %c0_66 = arith.constant 0 : index
    %70 = arith.index_cast %69 : i32 to index
    %c0_67 = arith.constant 0 : index
    %c0_68 = arith.constant 0 : index
    %71 = vector.load %arg3[%c0_66, %70, %c0_67, %c0_68] : memref<1x18x18x4xf32, #tpu.memory_space<vmem>>, vector<1x16x16x4xf32>
    %72 = vector.shape_cast %71 : vector<1x16x16x4xf32> to vector<16x16x4xf32>
    %c0_69 = arith.constant 0 : index
    %c0_70 = arith.constant 0 : index
    %73 = vector.load %arg7[%c0_69, %c0_70] : memref<256x128xf32, #tpu.memory_space<vmem>>, vector<256x128xf32>
    %74 = vector.shape_cast %72 : vector<16x16x4xf32> to vector<256x4xf32>
    %c6 = arith.constant 6 : index
    %c0_71 = arith.constant 0 : index
    %c0_72 = arith.constant 0 : index
    %75 = vector.load %arg4[%c6, %c0_71, %c0_72] : memref<9x4x128xf32, #tpu.memory_space<vmem>>, vector<1x4x128xf32>
    %76 = vector.shape_cast %75 : vector<1x4x128xf32> to vector<4x128xf32>
    %cst_73 = arith.constant dense<0.000000e+00> : vector<256x128xf32>
    %77 = tpu.matmul %74, %76, %cst_73 {dimension_numbers = #tpu.dot_dimension_numbers<[1], [0], [0], [1], [0, 0, 1, 1], [], []>} : vector<256x4xf32>, vector<4x128xf32>, vector<256x128xf32> -> vector<256x128xf32>
    %78 = arith.addf %73, %77 : vector<256x128xf32>
    %c0_74 = arith.constant 0 : index
    %c0_75 = arith.constant 0 : index
    %79 = vector.load %arg7[%c0_74, %c0_75] : memref<256x128xf32, #tpu.memory_space<vmem>>, vector<256x128xf32>
    tpu.vector_store %arg7[%c0_74, %c0_75], %78 {strides = array<i32>} : memref<256x128xf32, #tpu.memory_space<vmem>>, vector<256x128xf32>,
    %c2_i32_76 = arith.constant 2 : i32
    %80 = arith.addi %0, %c2_i32_76 : i32
    %c0_77 = arith.constant 0 : index
    %81 = arith.index_cast %80 : i32 to index
    %c1_78 = arith.constant 1 : index
    %c0_79 = arith.constant 0 : index
    %82 = vector.load %arg3[%c0_77, %81, %c1_78, %c0_79] : memref<1x18x18x4xf32, #tpu.memory_space<vmem>>, vector<1x16x16x4xf32>
    %83 = vector.shape_cast %82 : vector<1x16x16x4xf32> to vector<16x16x4xf32>
    %c0_80 = arith.constant 0 : index
    %c0_81 = arith.constant 0 : index
    %84 = vector.load %arg7[%c0_80, %c0_81] : memref<256x128xf32, #tpu.memory_space<vmem>>, vector<256x128xf32>
    %85 = vector.shape_cast %83 : vector<16x16x4xf32> to vector<256x4xf32>
    %c7 = arith.constant 7 : index
    %c0_82 = arith.constant 0 : index
    %c0_83 = arith.constant 0 : index
    %86 = vector.load %arg4[%c7, %c0_82, %c0_83] : memref<9x4x128xf32, #tpu.memory_space<vmem>>, vector<1x4x128xf32>
    %87 = vector.shape_cast %86 : vector<1x4x128xf32> to vector<4x128xf32>
    %cst_84 = arith.constant dense<0.000000e+00> : vector<256x128xf32>
    %88 = tpu.matmul %85, %87, %cst_84 {dimension_numbers = #tpu.dot_dimension_numbers<[1], [0], [0], [1], [0, 0, 1, 1], [], []>} : vector<256x4xf32>, vector<4x128xf32>, vector<256x128xf32> -> vector<256x128xf32>
    %89 = arith.addf %84, %88 : vector<256x128xf32>
    %c0_85 = arith.constant 0 : index
    %c0_86 = arith.constant 0 : index
    %90 = vector.load %arg7[%c0_85, %c0_86] : memref<256x128xf32, #tpu.memory_space<vmem>>, vector<256x128xf32>
    tpu.vector_store %arg7[%c0_85, %c0_86], %89 {strides = array<i32>} : memref<256x128xf32, #tpu.memory_space<vmem>>, vector<256x128xf32>,
    %c2_i32_87 = arith.constant 2 : i32
    %91 = arith.addi %0, %c2_i32_87 : i32
    %c0_88 = arith.constant 0 : index
    %92 = arith.index_cast %91 : i32 to index
    %c2_89 = arith.constant 2 : index
    %c0_90 = arith.constant 0 : index
    %93 = vector.load %arg3[%c0_88, %92, %c2_89, %c0_90] : memref<1x18x18x4xf32, #tpu.memory_space<vmem>>, vector<1x16x16x4xf32>
    %94 = vector.shape_cast %93 : vector<1x16x16x4xf32> to vector<16x16x4xf32>
    %c0_91 = arith.constant 0 : index
    %c0_92 = arith.constant 0 : index
    %95 = vector.load %arg7[%c0_91, %c0_92] : memref<256x128xf32, #tpu.memory_space<vmem>>, vector<256x128xf32>
    %96 = vector.shape_cast %94 : vector<16x16x4xf32> to vector<256x4xf32>
    %c8 = arith.constant 8 : index
    %c0_93 = arith.constant 0 : index
    %c0_94 = arith.constant 0 : index
    %97 = vector.load %arg4[%c8, %c0_93, %c0_94] : memref<9x4x128xf32, #tpu.memory_space<vmem>>, vector<1x4x128xf32>
    %98 = vector.shape_cast %97 : vector<1x4x128xf32> to vector<4x128xf32>
    %cst_95 = arith.constant dense<0.000000e+00> : vector<256x128xf32>
    %99 = tpu.matmul %96, %98, %cst_95 {dimension_numbers = #tpu.dot_dimension_numbers<[1], [0], [0], [1], [0, 0, 1, 1], [], []>} : vector<256x4xf32>, vector<4x128xf32>, vector<256x128xf32> -> vector<256x128xf32>
    %100 = arith.addf %95, %99 : vector<256x128xf32>
    %c0_96 = arith.constant 0 : index
    %c0_97 = arith.constant 0 : index
    %101 = vector.load %arg7[%c0_96, %c0_97] : memref<256x128xf32, #tpu.memory_space<vmem>>, vector<256x128xf32>
    tpu.vector_store %arg7[%c0_96, %c0_97], %100 {strides = array<i32>} : memref<256x128xf32, #tpu.memory_space<vmem>>, vector<256x128xf32>,
    %c0_98 = arith.constant 0 : index
    %c0_99 = arith.constant 0 : index
    %102 = vector.load %arg7[%c0_98, %c0_99] : memref<256x128xf32, #tpu.memory_space<vmem>>, vector<256x128xf32>
    %c0_100 = arith.constant 0 : index
    %c0_101 = arith.constant 0 : index
    %103 = vector.load %arg5[%c0_100, %c0_101] : memref<1x128xf32, #tpu.memory_space<vmem>>, vector<1x128xf32>
    %104 = vector.broadcast %103 : vector<1x128xf32> to vector<256x128xf32>
    %105 = arith.addf %102, %104 : vector<256x128xf32>
    %cst_102 = arith.constant 0.000000e+00 : f32
    %106 = vector.broadcast %cst_102 : f32 to vector<256x128xf32>
    %107 = arith.cmpf ogt, %105, %106 : vector<256x128xf32>
    %cst_103 = arith.constant 1.000000e-01 : f32
    %108 = vector.broadcast %cst_103 : f32 to vector<256x128xf32>
    %109 = arith.mulf %108, %105 : vector<256x128xf32>
    %110 = arith.select %107, %105, %109 : vector<256x128xi1>, vector<256x128xf32>
    %111 = vector.shape_cast %110 : vector<256x128xf32> to vector<16x16x128xf32>
    %c0_104 = arith.constant 0 : index
    %c0_105 = arith.constant 0 : index
    %c0_106 = arith.constant 0 : index
    %c0_107 = arith.constant 0 : index
    %112 = vector.load %arg6[%c0_104, %c0_105, %c0_106, %c0_107] : memref<1x16x16x128xf32, #tpu.memory_space<vmem>>, vector<1x16x16x128xf32>
    %113 = vector.shape_cast %112 : vector<1x16x16x128xf32> to vector<16x16x128xf32>
    %114 = vector.shape_cast %111 : vector<16x16x128xf32> to vector<1x16x16x128xf32>
    tpu.vector_store %arg6[%c0_104, %c0_105, %c0_106, %c0_107], %114 {strides = array<i32>} : memref<1x16x16x128xf32, #tpu.memory_space<vmem>>, vector<1x16x16x128xf32>,
    return
  }
  func.func @transform_0(%arg0: i32, %arg1: i32, %arg2: i32) -> (i32, i32, i32, i32) {
    %c0_i32 = arith.constant 0 : i32
    %c0_i32_0 = arith.constant 0 : i32
    %c0_i32_1 = arith.constant 0 : i32
    %c0_i32_2 = arith.constant 0 : i32
    return %arg0, %c0_i32, %c0_i32_0, %c0_i32_1 : i32, i32, i32, i32
  }
  func.func @transform_1(%arg0: i32, %arg1: i32, %arg2: i32) -> (i32, i32, i32) {
    %c0_i32 = arith.constant 0 : i32
    %c0_i32_0 = arith.constant 0 : i32
    %c0_i32_1 = arith.constant 0 : i32
    return %c0_i32, %c0_i32_0, %arg2 : i32, i32, i32
  }
  func.func @transform_2(%arg0: i32, %arg1: i32, %arg2: i32) -> (i32, i32) {
    %c0_i32 = arith.constant 0 : i32
    %c0_i32_0 = arith.constant 0 : i32
    return %c0_i32, %arg2 : i32, i32
  }
  func.func @transform_3(%arg0: i32, %arg1: i32, %arg2: i32) -> (i32, i32, i32, i32) {
    %c0_i32 = arith.constant 0 : i32
    %c0_i32_0 = arith.constant 0 : i32
    return %arg0, %arg1, %c0_i32, %arg2 : i32, i32, i32, i32
  }
}

</mosaic_0001>

<llo_original>
// kernel: tpu_custom_call.1
$region0: #{tpu_custom_call.1}
  #allocation0 [shape = 'u32[]', space=smem, size = 0x4, offset = 0x4, fixed_abs, tag = 'smem constant byte address 0x4 - core index']
  #allocation1 [shape = 'u32[144,128]{1,0:T(1,128)}', space=vmem, size = 0x12000, scoped, tag = 'internal scratch']
  #allocation2 [shape = 'f32[256,128]{1,0:T(8,128)}', space=vmem, size = 0x20000, scoped, tag = 'scratch operand']
  %s0 = inlined_call_operand.vmem [shape: f32[2,18,18,4], index: 0, kind: input, shape index: {}]
  %s1 = inlined_call_operand.vmem [shape: f32[9,4,128], index: 1, kind: input, shape index: {}]
  %s2 = inlined_call_operand.vmem [shape: f32[1,128], index: 2, kind: input, shape index: {}]
  %s3 = inlined_call_operand.hbm [shape: f32[2,16,16,128], index: 3, kind: output, shape index: {}]
  %s4 = sld [smem:[#allocation0]]
  $region45: #{tpu_custom_call.1} parent=0
    _
  %s6 = ssub.s32 1, %s4
  %s7 = scalar_select 0, %s6, %s4
  $region1: #{tpu_custom_call.1} parent=0
    #allocation3 [shape = 'u8[262144]{0}', space=vmem, size = 0x40000, scoped, tag = 'output window, operand 0']
    #allocation4 [shape = 's32[2]{0}', space=sflag, size = 0x8, scoped, tag = 'scoped memory for tpu_custom_call.1']
    %8 = vsyncpa [#allocation4], 0
    %s9 = scalar_lea.sflag [#allocation4], 1
    %10 = vsyncpa %s9, 0
    loop: start=0, step=1, limit=4
    $region2: #{tpu_custom_call.1} parent=1 // loop_pre_header
      _
    $region3: #{tpu_custom_call.1} parent=1 // loop_header
      %s12 = sphi 0, %s16
      %p13 = scmp.ge.s32.totalorder %s12, 4
      %s19 = sphi 0, %s38
      %s20 = sphi 0, %s34
      %s21 = sphi 0, %s30
      %s22 = sphi 0, %s19
      %s23 = sphi 0, %s20
      %s24 = sphi 0, %s21
      %s25 = sphi 0, %s22
      %s26 = sphi 0, %s23
      %s27 = sphi 0, %s24
      %s41 = sphi 0, %s43
      %s44 = sphi 0, %s41
      %s45 = sphi 0, %s44
      %s61 = sphi 0, %s45
      %s67 = sphi 0, %s69
      %s70 = sphi 0, %s67
      %s71 = sphi 0, %s70
      %s87 = sphi 0, %s71
      %s93 = sphi 0, %s95
      %s96 = sphi 0, %s93
      %s97 = sphi 0, %s96
      %s113 = sphi 0, %s97
      %s123 = sphi 0, %s125
      %s126 = sphi 0, %s123
      %s127 = sphi 0, %s126
      %s143 = sphi 0, %s127
    $region4: #{tpu_custom_call.1} parent=1 // loop_header_branch
      %15 = sbr.rel (%p13) target = $region8
    $region5: #{tpu_custom_call.1} parent=1 // loop_body
      %s17 = ssub.s32 %s12, 1
      %s18 = ssub.s32 %s12, 2
      %s28 = sadd.s32 1, %s21
      %p29 = scmp.ge.s32.totalorder %s28, 1
      %s30 = scalar_select %p29, 0, %s28
      %s31 = sadd.s32 1, %s20
      %s32 = scalar_select %p29, %s31, %s20
      %p33 = scmp.ge.s32.totalorder %s32, 1
      %s34 = scalar_select %p33, 0, %s32
      %s35 = sadd.s32 1, %s19
      %s36 = scalar_select %p33, %s35, %s19
      %p37 = scmp.ge.s32.totalorder %s36, 2
      %s38 = scalar_select %p37, 0, %s36
      %s39 = ssub.s32 %s19, %s38
      %p40 = scmp.eq.s32.totalorder %s39, 0
      %s42 = sadd.s32 %s41, 1
      %s43 = scalar_select %p40, %s41, %s42
      %p46 = pneg %p40
      %p47 = scmp.eq.s32.totalorder %s12, 1
      %p48 = por %p46, %p47
      %p49 = scmp.ne.s32.totalorder %s41, %s44
      %p50 = scmp.eq.s32.totalorder %s12, 0
      %p51 = por %p49, %p50
      %p52 = scmp.ne.s32.totalorder %s41, %s44
      %p53 = scmp.eq.s32.totalorder %s17, 1
      %p54 = por %p52, %p53
      %p55 = scmp.ne.s32.totalorder %s44, %s45
      %p56 = scmp.eq.s32.totalorder %s17, 0
      %p57 = por %p55, %p56
      %p58 = scmp.ne.s32.totalorder %s44, %s45
      %p59 = scmp.eq.s32.totalorder %s18, 1
      %p60 = por %p58, %p59
      %p62 = scmp.ne.s32.totalorder %s45, %s61
      %p63 = scmp.eq.s32.totalorder %s18, 0
      %p64 = por %p62, %p63
      %s65 = ssub.s32 %s21, %s30
      %p66 = scmp.eq.s32.totalorder %s65, 0
      %s68 = sadd.s32 %s67, 1
      %s69 = scalar_select %p66, %s67, %s68
      %p72 = pneg %p66
      %p73 = scmp.eq.s32.totalorder %s12, 1
      %p74 = por %p72, %p73
      %p75 = scmp.ne.s32.totalorder %s67, %s70
      %p76 = scmp.eq.s32.totalorder %s12, 0
      %p77 = por %p75, %p76
      %p78 = scmp.ne.s32.totalorder %s67, %s70
      %p79 = scmp.eq.s32.totalorder %s17, 1
      %p80 = por %p78, %p79
      %p81 = scmp.ne.s32.totalorder %s70, %s71
      %p82 = scmp.eq.s32.totalorder %s17, 0
      %p83 = por %p81, %p82
      %p84 = scmp.ne.s32.totalorder %s70, %s71
      %p85 = scmp.eq.s32.totalorder %s18, 1
      %p86 = por %p84, %p85
      %p88 = scmp.ne.s32.totalorder %s71, %s87
      %p89 = scmp.eq.s32.totalorder %s18, 0
      %p90 = por %p88, %p89
      %s91 = ssub.s32 %s21, %s30
      %p92 = scmp.eq.s32.totalorder %s91, 0
      %s94 = sadd.s32 %s93, 1
      %s95 = scalar_select %p92, %s93, %s94
      %p98 = pneg %p92
      %p99 = scmp.eq.s32.totalorder %s12, 1
      %p100 = por %p98, %p99
      %p101 = scmp.ne.s32.totalorder %s93, %s96
      %p102 = scmp.eq.s32.totalorder %s12, 0
      %p103 = por %p101, %p102
      %p104 = scmp.ne.s32.totalorder %s93, %s96
      %p105 = scmp.eq.s32.totalorder %s17, 1
      %p106 = por %p104, %p105
      %p107 = scmp.ne.s32.totalorder %s96, %s97
      %p108 = scmp.eq.s32.totalorder %s17, 0
      %p109 = por %p107, %p108
      %p110 = scmp.ne.s32.totalorder %s96, %s97
      %p111 = scmp.eq.s32.totalorder %s18, 1
      %p112 = por %p110, %p111
      %p114 = scmp.ne.s32.totalorder %s97, %s113
      %p115 = scmp.eq.s32.totalorder %s18, 0
      %p116 = por %p114, %p115
      %s117 = ssub.s32 %s19, %s38
      %s118 = ssub.s32 %s20, %s34
      %s119 = sor.u32 %s117, %s118
      %s120 = ssub.s32 %s21, %s30
      %s121 = sor.u32 %s119, %s120
      %p122 = scmp.eq.s32.totalorder %s121, 0
      %s124 = sadd.s32 %s123, 1
      %s125 = scalar_select %p122, %s123, %s124
      %p128 = pneg %p122
      %p129 = scmp.eq.s32.totalorder %s12, 1
      %p130 = por %p128, %p129
      %p131 = scmp.ne.s32.totalorder %s123, %s126
      %p132 = scmp.eq.s32.totalorder %s12, 0
      %p133 = por %p131, %p132
      %p134 = scmp.ne.s32.totalorder %s123, %s126
      %p135 = scmp.eq.s32.totalorder %s17, 1
      %p136 = por %p134, %p135
      %p137 = scmp.ne.s32.totalorder %s126, %s127
      %p138 = scmp.eq.s32.totalorder %s17, 0
      %p139 = por %p137, %p138
      %p140 = scmp.ne.s32.totalorder %s126, %s127
      %p141 = scmp.eq.s32.totalorder %s18, 1
      %p142 = por %p140, %p141
      %p144 = scmp.ne.s32.totalorder %s127, %s143
      %p145 = scmp.eq.s32.totalorder %s18, 0
      %p146 = por %p144, %p145
      %p147 = scmp.le.s32.totalorder 1, %s12
      %p148 = scmp.lt.s32.totalorder %s12, 3
      %p149 = pnand %p147, %p148
      %p150 = pneg %p149
      // Predicated region
      $region9: #{tpu_custom_call.1} parent=5 // pred_check
        _
      $region10: #{tpu_custom_call.1} parent=5 // pred_check_branch
        %152 = sbr.rel (%p149) target = $region12
      $region11: #{tpu_custom_call.1} parent=5 // pred_region
        %s153 = ssub.s32 %s12, 1
        // Predicated region
        $region13: #{tpu_custom_call.1} parent=11 // pred_check
          %p154 = pneg %p83
        $region14: #{tpu_custom_call.1} parent=11 // pred_check_branch
          %156 = sbr.rel (%p154) target = $region16
        $region15: #{tpu_custom_call.1} parent=11 // pred_region
          %p157 = scmp.lt.s32.totalorder %s24, 0
          %s158 = scalar_select %p157, %s24, 0
          %s159 = smul.addr %s158, 4
          %s160 = scalar_lea.vmem %s1, %s159
        $region16: #{tpu_custom_call.1} parent=11 // pred_fallthru
          _
        // Predicated region
        $region17: #{tpu_custom_call.1} parent=11 // pred_check
          %p161 = pneg %p109
        $region18: #{tpu_custom_call.1} parent=11 // pred_check_branch
          %163 = sbr.rel (%p161) target = $region20
        $region19: #{tpu_custom_call.1} parent=11 // pred_region
          %p164 = scmp.lt.s32.totalorder %s24, 0
          %s165 = scalar_select %p164, %s24, 0
          %s166 = scalar_lea.vmem %s2, %s165
        $region20: #{tpu_custom_call.1} parent=11 // pred_fallthru
          _
      $region12: #{tpu_custom_call.1} parent=5 // pred_fallthru
        _
      %p167 = scmp.lt.s32.totalorder %s12, 2
      // Predicated region
      $region21: #{tpu_custom_call.1} parent=5 // pred_check
        %p168 = pneg %p167
      $region22: #{tpu_custom_call.1} parent=5 // pred_check_branch
        %170 = sbr.rel (%p168) target = $region24
      $region23: #{tpu_custom_call.1} parent=5 // pred_region
        // Predicated region
        $region25: #{tpu_custom_call.1} parent=23 // pred_check
          %p171 = pneg %p51
        $region26: #{tpu_custom_call.1} parent=23 // pred_check_branch
          %173 = sbr.rel (%p171) target = $region28
        $region27: #{tpu_custom_call.1} parent=23 // pred_region
          %p174 = scmp.lt.s32.totalorder %s19, 1
          %s175 = scalar_select %p174, %s19, 1
          %s176 = smul.addr %s175, 54
          %s177 = smul.addr %s176, 8
          %s178 = scalar_lea.vmem %s0, %s177
        $region28: #{tpu_custom_call.1} parent=23 // pred_fallthru
          _
      $region24: #{tpu_custom_call.1} parent=5 // pred_fallthru
        _
      %p179 = scmp.le.s32.totalorder 1, %s12
      %p180 = scmp.lt.s32.totalorder %s12, 3
      %p181 = pnand %p179, %p180
      %p182 = pneg %p181
      // Predicated region
      $region29: #{tpu_custom_call.1} parent=5 // pred_check
        _
      $region30: #{tpu_custom_call.1} parent=5 // pred_check_branch
        %184 = sbr.rel (%p181) target = $region32
      $region31: #{tpu_custom_call.1} parent=5 // pred_region
        %s185 = ssub.s32 %s12, 1
        %p186 = scmp.lt.s32.totalorder %s22, 1
        %s187 = scalar_select %p186, %s22, 1
        %s188 = smul.addr %s187, 54
        %s189 = smul.addr %s188, 8
        %s190 = scalar_lea.vmem %s0, %s189
        %p191 = pneg %p57
        %p192 = pneg %p54
        %p193 = scmp.lt.s32.totalorder %s24, 0
        %s194 = scalar_select %p193, %s24, 0
        %s195 = smul.addr %s194, 4
        %s196 = scalar_lea.vmem %s1, %s195
        %p197 = pneg %p83
        %p198 = pneg %p80
        %p199 = scmp.lt.s32.totalorder %s24, 0
        %s200 = scalar_select %p199, %s24, 0
        %s201 = scalar_lea.vmem %s2, %s200
        %p202 = pneg %p109
        %p203 = pneg %p106
        %p204 = pneg %p139
        %p205 = pneg %p136
        %s206 = sand.u32 %s126, 1
        %s207 = scalar_lea.sflag [#allocation4], %s206
        %s208 = sand.u32 %s126, 1
        %s209 = smul.addr %s208, 256
        %s210 = scalar_lea.vmem [#allocation3], %s209
        %p211 = scmp.lt.s32.totalorder %s22, 1
        %s212 = scalar_select %p211, %s22, 1
        %s213 = smul.addr %s212, 54
        %s214 = smul.addr %s213, 8
        %s215 = scalar_lea.vmem %s0, %s214
        %p216 = scmp.lt.s32.totalorder %s24, 0
        %s217 = scalar_select %p216, %s24, 0
        %s218 = smul.addr %s217, 4
        %s219 = scalar_lea.vmem %s1, %s218
        %p220 = scmp.lt.s32.totalorder %s24, 0
        %s221 = scalar_select %p220, %s24, 0
        %s222 = scalar_lea.vmem %s2, %s221
        %s223 = smul.u32 16, %s23
        %s224 = smul.u32 %s23, 16
        %225 = vst [vmem:[#allocation2] sm:$0xff] 0.0
        %226 = vst [vmem:[#allocation2 + $0x8] sm:$0xff] 0.0
        %227 = vst [vmem:[#allocation2 + $0x10] sm:$0xff] 0.0
        %228 = vst [vmem:[#allocation2 + $0x18] sm:$0xff] 0.0
        %229 = vst [vmem:[#allocation2 + $0x20] sm:$0xff] 0.0
        %230 = vst [vmem:[#allocation2 + $0x28] sm:$0xff] 0.0
        %231 = vst [vmem:[#allocation2 + $0x30] sm:$0xff] 0.0
        %232 = vst [vmem:[#allocation2 + $0x38] sm:$0xff] 0.0
        %233 = vst [vmem:[#allocation2 + $0x40] sm:$0xff] 0.0
        %234 = vst [vmem:[#allocation2 + $0x48] sm:$0xff] 0.0
        %235 = vst [vmem:[#allocation2 + $0x50] sm:$0xff] 0.0
        %236 = vst [vmem:[#allocation2 + $0x58] sm:$0xff] 0.0
        %237 = vst [vmem:[#allocation2 + $0x60] sm:$0xff] 0.0
        %238 = vst [vmem:[#allocation2 + $0x68] sm:$0xff] 0.0
        %239 = vst [vmem:[#allocation2 + $0x70] sm:$0xff] 0.0
        %240 = vst [vmem:[#allocation2 + $0x78] sm:$0xff] 0.0
        %241 = vst [vmem:[#allocation2 + $0x80] sm:$0xff] 0.0
        %242 = vst [vmem:[#allocation2 + $0x88] sm:$0xff] 0.0
        %243 = vst [vmem:[#allocation2 + $0x90] sm:$0xff] 0.0
        %244 = vst [vmem:[#allocation2 + $0x98] sm:$0xff] 0.0
        %245 = vst [vmem:[#allocation2 + $0xa0] sm:$0xff] 0.0
        %246 = vst [vmem:[#allocation2 + $0xa8] sm:$0xff] 0.0
        %247 = vst [vmem:[#allocation2 + $0xb0] sm:$0xff] 0.0
        %248 = vst [vmem:[#allocation2 + $0xb8] sm:$0xff] 0.0
        %249 = vst [vmem:[#allocation2 + $0xc0] sm:$0xff] 0.0
        %250 = vst [vmem:[#allocation2 + $0xc8] sm:$0xff] 0.0
        %251 = vst [vmem:[#allocation2 + $0xd0] sm:$0xff] 0.0
        %252 = vst [vmem:[#allocation2 + $0xd8] sm:$0xff] 0.0
        %253 = vst [vmem:[#allocation2 + $0xe0] sm:$0xff] 0.0
        %254 = vst [vmem:[#allocation2 + $0xe8] sm:$0xff] 0.0
        %255 = vst [vmem:[#allocation2 + $0xf0] sm:$0xff] 0.0
        %256 = vst [vmem:[#allocation2 + $0xf8] sm:$0xff] 0.0
        %s257 = smul.u32 %s224, 24
        %s258 = scalar_lea.vmem %s215, %s257
        %v259 = vld [vmem:[%s258] sm:$0xff]
        %v260 = vld [vmem:[%s258 + $0x8] sm:$0xff]
        %v261 = vld [vmem:[%s258 + $0x18] sm:$0xff]
        %v262 = vld [vmem:[%s258 + $0x20] sm:$0xff]
        %v263 = vld [vmem:[%s258 + $0x30] sm:$0xff]
        %v264 = vld [vmem:[%s258 + $0x38] sm:$0xff]
        %v265 = vld [vmem:[%s258 + $0x48] sm:$0xff]
        %v266 = vld [vmem:[%s258 + $0x50] sm:$0xff]
        %v267 = vld [vmem:[%s258 + $0x60] sm:$0xff]
        %v268 = vld [vmem:[%s258 + $0x68] sm:$0xff]
        %v269 = vld [vmem:[%s258 + $0x78] sm:$0xff]
        %v270 = vld [vmem:[%s258 + $0x80] sm:$0xff]
        %v271 = vld [vmem:[%s258 + $0x90] sm:$0xff]
        %v272 = vld [vmem:[%s258 + $0x98] sm:$0xff]
        %v273 = vld [vmem:[%s258 + $0xa8] sm:$0xff]
        %v274 = vld [vmem:[%s258 + $0xb0] sm:$0xff]
        %v275 = vld [vmem:[%s258 + $0xc0] sm:$0xff]
        %v276 = vld [vmem:[%s258 + $0xc8] sm:$0xff]
        %v277 = vld [vmem:[%s258 + $0xd8] sm:$0xff]
        %v278 = vld [vmem:[%s258 + $0xe0] sm:$0xff]
        %v279 = vld [vmem:[%s258 + $0xf0] sm:$0xff]
        %v280 = vld [vmem:[%s258 + $0xf8] sm:$0xff]
        %v281 = vld [vmem:[%s258 + $0x108] sm:$0xff]
        %v282 = vld [vmem:[%s258 + $0x110] sm:$0xff]
        %v283 = vld [vmem:[%s258 + $0x120] sm:$0xff]
        %v284 = vld [vmem:[%s258 + $0x128] sm:$0xff]
        %v285 = vld [vmem:[%s258 + $0x138] sm:$0xff]
        %v286 = vld [vmem:[%s258 + $0x140] sm:$0xff]
        %v287 = vld [vmem:[%s258 + $0x150] sm:$0xff]
        %v288 = vld [vmem:[%s258 + $0x158] sm:$0xff]
        %v289 = vld [vmem:[%s258 + $0x168] sm:$0xff]
        %v290 = vld [vmem:[%s258 + $0x170] sm:$0xff]
        %v291 = vld [vmem:[#allocation2] sm:$0xff]
        %v292 = vld [vmem:[#allocation2 + $0x8] sm:$0xff]
        %v293 = vld [vmem:[#allocation2 + $0x10] sm:$0xff]
        %v294 = vld [vmem:[#allocation2 + $0x18] sm:$0xff]
        %v295 = vld [vmem:[#allocation2 + $0x20] sm:$0xff]
        %v296 = vld [vmem:[#allocation2 + $0x28] sm:$0xff]
        %v297 = vld [vmem:[#allocation2 + $0x30] sm:$0xff]
        %v298 = vld [vmem:[#allocation2 + $0x38] sm:$0xff]
        %v299 = vld [vmem:[#allocation2 + $0x40] sm:$0xff]
        %v300 = vld [vmem:[#allocation2 + $0x48] sm:$0xff]
        %v301 = vld [vmem:[#allocation2 + $0x50] sm:$0xff]
        %v302 = vld [vmem:[#allocation2 + $0x58] sm:$0xff]
        %v303 = vld [vmem:[#allocation2 + $0x60] sm:$0xff]
        %v304 = vld [vmem:[#allocation2 + $0x68] sm:$0xff]
        %v305 = vld [vmem:[#allocation2 + $0x70] sm:$0xff]
        %v306 = vld [vmem:[#allocation2 + $0x78] sm:$0xff]
        %v307 = vld [vmem:[#allocation2 + $0x80] sm:$0xff]
        %v308 = vld [vmem:[#allocation2 + $0x88] sm:$0xff]
        %v309 = vld [vmem:[#allocation2 + $0x90] sm:$0xff]
        %v310 = vld [vmem:[#allocation2 + $0x98] sm:$0xff]
        %v311 = vld [vmem:[#allocation2 + $0xa0] sm:$0xff]
        %v312 = vld [vmem:[#allocation2 + $0xa8] sm:$0xff]
        %v313 = vld [vmem:[#allocation2 + $0xb0] sm:$0xff]
        %v314 = vld [vmem:[#allocation2 + $0xb8] sm:$0xff]
        %v315 = vld [vmem:[#allocation2 + $0xc0] sm:$0xff]
        %v316 = vld [vmem:[#allocation2 + $0xc8] sm:$0xff]
        %v317 = vld [vmem:[#allocation2 + $0xd0] sm:$0xff]
        %v318 = vld [vmem:[#allocation2 + $0xd8] sm:$0xff]
        %v319 = vld [vmem:[#allocation2 + $0xe0] sm:$0xff]
        %v320 = vld [vmem:[#allocation2 + $0xe8] sm:$0xff]
        %v321 = vld [vmem:[#allocation2 + $0xf0] sm:$0xff]
        %v322 = vld [vmem:[#allocation2 + $0xf8] sm:$0xff]
        %v323 = vld [vmem:[%s219] sm:$0xf]
        %vm324 = vcmask 31744
        %v326 = vsel %vm324, %v259, 0
        %v329 = vsel %vm324, %v260, 0
        %v332 = vsel %vm324, %v261, 0
        %v335 = vsel %vm324, %v262, 0
        %v338 = vsel %vm324, %v263, 0
        %v341 = vsel %vm324, %v264, 0
        %v344 = vsel %vm324, %v265, 0
        %v347 = vsel %vm324, %v266, 0
        %v350 = vsel %vm324, %v267, 0
        %v353 = vsel %vm324, %v268, 0
        %v356 = vsel %vm324, %v269, 0
        %v359 = vsel %vm324, %v270, 0
        %v362 = vsel %vm324, %v271, 0
        %v365 = vsel %vm324, %v272, 0
        %v368 = vsel %vm324, %v273, 0
        %v371 = vsel %vm324, %v274, 0
        %v374 = vsel %vm324, %v275, 0
        %v377 = vsel %vm324, %v276, 0
        %v380 = vsel %vm324, %v277, 0
        %v383 = vsel %vm324, %v278, 0
        %v386 = vsel %vm324, %v279, 0
        %v389 = vsel %vm324, %v280, 0
        %v392 = vsel %vm324, %v281, 0
        %v395 = vsel %vm324, %v282, 0
        %v398 = vsel %vm324, %v283, 0
        %v401 = vsel %vm324, %v284, 0
        %v404 = vsel %vm324, %v285, 0
        %v407 = vsel %vm324, %v286, 0
        %v410 = vsel %vm324, %v287, 0
        %v413 = vsel %vm324, %v288, 0
        %v416 = vsel %vm324, %v289, 0
        %v419 = vsel %vm324, %v290, 0
        %vm421 = vcmask 1043456
        %v423 = vsel %vm421, %v323, 0
        %425 = vmatprep.subr.mxu0 0.0
        %426 = vmatpush1.msra.mxu0 0.0
        %427 = vmatprep.subr.mxu0 0.0
        %428 = vmatpush1.msra.mxu0 0.0
        %429 = vmatprep.subr.mxu0 0.0
        %430 = vmatpush1.msra.mxu0 0.0
        %431 = vmatprep.subr.mxu0 0.0
        %432 = vmatpush1.msra.mxu0 0.0
        %433 = vmatprep.subr.mxu0 0.0
        %434 = vmatpush1.msra.mxu0 0.0
        %435 = vmatprep.subr.mxu0 0.0
        %436 = vmatpush1.msra.mxu0 0.0
        %437 = vmatprep.subr.mxu0 0.0
        %438 = vmatpush1.msra.mxu0 0.0
        %439 = vmatprep.subr.mxu0 0.0
        %440 = vmatpush1.msra.mxu0 0.0
        %441 = vmatprep.subr.mxu0 0.0
        %442 = vmatpush1.msra.mxu0 0.0
        %443 = vmatprep.subr.mxu0 0.0
        %444 = vmatpush1.msra.mxu0 0.0
        %445 = vmatprep.subr.mxu0 0.0
        %446 = vmatpush1.msra.mxu0 0.0
        %447 = vmatprep.subr.mxu0 0.0
        %448 = vmatpush1.msra.mxu0 0.0
        %449 = vmatprep.subr.mxu0 0.0
        %450 = vmatpush1.msra.mxu0 0.0
        %451 = vmatprep.subr.mxu0 0.0
        %452 = vmatpush1.msra.mxu0 0.0
        %453 = vmatprep.subr.mxu0 0.0
        %454 = vmatpush1.msra.mxu0 0.0
        %455 = vmatprep.subr.mxu0 0.0
        %456 = vmatpush1.msra.mxu0 %v423
        %457 = vmatprep.subr.mxu0 0.0
        %458 = vmatpush2.msra.mxu0 0.0
        %459 = vmatprep.subr.mxu0 0.0
        %460 = vmatpush2.msra.mxu0 0.0
        %461 = vmatprep.subr.mxu0 0.0
        %462 = vmatpush2.msra.mxu0 0.0
        %463 = vmatprep.subr.mxu0 0.0
        %464 = vmatpush2.msra.mxu0 0.0
        %465 = vmatprep.subr.mxu0 0.0
        %466 = vmatpush2.msra.mxu0 0.0
        %467 = vmatprep.subr.mxu0 0.0
        %468 = vmatpush2.msra.mxu0 0.0
        %469 = vmatprep.subr.mxu0 0.0
        %470 = vmatpush2.msra.mxu0 0.0
        %471 = vmatprep.subr.mxu0 0.0
        %472 = vmatpush2.msra.mxu0 0.0
        %473 = vmatprep.subr.mxu0 0.0
        %474 = vmatpush2.msra.mxu0 0.0
        %475 = vmatprep.subr.mxu0 0.0
        %476 = vmatpush2.msra.mxu0 0.0
        %477 = vmatprep.subr.mxu0 0.0
        %478 = vmatpush2.msra.mxu0 0.0
        %479 = vmatprep.subr.mxu0 0.0
        %480 = vmatpush2.msra.mxu0 0.0
        %481 = vmatprep.subr.mxu0 0.0
        %482 = vmatpush2.msra.mxu0 0.0
        %483 = vmatprep.subr.mxu0 0.0
        %484 = vmatpush2.msra.mxu0 0.0
        %485 = vmatprep.subr.mxu0 0.0
        %486 = vmatpush2.msra.mxu0 0.0
        %487 = vmatprep.subr.mxu0 0.0
        %488 = vmatpush2.msra.mxu0 0.0
        %489 = vmatprep.mubr.f32.mxu0 0.0
        %490 = vmatmul.mubr.f32.gmra.mxu0 %v326
        %v491 = vpop.f32.mrf.mxu0
        %v492 = vadd.f32 0.0, %v491
        %v493 = vpop.f32.mrf.mxu0
        %494 = vmatprep.mubr.f32.mxu0 0.0
        %495 = vmatmul.mubr.f32.gmra.mxu0 %v329
        %v496 = vpop.f32.mrf.mxu0
        %v497 = vadd.f32 0.0, %v496
        %v498 = vpop.f32.mrf.mxu0
        %499 = vmatprep.mubr.f32.mxu0 0.0
        %500 = vmatmul.mubr.f32.gmra.mxu0 %v332
        %v501 = vpop.f32.mrf.mxu0
        %v502 = vadd.f32 0.0, %v501
        %v503 = vpop.f32.mrf.mxu0
        %504 = vmatprep.mubr.f32.mxu0 0.0
        %505 = vmatmul.mubr.f32.gmra.mxu0 %v335
        %v506 = vpop.f32.mrf.mxu0
        %v507 = vadd.f32 0.0, %v506
        %v508 = vpop.f32.mrf.mxu0
        %509 = vmatprep.mubr.f32.mxu0 0.0
        %510 = vmatmul.mubr.f32.gmra.mxu0 %v338
        %v511 = vpop.f32.mrf.mxu0
        %v512 = vadd.f32 0.0, %v511
        %v513 = vpop.f32.mrf.mxu0
        %514 = vmatprep.mubr.f32.mxu0 0.0
        %515 = vmatmul.mubr.f32.gmra.mxu0 %v341
        %v516 = vpop.f32.mrf.mxu0
        %v517 = vadd.f32 0.0, %v516
        %v518 = vpop.f32.mrf.mxu0
        %519 = vmatprep.mubr.f32.mxu0 0.0
        %520 = vmatmul.mubr.f32.gmra.mxu0 %v344
        %v521 = vpop.f32.mrf.mxu0
        %v522 = vadd.f32 0.0, %v521
        %v523 = vpop.f32.mrf.mxu0
        %524 = vmatprep.mubr.f32.mxu0 0.0
        %525 = vmatmul.mubr.f32.gmra.mxu0 %v347
        %v526 = vpop.f32.mrf.mxu0
        %v527 = vadd.f32 0.0, %v526
        %v528 = vpop.f32.mrf.mxu0
        %529 = vmatprep.mubr.f32.mxu0 0.0
        %530 = vmatmul.mubr.f32.gmra.mxu0 %v350
        %v531 = vpop.f32.mrf.mxu0
        %v532 = vadd.f32 0.0, %v531
        %v533 = vpop.f32.mrf.mxu0
        %534 = vmatprep.mubr.f32.mxu0 0.0
        %535 = vmatmul.mubr.f32.gmra.mxu0 %v353
        %v536 = vpop.f32.mrf.mxu0
        %v537 = vadd.f32 0.0, %v536
        %v538 = vpop.f32.mrf.mxu0
        %539 = vmatprep.mubr.f32.mxu0 0.0
        %540 = vmatmul.mubr.f32.gmra.mxu0 %v356
        %v541 = vpop.f32.mrf.mxu0
        %v542 = vadd.f32 0.0, %v541
        %v543 = vpop.f32.mrf.mxu0
        %544 = vmatprep.mubr.f32.mxu0 0.0
        %545 = vmatmul.mubr.f32.gmra.mxu0 %v359
        %v546 = vpop.f32.mrf.mxu0
        %v547 = vadd.f32 0.0, %v546
        %v548 = vpop.f32.mrf.mxu0
        %549 = vmatprep.mubr.f32.mxu0 0.0
        %550 = vmatmul.mubr.f32.gmra.mxu0 %v362
        %v551 = vpop.f32.mrf.mxu0
        %v552 = vadd.f32 0.0, %v551
        %v553 = vpop.f32.mrf.mxu0
        %554 = vmatprep.mubr.f32.mxu0 0.0
        %555 = vmatmul.mubr.f32.gmra.mxu0 %v365
        %v556 = vpop.f32.mrf.mxu0
        %v557 = vadd.f32 0.0, %v556
        %v558 = vpop.f32.mrf.mxu0
        %559 = vmatprep.mubr.f32.mxu0 0.0
        %560 = vmatmul.mubr.f32.gmra.mxu0 %v368
        %v561 = vpop.f32.mrf.mxu0
        %v562 = vadd.f32 0.0, %v561
        %v563 = vpop.f32.mrf.mxu0
        %564 = vmatprep.mubr.f32.mxu0 0.0
        %565 = vmatmul.mubr.f32.gmra.mxu0 %v371
        %v566 = vpop.f32.mrf.mxu0
        %v567 = vadd.f32 0.0, %v566
        %v568 = vpop.f32.mrf.mxu0
        %569 = vmatprep.mubr.f32.mxu0 0.0
        %570 = vmatmul.mubr.f32.gmra.mxu0 %v374
        %v571 = vpop.f32.mrf.mxu0
        %v572 = vadd.f32 0.0, %v571
        %v573 = vpop.f32.mrf.mxu0
        %574 = vmatprep.mubr.f32.mxu0 0.0
        %575 = vmatmul.mubr.f32.gmra.mxu0 %v377
        %v576 = vpop.f32.mrf.mxu0
        %v577 = vadd.f32 0.0, %v576
        %v578 = vpop.f32.mrf.mxu0
        %579 = vmatprep.mubr.f32.mxu0 0.0
        %580 = vmatmul.mubr.f32.gmra.mxu0 %v380
        %v581 = vpop.f32.mrf.mxu0
        %v582 = vadd.f32 0.0, %v581
        %v583 = vpop.f32.mrf.mxu0
        %584 = vmatprep.mubr.f32.mxu0 0.0
        %585 = vmatmul.mubr.f32.gmra.mxu0 %v383
        %v586 = vpop.f32.mrf.mxu0
        %v587 = vadd.f32 0.0, %v586
        %v588 = vpop.f32.mrf.mxu0
        %589 = vmatprep.mubr.f32.mxu0 0.0
        %590 = vmatmul.mubr.f32.gmra.mxu0 %v386
        %v591 = vpop.f32.mrf.mxu0
        %v592 = vadd.f32 0.0, %v591
        %v593 = vpop.f32.mrf.mxu0
        %594 = vmatprep.mubr.f32.mxu0 0.0
        %595 = vmatmul.mubr.f32.gmra.mxu0 %v389
        %v596 = vpop.f32.mrf.mxu0
        %v597 = vadd.f32 0.0, %v596
        %v598 = vpop.f32.mrf.mxu0
        %599 = vmatprep.mubr.f32.mxu0 0.0
        %600 = vmatmul.mubr.f32.gmra.mxu0 %v392
        %v601 = vpop.f32.mrf.mxu0
        %v602 = vadd.f32 0.0, %v601
        %v603 = vpop.f32.mrf.mxu0
        %604 = vmatprep.mubr.f32.mxu0 0.0
        %605 = vmatmul.mubr.f32.gmra.mxu0 %v395
        %v606 = vpop.f32.mrf.mxu0
        %v607 = vadd.f32 0.0, %v606
        %v608 = vpop.f32.mrf.mxu0
        %609 = vmatprep.mubr.f32.mxu0 0.0
        %610 = vmatmul.mubr.f32.gmra.mxu0 %v398
        %v611 = vpop.f32.mrf.mxu0
        %v612 = vadd.f32 0.0, %v611
        %v613 = vpop.f32.mrf.mxu0
        %614 = vmatprep.mubr.f32.mxu0 0.0
        %615 = vmatmul.mubr.f32.gmra.mxu0 %v401
        %v616 = vpop.f32.mrf.mxu0
        %v617 = vadd.f32 0.0, %v616
        %v618 = vpop.f32.mrf.mxu0
        %619 = vmatprep.mubr.f32.mxu0 0.0
        %620 = vmatmul.mubr.f32.gmra.mxu0 %v404
        %v621 = vpop.f32.mrf.mxu0
        %v622 = vadd.f32 0.0, %v621
        %v623 = vpop.f32.mrf.mxu0
        %624 = vmatprep.mubr.f32.mxu0 0.0
        %625 = vmatmul.mubr.f32.gmra.mxu0 %v407
        %v626 = vpop.f32.mrf.mxu0
        %v627 = vadd.f32 0.0, %v626
        %v628 = vpop.f32.mrf.mxu0
        %629 = vmatprep.mubr.f32.mxu0 0.0
        %630 = vmatmul.mubr.f32.gmra.mxu0 %v410
        %v631 = vpop.f32.mrf.mxu0
        %v632 = vadd.f32 0.0, %v631
        %v633 = vpop.f32.mrf.mxu0
        %634 = vmatprep.mubr.f32.mxu0 0.0
        %635 = vmatmul.mubr.f32.gmra.mxu0 %v413
        %v636 = vpop.f32.mrf.mxu0
        %v637 = vadd.f32 0.0, %v636
        %v638 = vpop.f32.mrf.mxu0
        %639 = vmatprep.mubr.f32.mxu0 0.0
        %640 = vmatmul.mubr.f32.gmra.mxu0 %v416
        %v641 = vpop.f32.mrf.mxu0
        %v642 = vadd.f32 0.0, %v641
        %v643 = vpop.f32.mrf.mxu0
        %644 = vmatprep.mubr.f32.mxu0 0.0
        %645 = vmatmul.mubr.f32.gmra.mxu0 %v419
        %v646 = vpop.f32.mrf.mxu0
        %v647 = vadd.f32 0.0, %v646
        %v648 = vpop.f32.mrf.mxu0
        %649 = vdwg.mxu0
        %v650 = vadd.f32 %v291, %v492
        %v651 = vadd.f32 %v292, %v497
        %v652 = vadd.f32 %v293, %v502
        %v653 = vadd.f32 %v294, %v507
        %v654 = vadd.f32 %v295, %v512
        %v655 = vadd.f32 %v296, %v517
        %v656 = vadd.f32 %v297, %v522
        %v657 = vadd.f32 %v298, %v527
        %v658 = vadd.f32 %v299, %v532
        %v659 = vadd.f32 %v300, %v537
        %v660 = vadd.f32 %v301, %v542
        %v661 = vadd.f32 %v302, %v547
        %v662 = vadd.f32 %v303, %v552
        %v663 = vadd.f32 %v304, %v557
        %v664 = vadd.f32 %v305, %v562
        %v665 = vadd.f32 %v306, %v567
        %v666 = vadd.f32 %v307, %v572
        %v667 = vadd.f32 %v308, %v577
        %v668 = vadd.f32 %v309, %v582
        %v669 = vadd.f32 %v310, %v587
        %v670 = vadd.f32 %v311, %v592
        %v671 = vadd.f32 %v312, %v597
        %v672 = vadd.f32 %v313, %v602
        %v673 = vadd.f32 %v314, %v607
        %v674 = vadd.f32 %v315, %v612
        %v675 = vadd.f32 %v316, %v617
        %v676 = vadd.f32 %v317, %v622
        %v677 = vadd.f32 %v318, %v627
        %v678 = vadd.f32 %v319, %v632
        %v679 = vadd.f32 %v320, %v637
        %v680 = vadd.f32 %v321, %v642
        %v681 = vadd.f32 %v322, %v647
        %682 = vst [vmem:[#allocation2] sm:$0xff] %v650
        %683 = vst [vmem:[#allocation2 + $0x8] sm:$0xff] %v651
        %684 = vst [vmem:[#allocation2 + $0x10] sm:$0xff] %v652
        %685 = vst [vmem:[#allocation2 + $0x18] sm:$0xff] %v653
        %686 = vst [vmem:[#allocation2 + $0x20] sm:$0xff] %v654
        %687 = vst [vmem:[#allocation2 + $0x28] sm:$0xff] %v655
        %688 = vst [vmem:[#allocation2 + $0x30] sm:$0xff] %v656
        %689 = vst [vmem:[#allocation2 + $0x38] sm:$0xff] %v657
        %690 = vst [vmem:[#allocation2 + $0x40] sm:$0xff] %v658
        %691 = vst [vmem:[#allocation2 + $0x48] sm:$0xff] %v659
        %692 = vst [vmem:[#allocation2 + $0x50] sm:$0xff] %v660
        %693 = vst [vmem:[#allocation2 + $0x58] sm:$0xff] %v661
        %694 = vst [vmem:[#allocation2 + $0x60] sm:$0xff] %v662
        %695 = vst [vmem:[#allocation2 + $0x68] sm:$0xff] %v663
        %696 = vst [vmem:[#allocation2 + $0x70] sm:$0xff] %v664
        %697 = vst [vmem:[#allocation2 + $0x78] sm:$0xff] %v665
        %698 = vst [vmem:[#allocation2 + $0x80] sm:$0xff] %v666
        %699 = vst [vmem:[#allocation2 + $0x88] sm:$0xff] %v667
        %700 = vst [vmem:[#allocation2 + $0x90] sm:$0xff] %v668
        %701 = vst [vmem:[#allocation2 + $0x98] sm:$0xff] %v669
        %702 = vst [vmem:[#allocation2 + $0xa0] sm:$0xff] %v670
        %703 = vst [vmem:[#allocation2 + $0xa8] sm:$0xff] %v671
        %704 = vst [vmem:[#allocation2 + $0xb0] sm:$0xff] %v672
        %705 = vst [vmem:[#allocation2 + $0xb8] sm:$0xff] %v673
        %706 = vst [vmem:[#allocation2 + $0xc0] sm:$0xff] %v674
        %707 = vst [vmem:[#allocation2 + $0xc8] sm:$0xff] %v675
        %708 = vst [vmem:[#allocation2 + $0xd0] sm:$0xff] %v676
        %709 = vst [vmem:[#allocation2 + $0xd8] sm:$0xff] %v677
        %710 = vst [vmem:[#allocation2 + $0xe0] sm:$0xff] %v678
        %711 = vst [vmem:[#allocation2 + $0xe8] sm:$0xff] %v679
        %712 = vst [vmem:[#allocation2 + $0xf0] sm:$0xff] %v680
        %713 = vst [vmem:[#allocation2 + $0xf8] sm:$0xff] %v681
        %v714 = vld [vmem:[%s258 + $0x1] sm:$0xff]
        %v715 = vld [vmem:[%s258 + $0x9] sm:$0xff]
        %v716 = vld [vmem:[%s258 + $0x19] sm:$0xff]
        %v717 = vld [vmem:[%s258 + $0x21] sm:$0xff]
        %v718 = vld [vmem:[%s258 + $0x31] sm:$0xff]
        %v719 = vld [vmem:[%s258 + $0x39] sm:$0xff]
        %v720 = vld [vmem:[%s258 + $0x49] sm:$0xff]
        %v721 = vld [vmem:[%s258 + $0x51] sm:$0xff]
        %v722 = vld [vmem:[%s258 + $0x61] sm:$0xff]
        %v723 = vld [vmem:[%s258 + $0x69] sm:$0xff]
        %v724 = vld [vmem:[%s258 + $0x79] sm:$0xff]
        %v725 = vld [vmem:[%s258 + $0x81] sm:$0xff]
        %v726 = vld [vmem:[%s258 + $0x91] sm:$0xff]
        %v727 = vld [vmem:[%s258 + $0x99] sm:$0xff]
        %v728 = vld [vmem:[%s258 + $0xa9] sm:$0xff]
        %v729 = vld [vmem:[%s258 + $0xb1] sm:$0xff]
        %v730 = vld [vmem:[%s258 + $0xc1] sm:$0xff]
        %v731 = vld [vmem:[%s258 + $0xc9] sm:$0xff]
        %v732 = vld [vmem:[%s258 + $0xd9] sm:$0xff]
        %v733 = vld [vmem:[%s258 + $0xe1] sm:$0xff]
        %v734 = vld [vmem:[%s258 + $0xf1] sm:$0xff]
        %v735 = vld [vmem:[%s258 + $0xf9] sm:$0xff]
        %v736 = vld [vmem:[%s258 + $0x109] sm:$0xff]
        %v737 = vld [vmem:[%s258 + $0x111] sm:$0xff]
        %v738 = vld [vmem:[%s258 + $0x121] sm:$0xff]
        %v739 = vld [vmem:[%s258 + $0x129] sm:$0xff]
        %v740 = vld [vmem:[%s258 + $0x139] sm:$0xff]
        %v741 = vld [vmem:[%s258 + $0x141] sm:$0xff]
        %v742 = vld [vmem:[%s258 + $0x151] sm:$0xff]
        %v743 = vld [vmem:[%s258 + $0x159] sm:$0xff]
        %v744 = vld [vmem:[%s258 + $0x169] sm:$0xff]
        %v745 = vld [vmem:[%s258 + $0x171] sm:$0xff]
        %v746 = vld [vmem:[#allocation2] sm:$0xff]
        %v747 = vld [vmem:[#allocation2 + $0x8] sm:$0xff]
        %v748 = vld [vmem:[#allocation2 + $0x10] sm:$0xff]
        %v749 = vld [vmem:[#allocation2 + $0x18] sm:$0xff]
        %v750 = vld [vmem:[#allocation2 + $0x20] sm:$0xff]
        %v751 = vld [vmem:[#allocation2 + $0x28] sm:$0xff]
        %v752 = vld [vmem:[#allocation2 + $0x30] sm:$0xff]
        %v753 = vld [vmem:[#allocation2 + $0x38] sm:$0xff]
        %v754 = vld [vmem:[#allocation2 + $0x40] sm:$0xff]
        %v755 = vld [vmem:[#allocation2 + $0x48] sm:$0xff]
        %v756 = vld [vmem:[#allocation2 + $0x50] sm:$0xff]
        %v757 = vld [vmem:[#allocation2 + $0x58] sm:$0xff]
        %v758 = vld [vmem:[#allocation2 + $0x60] sm:$0xff]
        %v759 = vld [vmem:[#allocation2 + $0x68] sm:$0xff]
        %v760 = vld [vmem:[#allocation2 + $0x70] sm:$0xff]
        %v761 = vld [vmem:[#allocation2 + $0x78] sm:$0xff]
        %v762 = vld [vmem:[#allocation2 + $0x80] sm:$0xff]
        %v763 = vld [vmem:[#allocation2 + $0x88] sm:$0xff]
        %v764 = vld [vmem:[#allocation2 + $0x90] sm:$0xff]
        %v765 = vld [vmem:[#allocation2 + $0x98] sm:$0xff]
        %v766 = vld [vmem:[#allocation2 + $0xa0] sm:$0xff]
        %v767 = vld [vmem:[#allocation2 + $0xa8] sm:$0xff]
        %v768 = vld [vmem:[#allocation2 + $0xb0] sm:$0xff]
        %v769 = vld [vmem:[#allocation2 + $0xb8] sm:$0xff]
        %v770 = vld [vmem:[#allocation2 + $0xc0] sm:$0xff]
        %v771 = vld [vmem:[#allocation2 + $0xc8] sm:$0xff]
        %v772 = vld [vmem:[#allocation2 + $0xd0] sm:$0xff]
        %v773 = vld [vmem:[#allocation2 + $0xd8] sm:$0xff]
        %v774 = vld [vmem:[#allocation2 + $0xe0] sm:$0xff]
        %v775 = vld [vmem:[#allocation2 + $0xe8] sm:$0xff]
        %v776 = vld [vmem:[#allocation2 + $0xf0] sm:$0xff]
        %v777 = vld [vmem:[#allocation2 + $0xf8] sm:$0xff]
        %s778 = scalar_lea.vmem %s219, 4
        %v779 = vld [vmem:[%s778] sm:$0xf]
        %v781 = vsel %vm324, %v714, 0
        %v784 = vsel %vm324, %v715, 0
        %v787 = vsel %vm324, %v716, 0
        %v790 = vsel %vm324, %v717, 0
        %v793 = vsel %vm324, %v718, 0
        %v796 = vsel %vm324, %v719, 0
        %v799 = vsel %vm324, %v720, 0
        %v802 = vsel %vm324, %v721, 0
        %v805 = vsel %vm324, %v722, 0
        %v808 = vsel %vm324, %v723, 0
        %v811 = vsel %vm324, %v724, 0
        %v814 = vsel %vm324, %v725, 0
        %v817 = vsel %vm324, %v726, 0
        %v820 = vsel %vm324, %v727, 0
        %v823 = vsel %vm324, %v728, 0
        %v826 = vsel %vm324, %v729, 0
        %v829 = vsel %vm324, %v730, 0
        %v832 = vsel %vm324, %v731, 0
        %v835 = vsel %vm324, %v732, 0
        %v838 = vsel %vm324, %v733, 0
        %v841 = vsel %vm324, %v734, 0
        %v844 = vsel %vm324, %v735, 0
        %v847 = vsel %vm324, %v736, 0
        %v850 = vsel %vm324, %v737, 0
        %v853 = vsel %vm324, %v738, 0
        %v856 = vsel %vm324, %v739, 0
        %v859 = vsel %vm324, %v740, 0
        %v862 = vsel %vm324, %v741, 0
        %v865 = vsel %vm324, %v742, 0
        %v868 = vsel %vm324, %v743, 0
        %v871 = vsel %vm324, %v744, 0
        %v874 = vsel %vm324, %v745, 0
        %v877 = vsel %vm421, %v779, 0
        %879 = vmatprep.subr.mxu0 0.0
        %880 = vmatpush1.msra.mxu0 0.0
        %881 = vmatprep.subr.mxu0 0.0
        %882 = vmatpush1.msra.mxu0 0.0
        %883 = vmatprep.subr.mxu0 0.0
        %884 = vmatpush1.msra.mxu0 0.0
        %885 = vmatprep.subr.mxu0 0.0
        %886 = vmatpush1.msra.mxu0 0.0
        %887 = vmatprep.subr.mxu0 0.0
        %888 = vmatpush1.msra.mxu0 0.0
        %889 = vmatprep.subr.mxu0 0.0
        %890 = vmatpush1.msra.mxu0 0.0
        %891 = vmatprep.subr.mxu0 0.0
        %892 = vmatpush1.msra.mxu0 0.0
        %893 = vmatprep.subr.mxu0 0.0
        %894 = vmatpush1.msra.mxu0 0.0
        %895 = vmatprep.subr.mxu0 0.0
        %896 = vmatpush1.msra.mxu0 0.0
        %897 = vmatprep.subr.mxu0 0.0
        %898 = vmatpush1.msra.mxu0 0.0
        %899 = vmatprep.subr.mxu0 0.0
        %900 = vmatpush1.msra.mxu0 0.0
        %901 = vmatprep.subr.mxu0 0.0
        %902 = vmatpush1.msra.mxu0 0.0
        %903 = vmatprep.subr.mxu0 0.0
        %904 = vmatpush1.msra.mxu0 0.0
        %905 = vmatprep.subr.mxu0 0.0
        %906 = vmatpush1.msra.mxu0 0.0
        %907 = vmatprep.subr.mxu0 0.0
        %908 = vmatpush1.msra.mxu0 0.0
        %909 = vmatprep.subr.mxu0 0.0
        %910 = vmatpush1.msra.mxu0 %v877
        %911 = vmatprep.subr.mxu0 0.0
        %912 = vmatpush2.msra.mxu0 0.0
        %913 = vmatprep.subr.mxu0 0.0
        %914 = vmatpush2.msra.mxu0 0.0
        %915 = vmatprep.subr.mxu0 0.0
        %916 = vmatpush2.msra.mxu0 0.0
        %917 = vmatprep.subr.mxu0 0.0
        %918 = vmatpush2.msra.mxu0 0.0
        %919 = vmatprep.subr.mxu0 0.0
        %920 = vmatpush2.msra.mxu0 0.0
        %921 = vmatprep.subr.mxu0 0.0
        %922 = vmatpush2.msra.mxu0 0.0
        %923 = vmatprep.subr.mxu0 0.0
        %924 = vmatpush2.msra.mxu0 0.0
        %925 = vmatprep.subr.mxu0 0.0
        %926 = vmatpush2.msra.mxu0 0.0
        %927 = vmatprep.subr.mxu0 0.0
        %928 = vmatpush2.msra.mxu0 0.0
        %929 = vmatprep.subr.mxu0 0.0
        %930 = vmatpush2.msra.mxu0 0.0
        %931 = vmatprep.subr.mxu0 0.0
        %932 = vmatpush2.msra.mxu0 0.0
        %933 = vmatprep.subr.mxu0 0.0
        %934 = vmatpush2.msra.mxu0 0.0
        %935 = vmatprep.subr.mxu0 0.0
        %936 = vmatpush2.msra.mxu0 0.0
        %937 = vmatprep.subr.mxu0 0.0
        %938 = vmatpush2.msra.mxu0 0.0
        %939 = vmatprep.subr.mxu0 0.0
        %940 = vmatpush2.msra.mxu0 0.0
        %941 = vmatprep.subr.mxu0 0.0
        %942 = vmatpush2.msra.mxu0 0.0
        %943 = vmatprep.mubr.f32.mxu0 0.0
        %944 = vmatmul.mubr.f32.gmra.mxu0 %v781
        %v945 = vpop.f32.mrf.mxu0
        %v946 = vadd.f32 0.0, %v945
        %v947 = vpop.f32.mrf.mxu0
        %948 = vmatprep.mubr.f32.mxu0 0.0
        %949 = vmatmul.mubr.f32.gmra.mxu0 %v784
        %v950 = vpop.f32.mrf.mxu0
        %v951 = vadd.f32 0.0, %v950
        %v952 = vpop.f32.mrf.mxu0
        %953 = vmatprep.mubr.f32.mxu0 0.0
        %954 = vmatmul.mubr.f32.gmra.mxu0 %v787
        %v955 = vpop.f32.mrf.mxu0
        %v956 = vadd.f32 0.0, %v955
        %v957 = vpop.f32.mrf.mxu0
        %958 = vmatprep.mubr.f32.mxu0 0.0
        %959 = vmatmul.mubr.f32.gmra.mxu0 %v790
        %v960 = vpop.f32.mrf.mxu0
        %v961 = vadd.f32 0.0, %v960
        %v962 = vpop.f32.mrf.mxu0
        %963 = vmatprep.mubr.f32.mxu0 0.0
        %964 = vmatmul.mubr.f32.gmra.mxu0 %v793
        %v965 = vpop.f32.mrf.mxu0
        %v966 = vadd.f32 0.0, %v965
        %v967 = vpop.f32.mrf.mxu0
        %968 = vmatprep.mubr.f32.mxu0 0.0
        %969 = vmatmul.mubr.f32.gmra.mxu0 %v796
        %v970 = vpop.f32.mrf.mxu0
        %v971 = vadd.f32 0.0, %v970
        %v972 = vpop.f32.mrf.mxu0
        %973 = vmatprep.mubr.f32.mxu0 0.0
        %974 = vmatmul.mubr.f32.gmra.mxu0 %v799
        %v975 = vpop.f32.mrf.mxu0
        %v976 = vadd.f32 0.0, %v975
        %v977 = vpop.f32.mrf.mxu0
        %978 = vmatprep.mubr.f32.mxu0 0.0
        %979 = vmatmul.mubr.f32.gmra.mxu0 %v802
        %v980 = vpop.f32.mrf.mxu0
        %v981 = vadd.f32 0.0, %v980
        %v982 = vpop.f32.mrf.mxu0
        %983 = vmatprep.mubr.f32.mxu0 0.0
        %984 = vmatmul.mubr.f32.gmra.mxu0 %v805
        %v985 = vpop.f32.mrf.mxu0
        %v986 = vadd.f32 0.0, %v985
        %v987 = vpop.f32.mrf.mxu0
        %988 = vmatprep.mubr.f32.mxu0 0.0
        %989 = vmatmul.mubr.f32.gmra.mxu0 %v808
        %v990 = vpop.f32.mrf.mxu0
        %v991 = vadd.f32 0.0, %v990
        %v992 = vpop.f32.mrf.mxu0
        %993 = vmatprep.mubr.f32.mxu0 0.0
        %994 = vmatmul.mubr.f32.gmra.mxu0 %v811
        %v995 = vpop.f32.mrf.mxu0
        %v996 = vadd.f32 0.0, %v995
        %v997 = vpop.f32.mrf.mxu0
        %998 = vmatprep.mubr.f32.mxu0 0.0
        %999 = vmatmul.mubr.f32.gmra.mxu0 %v814
        %v1000 = vpop.f32.mrf.mxu0
        %v1001 = vadd.f32 0.0, %v1000
        %v1002 = vpop.f32.mrf.mxu0
        %1003 = vmatprep.mubr.f32.mxu0 0.0
        %1004 = vmatmul.mubr.f32.gmra.mxu0 %v817
        %v1005 = vpop.f32.mrf.mxu0
        %v1006 = vadd.f32 0.0, %v1005
        %v1007 = vpop.f32.mrf.mxu0
        %1008 = vmatprep.mubr.f32.mxu0 0.0
        %1009 = vmatmul.mubr.f32.gmra.mxu0 %v820
        %v1010 = vpop.f32.mrf.mxu0
        %v1011 = vadd.f32 0.0, %v1010
        %v1012 = vpop.f32.mrf.mxu0
        %1013 = vmatprep.mubr.f32.mxu0 0.0
        %1014 = vmatmul.mubr.f32.gmra.mxu0 %v823
        %v1015 = vpop.f32.mrf.mxu0
        %v1016 = vadd.f32 0.0, %v1015
        %v1017 = vpop.f32.mrf.mxu0
        %1018 = vmatprep.mubr.f32.mxu0 0.0
        %1019 = vmatmul.mubr.f32.gmra.mxu0 %v826
        %v1020 = vpop.f32.mrf.mxu0
        %v1021 = vadd.f32 0.0, %v1020
        %v1022 = vpop.f32.mrf.mxu0
        %1023 = vmatprep.mubr.f32.mxu0 0.0
        %1024 = vmatmul.mubr.f32.gmra.mxu0 %v829
        %v1025 = vpop.f32.mrf.mxu0
        %v1026 = vadd.f32 0.0, %v1025
        %v1027 = vpop.f32.mrf.mxu0
        %1028 = vmatprep.mubr.f32.mxu0 0.0
        %1029 = vmatmul.mubr.f32.gmra.mxu0 %v832
        %v1030 = vpop.f32.mrf.mxu0
        %v1031 = vadd.f32 0.0, %v1030
        %v1032 = vpop.f32.mrf.mxu0
        %1033 = vmatprep.mubr.f32.mxu0 0.0
        %1034 = vmatmul.mubr.f32.gmra.mxu0 %v835
        %v1035 = vpop.f32.mrf.mxu0
        %v1036 = vadd.f32 0.0, %v1035
        %v1037 = vpop.f32.mrf.mxu0
        %1038 = vmatprep.mubr.f32.mxu0 0.0
        %1039 = vmatmul.mubr.f32.gmra.mxu0 %v838
        %v1040 = vpop.f32.mrf.mxu0
        %v1041 = vadd.f32 0.0, %v1040
        %v1042 = vpop.f32.mrf.mxu0
        %1043 = vmatprep.mubr.f32.mxu0 0.0
        %1044 = vmatmul.mubr.f32.gmra.mxu0 %v841
        %v1045 = vpop.f32.mrf.mxu0
        %v1046 = vadd.f32 0.0, %v1045
        %v1047 = vpop.f32.mrf.mxu0
        %1048 = vmatprep.mubr.f32.mxu0 0.0
        %1049 = vmatmul.mubr.f32.gmra.mxu0 %v844
        %v1050 = vpop.f32.mrf.mxu0
        %v1051 = vadd.f32 0.0, %v1050
        %v1052 = vpop.f32.mrf.mxu0
        %1053 = vmatprep.mubr.f32.mxu0 0.0
        %1054 = vmatmul.mubr.f32.gmra.mxu0 %v847
        %v1055 = vpop.f32.mrf.mxu0
        %v1056 = vadd.f32 0.0, %v1055
        %v1057 = vpop.f32.mrf.mxu0
        %1058 = vmatprep.mubr.f32.mxu0 0.0
        %1059 = vmatmul.mubr.f32.gmra.mxu0 %v850
        %v1060 = vpop.f32.mrf.mxu0
        %v1061 = vadd.f32 0.0, %v1060
        %v1062 = vpop.f32.mrf.mxu0
        %1063 = vmatprep.mubr.f32.mxu0 0.0
        %1064 = vmatmul.mubr.f32.gmra.mxu0 %v853
        %v1065 = vpop.f32.mrf.mxu0
        %v1066 = vadd.f32 0.0, %v1065
        %v1067 = vpop.f32.mrf.mxu0
        %1068 = vmatprep.mubr.f32.mxu0 0.0
        %1069 = vmatmul.mubr.f32.gmra.mxu0 %v856
        %v1070 = vpop.f32.mrf.mxu0
        %v1071 = vadd.f32 0.0, %v1070
        %v1072 = vpop.f32.mrf.mxu0
        %1073 = vmatprep.mubr.f32.mxu0 0.0
        %1074 = vmatmul.mubr.f32.gmra.mxu0 %v859
        %v1075 = vpop.f32.mrf.mxu0
        %v1076 = vadd.f32 0.0, %v1075
        %v1077 = vpop.f32.mrf.mxu0
        %1078 = vmatprep.mubr.f32.mxu0 0.0
        %1079 = vmatmul.mubr.f32.gmra.mxu0 %v862
        %v1080 = vpop.f32.mrf.mxu0
        %v1081 = vadd.f32 0.0, %v1080
        %v1082 = vpop.f32.mrf.mxu0
        %1083 = vmatprep.mubr.f32.mxu0 0.0
        %1084 = vmatmul.mubr.f32.gmra.mxu0 %v865
        %v1085 = vpop.f32.mrf.mxu0
        %v1086 = vadd.f32 0.0, %v1085
        %v1087 = vpop.f32.mrf.mxu0
        %1088 = vmatprep.mubr.f32.mxu0 0.0
        %1089 = vmatmul.mubr.f32.gmra.mxu0 %v868
        %v1090 = vpop.f32.mrf.mxu0
        %v1091 = vadd.f32 0.0, %v1090
        %v1092 = vpop.f32.mrf.mxu0
        %1093 = vmatprep.mubr.f32.mxu0 0.0
        %1094 = vmatmul.mubr.f32.gmra.mxu0 %v871
        %v1095 = vpop.f32.mrf.mxu0
        %v1096 = vadd.f32 0.0, %v1095
        %v1097 = vpop.f32.mrf.mxu0
        %1098 = vmatprep.mubr.f32.mxu0 0.0
        %1099 = vmatmul.mubr.f32.gmra.mxu0 %v874
        %v1100 = vpop.f32.mrf.mxu0
        %v1101 = vadd.f32 0.0, %v1100
        %v1102 = vpop.f32.mrf.mxu0
        %1103 = vdwg.mxu0
        %v1104 = vadd.f32 %v746, %v946
        %v1105 = vadd.f32 %v747, %v951
        %v1106 = vadd.f32 %v748, %v956
        %v1107 = vadd.f32 %v749, %v961
        %v1108 = vadd.f32 %v750, %v966
        %v1109 = vadd.f32 %v751, %v971
        %v1110 = vadd.f32 %v752, %v976
        %v1111 = vadd.f32 %v753, %v981
        %v1112 = vadd.f32 %v754, %v986
        %v1113 = vadd.f32 %v755, %v991
        %v1114 = vadd.f32 %v756, %v996
        %v1115 = vadd.f32 %v757, %v1001
        %v1116 = vadd.f32 %v758, %v1006
        %v1117 = vadd.f32 %v759, %v1011
        %v1118 = vadd.f32 %v760, %v1016
        %v1119 = vadd.f32 %v761, %v1021
        %v1120 = vadd.f32 %v762, %v1026
        %v1121 = vadd.f32 %v763, %v1031
        %v1122 = vadd.f32 %v764, %v1036
        %v1123 = vadd.f32 %v765, %v1041
        %v1124 = vadd.f32 %v766, %v1046
        %v1125 = vadd.f32 %v767, %v1051
        %v1126 = vadd.f32 %v768, %v1056
        %v1127 = vadd.f32 %v769, %v1061
        %v1128 = vadd.f32 %v770, %v1066
        %v1129 = vadd.f32 %v771, %v1071
        %v1130 = vadd.f32 %v772, %v1076
        %v1131 = vadd.f32 %v773, %v1081
        %v1132 = vadd.f32 %v774, %v1086
        %v1133 = vadd.f32 %v775, %v1091
        %v1134 = vadd.f32 %v776, %v1096
        %v1135 = vadd.f32 %v777, %v1101
        %1136 = vst [vmem:[#allocation2] sm:$0xff] %v1104
        %1137 = vst [vmem:[#allocation2 + $0x8] sm:$0xff] %v1105
        %1138 = vst [vmem:[#allocation2 + $0x10] sm:$0xff] %v1106
        %1139 = vst [vmem:[#allocation2 + $0x18] sm:$0xff] %v1107
        %1140 = vst [vmem:[#allocation2 + $0x20] sm:$0xff] %v1108
        %1141 = vst [vmem:[#allocation2 + $0x28] sm:$0xff] %v1109
        %1142 = vst [vmem:[#allocation2 + $0x30] sm:$0xff] %v1110
        %1143 = vst [vmem:[#allocation2 + $0x38] sm:$0xff] %v1111
        %1144 = vst [vmem:[#allocation2 + $0x40] sm:$0xff] %v1112
        %1145 = vst [vmem:[#allocation2 + $0x48] sm:$0xff] %v1113
        %1146 = vst [vmem:[#allocation2 + $0x50] sm:$0xff] %v1114
        %1147 = vst [vmem:[#allocation2 + $0x58] sm:$0xff] %v1115
        %1148 = vst [vmem:[#allocation2 + $0x60] sm:$0xff] %v1116
        %1149 = vst [vmem:[#allocation2 + $0x68] sm:$0xff] %v1117
        %1150 = vst [vmem:[#allocation2 + $0x70] sm:$0xff] %v1118
        %1151 = vst [vmem:[#allocation2 + $0x78] sm:$0xff] %v1119
        %1152 = vst [vmem:[#allocation2 + $0x80] sm:$0xff] %v1120
        %1153 = vst [vmem:[#allocation2 + $0x88] sm:$0xff] %v1121
        %1154 = vst [vmem:[#allocation2 + $0x90] sm:$0xff] %v1122
        %1155 = vst [vmem:[#allocation2 + $0x98] sm:$0xff] %v1123
        %1156 = vst [vmem:[#allocation2 + $0xa0] sm:$0xff] %v1124
        %1157 = vst [vmem:[#allocation2 + $0xa8] sm:$0xff] %v1125
        %1158 = vst [vmem:[#allocation2 + $0xb0] sm:$0xff] %v1126
        %1159 = vst [vmem:[#allocation2 + $0xb8] sm:$0xff] %v1127
        %1160 = vst [vmem:[#allocation2 + $0xc0] sm:$0xff] %v1128
        %1161 = vst [vmem:[#allocation2 + $0xc8] sm:$0xff] %v1129
        %1162 = vst [vmem:[#allocation2 + $0xd0] sm:$0xff] %v1130
        %1163 = vst [vmem:[#allocation2 + $0xd8] sm:$0xff] %v1131
        %1164 = vst [vmem:[#allocation2 + $0xe0] sm:$0xff] %v1132
        %1165 = vst [vmem:[#allocation2 + $0xe8] sm:$0xff] %v1133
        %1166 = vst [vmem:[#allocation2 + $0xf0] sm:$0xff] %v1134
        %1167 = vst [vmem:[#allocation2 + $0xf8] sm:$0xff] %v1135
        %v1168 = vld [vmem:[%s258 + $0x2] sm:$0xff]
        %v1169 = vld [vmem:[%s258 + $0xa] sm:$0xff]
        %v1170 = vld [vmem:[%s258 + $0x1a] sm:$0xff]
        %v1171 = vld [vmem:[%s258 + $0x22] sm:$0xff]
        %v1172 = vld [vmem:[%s258 + $0x32] sm:$0xff]
        %v1173 = vld [vmem:[%s258 + $0x3a] sm:$0xff]
        %v1174 = vld [vmem:[%s258 + $0x4a] sm:$0xff]
        %v1175 = vld [vmem:[%s258 + $0x52] sm:$0xff]
        %v1176 = vld [vmem:[%s258 + $0x62] sm:$0xff]
        %v1177 = vld [vmem:[%s258 + $0x6a] sm:$0xff]
        %v1178 = vld [vmem:[%s258 + $0x7a] sm:$0xff]
        %v1179 = vld [vmem:[%s258 + $0x82] sm:$0xff]
        %v1180 = vld [vmem:[%s258 + $0x92] sm:$0xff]
        %v1181 = vld [vmem:[%s258 + $0x9a] sm:$0xff]
        %v1182 = vld [vmem:[%s258 + $0xaa] sm:$0xff]
        %v1183 = vld [vmem:[%s258 + $0xb2] sm:$0xff]
        %v1184 = vld [vmem:[%s258 + $0xc2] sm:$0xff]
        %v1185 = vld [vmem:[%s258 + $0xca] sm:$0xff]
        %v1186 = vld [vmem:[%s258 + $0xda] sm:$0xff]
        %v1187 = vld [vmem:[%s258 + $0xe2] sm:$0xff]
        %v1188 = vld [vmem:[%s258 + $0xf2] sm:$0xff]
        %v1189 = vld [vmem:[%s258 + $0xfa] sm:$0xff]
        %v1190 = vld [vmem:[%s258 + $0x10a] sm:$0xff]
        %v1191 = vld [vmem:[%s258 + $0x112] sm:$0xff]
        %v1192 = vld [vmem:[%s258 + $0x122] sm:$0xff]
        %v1193 = vld [vmem:[%s258 + $0x12a] sm:$0xff]
        %v1194 = vld [vmem:[%s258 + $0x13a] sm:$0xff]
        %v1195 = vld [vmem:[%s258 + $0x142] sm:$0xff]
        %v1196 = vld [vmem:[%s258 + $0x152] sm:$0xff]
        %v1197 = vld [vmem:[%s258 + $0x15a] sm:$0xff]
        %v1198 = vld [vmem:[%s258 + $0x16a] sm:$0xff]
        %v1199 = vld [vmem:[%s258 + $0x172] sm:$0xff]
        %v1200 = vld [vmem:[#allocation2] sm:$0xff]
        %v1201 = vld [vmem:[#allocation2 + $0x8] sm:$0xff]
        %v1202 = vld [vmem:[#allocation2 + $0x10] sm:$0xff]
        %v1203 = vld [vmem:[#allocation2 + $0x18] sm:$0xff]
        %v1204 = vld [vmem:[#allocation2 + $0x20] sm:$0xff]
        %v1205 = vld [vmem:[#allocation2 + $0x28] sm:$0xff]
        %v1206 = vld [vmem:[#allocation2 + $0x30] sm:$0xff]
        %v1207 = vld [vmem:[#allocation2 + $0x38] sm:$0xff]
        %v1208 = vld [vmem:[#allocation2 + $0x40] sm:$0xff]
        %v1209 = vld [vmem:[#allocation2 + $0x48] sm:$0xff]
        %v1210 = vld [vmem:[#allocation2 + $0x50] sm:$0xff]
        %v1211 = vld [vmem:[#allocation2 + $0x58] sm:$0xff]
        %v1212 = vld [vmem:[#allocation2 + $0x60] sm:$0xff]
        %v1213 = vld [vmem:[#allocation2 + $0x68] sm:$0xff]
        %v1214 = vld [vmem:[#allocation2 + $0x70] sm:$0xff]
        %v1215 = vld [vmem:[#allocation2 + $0x78] sm:$0xff]
        %v1216 = vld [vmem:[#allocation2 + $0x80] sm:$0xff]
        %v1217 = vld [vmem:[#allocation2 + $0x88] sm:$0xff]
        %v1218 = vld [vmem:[#allocation2 + $0x90] sm:$0xff]
        %v1219 = vld [vmem:[#allocation2 + $0x98] sm:$0xff]
        %v1220 = vld [vmem:[#allocation2 + $0xa0] sm:$0xff]
        %v1221 = vld [vmem:[#allocation2 + $0xa8] sm:$0xff]
        %v1222 = vld [vmem:[#allocation2 + $0xb0] sm:$0xff]
        %v1223 = vld [vmem:[#allocation2 + $0xb8] sm:$0xff]
        %v1224 = vld [vmem:[#allocation2 + $0xc0] sm:$0xff]
        %v1225 = vld [vmem:[#allocation2 + $0xc8] sm:$0xff]
        %v1226 = vld [vmem:[#allocation2 + $0xd0] sm:$0xff]
        %v1227 = vld [vmem:[#allocation2 + $0xd8] sm:$0xff]
        %v1228 = vld [vmem:[#allocation2 + $0xe0] sm:$0xff]
        %v1229 = vld [vmem:[#allocation2 + $0xe8] sm:$0xff]
        %v1230 = vld [vmem:[#allocation2 + $0xf0] sm:$0xff]
        %v1231 = vld [vmem:[#allocation2 + $0xf8] sm:$0xff]
        %s1232 = scalar_lea.vmem %s219, 8
        %v1233 = vld [vmem:[%s1232] sm:$0xf]
        %v1235 = vsel %vm324, %v1168, 0
        %v1238 = vsel %vm324, %v1169, 0
        %v1241 = vsel %vm324, %v1170, 0
        %v1244 = vsel %vm324, %v1171, 0
        %v1247 = vsel %vm324, %v1172, 0
        %v1250 = vsel %vm324, %v1173, 0
        %v1253 = vsel %vm324, %v1174, 0
        %v1256 = vsel %vm324, %v1175, 0
        %v1259 = vsel %vm324, %v1176, 0
        %v1262 = vsel %vm324, %v1177, 0
        %v1265 = vsel %vm324, %v1178, 0
        %v1268 = vsel %vm324, %v1179, 0
        %v1271 = vsel %vm324, %v1180, 0
        %v1274 = vsel %vm324, %v1181, 0
        %v1277 = vsel %vm324, %v1182, 0
        %v1280 = vsel %vm324, %v1183, 0
        %v1283 = vsel %vm324, %v1184, 0
        %v1286 = vsel %vm324, %v1185, 0
        %v1289 = vsel %vm324, %v1186, 0
        %v1292 = vsel %vm324, %v1187, 0
        %v1295 = vsel %vm324, %v1188, 0
        %v1298 = vsel %vm324, %v1189, 0
        %v1301 = vsel %vm324, %v1190, 0
        %v1304 = vsel %vm324, %v1191, 0
        %v1307 = vsel %vm324, %v1192, 0
        %v1310 = vsel %vm324, %v1193, 0
        %v1313 = vsel %vm324, %v1194, 0
        %v1316 = vsel %vm324, %v1195, 0
        %v1319 = vsel %vm324, %v1196, 0
        %v1322 = vsel %vm324, %v1197, 0
        %v1325 = vsel %vm324, %v1198, 0
        %v1328 = vsel %vm324, %v1199, 0
        %v1331 = vsel %vm421, %v1233, 0
        %1333 = vmatprep.subr.mxu0 0.0
        %1334 = vmatpush1.msra.mxu0 0.0
        %1335 = vmatprep.subr.mxu0 0.0
        %1336 = vmatpush1.msra.mxu0 0.0
        %1337 = vmatprep.subr.mxu0 0.0
        %1338 = vmatpush1.msra.mxu0 0.0
        %1339 = vmatprep.subr.mxu0 0.0
        %1340 = vmatpush1.msra.mxu0 0.0
        %1341 = vmatprep.subr.mxu0 0.0
        %1342 = vmatpush1.msra.mxu0 0.0
        %1343 = vmatprep.subr.mxu0 0.0
        %1344 = vmatpush1.msra.mxu0 0.0
        %1345 = vmatprep.subr.mxu0 0.0
        %1346 = vmatpush1.msra.mxu0 0.0
        %1347 = vmatprep.subr.mxu0 0.0
        %1348 = vmatpush1.msra.mxu0 0.0
        %1349 = vmatprep.subr.mxu0 0.0
        %1350 = vmatpush1.msra.mxu0 0.0
        %1351 = vmatprep.subr.mxu0 0.0
        %1352 = vmatpush1.msra.mxu0 0.0
        %1353 = vmatprep.subr.mxu0 0.0
        %1354 = vmatpush1.msra.mxu0 0.0
        %1355 = vmatprep.subr.mxu0 0.0
        %1356 = vmatpush1.msra.mxu0 0.0
        %1357 = vmatprep.subr.mxu0 0.0
        %1358 = vmatpush1.msra.mxu0 0.0
        %1359 = vmatprep.subr.mxu0 0.0
        %1360 = vmatpush1.msra.mxu0 0.0
        %1361 = vmatprep.subr.mxu0 0.0
        %1362 = vmatpush1.msra.mxu0 0.0
        %1363 = vmatprep.subr.mxu0 0.0
        %1364 = vmatpush1.msra.mxu0 %v1331
        %1365 = vmatprep.subr.mxu0 0.0
        %1366 = vmatpush2.msra.mxu0 0.0
        %1367 = vmatprep.subr.mxu0 0.0
        %1368 = vmatpush2.msra.mxu0 0.0
        %1369 = vmatprep.subr.mxu0 0.0
        %1370 = vmatpush2.msra.mxu0 0.0
        %1371 = vmatprep.subr.mxu0 0.0
        %1372 = vmatpush2.msra.mxu0 0.0
        %1373 = vmatprep.subr.mxu0 0.0
        %1374 = vmatpush2.msra.mxu0 0.0
        %1375 = vmatprep.subr.mxu0 0.0
        %1376 = vmatpush2.msra.mxu0 0.0
        %1377 = vmatprep.subr.mxu0 0.0
        %1378 = vmatpush2.msra.mxu0 0.0
        %1379 = vmatprep.subr.mxu0 0.0
        %1380 = vmatpush2.msra.mxu0 0.0
        %1381 = vmatprep.subr.mxu0 0.0
        %1382 = vmatpush2.msra.mxu0 0.0
        %1383 = vmatprep.subr.mxu0 0.0
        %1384 = vmatpush2.msra.mxu0 0.0
        %1385 = vmatprep.subr.mxu0 0.0
        %1386 = vmatpush2.msra.mxu0 0.0
        %1387 = vmatprep.subr.mxu0 0.0
        %1388 = vmatpush2.msra.mxu0 0.0
        %1389 = vmatprep.subr.mxu0 0.0
        %1390 = vmatpush2.msra.mxu0 0.0
        %1391 = vmatprep.subr.mxu0 0.0
        %1392 = vmatpush2.msra.mxu0 0.0
        %1393 = vmatprep.subr.mxu0 0.0
        %1394 = vmatpush2.msra.mxu0 0.0
        %1395 = vmatprep.subr.mxu0 0.0
        %1396 = vmatpush2.msra.mxu0 0.0
        %1397 = vmatprep.mubr.f32.mxu0 0.0
        %1398 = vmatmul.mubr.f32.gmra.mxu0 %v1235
        %v1399 = vpop.f32.mrf.mxu0
        %v1400 = vadd.f32 0.0, %v1399
        %v1401 = vpop.f32.mrf.mxu0
        %1402 = vmatprep.mubr.f32.mxu0 0.0
        %1403 = vmatmul.mubr.f32.gmra.mxu0 %v1238
        %v1404 = vpop.f32.mrf.mxu0
        %v1405 = vadd.f32 0.0, %v1404
        %v1406 = vpop.f32.mrf.mxu0
        %1407 = vmatprep.mubr.f32.mxu0 0.0
        %1408 = vmatmul.mubr.f32.gmra.mxu0 %v1241
        %v1409 = vpop.f32.mrf.mxu0
        %v1410 = vadd.f32 0.0, %v1409
        %v1411 = vpop.f32.mrf.mxu0
        %1412 = vmatprep.mubr.f32.mxu0 0.0
        %1413 = vmatmul.mubr.f32.gmra.mxu0 %v1244
        %v1414 = vpop.f32.mrf.mxu0
        %v1415 = vadd.f32 0.0, %v1414
        %v1416 = vpop.f32.mrf.mxu0
        %1417 = vmatprep.mubr.f32.mxu0 0.0
        %1418 = vmatmul.mubr.f32.gmra.mxu0 %v1247
        %v1419 = vpop.f32.mrf.mxu0
        %v1420 = vadd.f32 0.0, %v1419
        %v1421 = vpop.f32.mrf.mxu0
        %1422 = vmatprep.mubr.f32.mxu0 0.0
        %1423 = vmatmul.mubr.f32.gmra.mxu0 %v1250
        %v1424 = vpop.f32.mrf.mxu0
        %v1425 = vadd.f32 0.0, %v1424
        %v1426 = vpop.f32.mrf.mxu0
        %1427 = vmatprep.mubr.f32.mxu0 0.0
        %1428 = vmatmul.mubr.f32.gmra.mxu0 %v1253
        %v1429 = vpop.f32.mrf.mxu0
        %v1430 = vadd.f32 0.0, %v1429
        %v1431 = vpop.f32.mrf.mxu0
        %1432 = vmatprep.mubr.f32.mxu0 0.0
        %1433 = vmatmul.mubr.f32.gmra.mxu0 %v1256
        %v1434 = vpop.f32.mrf.mxu0
        %v1435 = vadd.f32 0.0, %v1434
        %v1436 = vpop.f32.mrf.mxu0
        %1437 = vmatprep.mubr.f32.mxu0 0.0
        %1438 = vmatmul.mubr.f32.gmra.mxu0 %v1259
        %v1439 = vpop.f32.mrf.mxu0
        %v1440 = vadd.f32 0.0, %v1439
        %v1441 = vpop.f32.mrf.mxu0
        %1442 = vmatprep.mubr.f32.mxu0 0.0
        %1443 = vmatmul.mubr.f32.gmra.mxu0 %v1262
        %v1444 = vpop.f32.mrf.mxu0
        %v1445 = vadd.f32 0.0, %v1444
        %v1446 = vpop.f32.mrf.mxu0
        %1447 = vmatprep.mubr.f32.mxu0 0.0
        %1448 = vmatmul.mubr.f32.gmra.mxu0 %v1265
        %v1449 = vpop.f32.mrf.mxu0
        %v1450 = vadd.f32 0.0, %v1449
        %v1451 = vpop.f32.mrf.mxu0
        %1452 = vmatprep.mubr.f32.mxu0 0.0
        %1453 = vmatmul.mubr.f32.gmra.mxu0 %v1268
        %v1454 = vpop.f32.mrf.mxu0
        %v1455 = vadd.f32 0.0, %v1454
        %v1456 = vpop.f32.mrf.mxu0
        %1457 = vmatprep.mubr.f32.mxu0 0.0
        %1458 = vmatmul.mubr.f32.gmra.mxu0 %v1271
        %v1459 = vpop.f32.mrf.mxu0
        %v1460 = vadd.f32 0.0, %v1459
        %v1461 = vpop.f32.mrf.mxu0
        %1462 = vmatprep.mubr.f32.mxu0 0.0
        %1463 = vmatmul.mubr.f32.gmra.mxu0 %v1274
        %v1464 = vpop.f32.mrf.mxu0
        %v1465 = vadd.f32 0.0, %v1464
        %v1466 = vpop.f32.mrf.mxu0
        %1467 = vmatprep.mubr.f32.mxu0 0.0
        %1468 = vmatmul.mubr.f32.gmra.mxu0 %v1277
        %v1469 = vpop.f32.mrf.mxu0
        %v1470 = vadd.f32 0.0, %v1469
        %v1471 = vpop.f32.mrf.mxu0
        %1472 = vmatprep.mubr.f32.mxu0 0.0
        %1473 = vmatmul.mubr.f32.gmra.mxu0 %v1280
        %v1474 = vpop.f32.mrf.mxu0
        %v1475 = vadd.f32 0.0, %v1474
        %v1476 = vpop.f32.mrf.mxu0
        %1477 = vmatprep.mubr.f32.mxu0 0.0
        %1478 = vmatmul.mubr.f32.gmra.mxu0 %v1283
        %v1479 = vpop.f32.mrf.mxu0
        %v1480 = vadd.f32 0.0, %v1479
        %v1481 = vpop.f32.mrf.mxu0
        %1482 = vmatprep.mubr.f32.mxu0 0.0
        %1483 = vmatmul.mubr.f32.gmra.mxu0 %v1286
        %v1484 = vpop.f32.mrf.mxu0
        %v1485 = vadd.f32 0.0, %v1484
        %v1486 = vpop.f32.mrf.mxu0
        %1487 = vmatprep.mubr.f32.mxu0 0.0
        %1488 = vmatmul.mubr.f32.gmra.mxu0 %v1289
        %v1489 = vpop.f32.mrf.mxu0
        %v1490 = vadd.f32 0.0, %v1489
        %v1491 = vpop.f32.mrf.mxu0
        %1492 = vmatprep.mubr.f32.mxu0 0.0
        %1493 = vmatmul.mubr.f32.gmra.mxu0 %v1292
        %v1494 = vpop.f32.mrf.mxu0
        %v1495 = vadd.f32 0.0, %v1494
        %v1496 = vpop.f32.mrf.mxu0
        %1497 = vmatprep.mubr.f32.mxu0 0.0
        %1498 = vmatmul.mubr.f32.gmra.mxu0 %v1295
        %v1499 = vpop.f32.mrf.mxu0
        %v1500 = vadd.f32 0.0, %v1499
        %v1501 = vpop.f32.mrf.mxu0
        %1502 = vmatprep.mubr.f32.mxu0 0.0
        %1503 = vmatmul.mubr.f32.gmra.mxu0 %v1298
        %v1504 = vpop.f32.mrf.mxu0
        %v1505 = vadd.f32 0.0, %v1504
        %v1506 = vpop.f32.mrf.mxu0
        %1507 = vmatprep.mubr.f32.mxu0 0.0
        %1508 = vmatmul.mubr.f32.gmra.mxu0 %v1301
        %v1509 = vpop.f32.mrf.mxu0
        %v1510 = vadd.f32 0.0, %v1509
        %v1511 = vpop.f32.mrf.mxu0
        %1512 = vmatprep.mubr.f32.mxu0 0.0
        %1513 = vmatmul.mubr.f32.gmra.mxu0 %v1304
        %v1514 = vpop.f32.mrf.mxu0
        %v1515 = vadd.f32 0.0, %v1514
        %v1516 = vpop.f32.mrf.mxu0
        %1517 = vmatprep.mubr.f32.mxu0 0.0
        %1518 = vmatmul.mubr.f32.gmra.mxu0 %v1307
        %v1519 = vpop.f32.mrf.mxu0
        %v1520 = vadd.f32 0.0, %v1519
        %v1521 = vpop.f32.mrf.mxu0
        %1522 = vmatprep.mubr.f32.mxu0 0.0
        %1523 = vmatmul.mubr.f32.gmra.mxu0 %v1310
        %v1524 = vpop.f32.mrf.mxu0
        %v1525 = vadd.f32 0.0, %v1524
        %v1526 = vpop.f32.mrf.mxu0
        %1527 = vmatprep.mubr.f32.mxu0 0.0
        %1528 = vmatmul.mubr.f32.gmra.mxu0 %v1313
        %v1529 = vpop.f32.mrf.mxu0
        %v1530 = vadd.f32 0.0, %v1529
        %v1531 = vpop.f32.mrf.mxu0
        %1532 = vmatprep.mubr.f32.mxu0 0.0
        %1533 = vmatmul.mubr.f32.gmra.mxu0 %v1316
        %v1534 = vpop.f32.mrf.mxu0
        %v1535 = vadd.f32 0.0, %v1534
        %v1536 = vpop.f32.mrf.mxu0
        %1537 = vmatprep.mubr.f32.mxu0 0.0
        %1538 = vmatmul.mubr.f32.gmra.mxu0 %v1319
        %v1539 = vpop.f32.mrf.mxu0
        %v1540 = vadd.f32 0.0, %v1539
        %v1541 = vpop.f32.mrf.mxu0
        %1542 = vmatprep.mubr.f32.mxu0 0.0
        %1543 = vmatmul.mubr.f32.gmra.mxu0 %v1322
        %v1544 = vpop.f32.mrf.mxu0
        %v1545 = vadd.f32 0.0, %v1544
        %v1546 = vpop.f32.mrf.mxu0
        %1547 = vmatprep.mubr.f32.mxu0 0.0
        %1548 = vmatmul.mubr.f32.gmra.mxu0 %v1325
        %v1549 = vpop.f32.mrf.mxu0
        %v1550 = vadd.f32 0.0, %v1549
        %v1551 = vpop.f32.mrf.mxu0
        %1552 = vmatprep.mubr.f32.mxu0 0.0
        %1553 = vmatmul.mubr.f32.gmra.mxu0 %v1328
        %v1554 = vpop.f32.mrf.mxu0
        %v1555 = vadd.f32 0.0, %v1554
        %v1556 = vpop.f32.mrf.mxu0
        %1557 = vdwg.mxu0
        %v1558 = vadd.f32 %v1200, %v1400
        %v1559 = vadd.f32 %v1201, %v1405
        %v1560 = vadd.f32 %v1202, %v1410
        %v1561 = vadd.f32 %v1203, %v1415
        %v1562 = vadd.f32 %v1204, %v1420
        %v1563 = vadd.f32 %v1205, %v1425
        %v1564 = vadd.f32 %v1206, %v1430
        %v1565 = vadd.f32 %v1207, %v1435
        %v1566 = vadd.f32 %v1208, %v1440
        %v1567 = vadd.f32 %v1209, %v1445
        %v1568 = vadd.f32 %v1210, %v1450
        %v1569 = vadd.f32 %v1211, %v1455
        %v1570 = vadd.f32 %v1212, %v1460
        %v1571 = vadd.f32 %v1213, %v1465
        %v1572 = vadd.f32 %v1214, %v1470
        %v1573 = vadd.f32 %v1215, %v1475
        %v1574 = vadd.f32 %v1216, %v1480
        %v1575 = vadd.f32 %v1217, %v1485
        %v1576 = vadd.f32 %v1218, %v1490
        %v1577 = vadd.f32 %v1219, %v1495
        %v1578 = vadd.f32 %v1220, %v1500
        %v1579 = vadd.f32 %v1221, %v1505
        %v1580 = vadd.f32 %v1222, %v1510
        %v1581 = vadd.f32 %v1223, %v1515
        %v1582 = vadd.f32 %v1224, %v1520
        %v1583 = vadd.f32 %v1225, %v1525
        %v1584 = vadd.f32 %v1226, %v1530
        %v1585 = vadd.f32 %v1227, %v1535
        %v1586 = vadd.f32 %v1228, %v1540
        %v1587 = vadd.f32 %v1229, %v1545
        %v1588 = vadd.f32 %v1230, %v1550
        %v1589 = vadd.f32 %v1231, %v1555
        %1590 = vst [vmem:[#allocation2] sm:$0xff] %v1558
        %1591 = vst [vmem:[#allocation2 + $0x8] sm:$0xff] %v1559
        %1592 = vst [vmem:[#allocation2 + $0x10] sm:$0xff] %v1560
        %1593 = vst [vmem:[#allocation2 + $0x18] sm:$0xff] %v1561
        %1594 = vst [vmem:[#allocation2 + $0x20] sm:$0xff] %v1562
        %1595 = vst [vmem:[#allocation2 + $0x28] sm:$0xff] %v1563
        %1596 = vst [vmem:[#allocation2 + $0x30] sm:$0xff] %v1564
        %1597 = vst [vmem:[#allocation2 + $0x38] sm:$0xff] %v1565
        %1598 = vst [vmem:[#allocation2 + $0x40] sm:$0xff] %v1566
        %1599 = vst [vmem:[#allocation2 + $0x48] sm:$0xff] %v1567
        %1600 = vst [vmem:[#allocation2 + $0x50] sm:$0xff] %v1568
        %1601 = vst [vmem:[#allocation2 + $0x58] sm:$0xff] %v1569
        %1602 = vst [vmem:[#allocation2 + $0x60] sm:$0xff] %v1570
        %1603 = vst [vmem:[#allocation2 + $0x68] sm:$0xff] %v1571
        %1604 = vst [vmem:[#allocation2 + $0x70] sm:$0xff] %v1572
        %1605 = vst [vmem:[#allocation2 + $0x78] sm:$0xff] %v1573
        %1606 = vst [vmem:[#allocation2 + $0x80] sm:$0xff] %v1574
        %1607 = vst [vmem:[#allocation2 + $0x88] sm:$0xff] %v1575
        %1608 = vst [vmem:[#allocation2 + $0x90] sm:$0xff] %v1576
        %1609 = vst [vmem:[#allocation2 + $0x98] sm:$0xff] %v1577
        %1610 = vst [vmem:[#allocation2 + $0xa0] sm:$0xff] %v1578
        %1611 = vst [vmem:[#allocation2 + $0xa8] sm:$0xff] %v1579
        %1612 = vst [vmem:[#allocation2 + $0xb0] sm:$0xff] %v1580
        %1613 = vst [vmem:[#allocation2 + $0xb8] sm:$0xff] %v1581
        %1614 = vst [vmem:[#allocation2 + $0xc0] sm:$0xff] %v1582
        %1615 = vst [vmem:[#allocation2 + $0xc8] sm:$0xff] %v1583
        %1616 = vst [vmem:[#allocation2 + $0xd0] sm:$0xff] %v1584
        %1617 = vst [vmem:[#allocation2 + $0xd8] sm:$0xff] %v1585
        %1618 = vst [vmem:[#allocation2 + $0xe0] sm:$0xff] %v1586
        %1619 = vst [vmem:[#allocation2 + $0xe8] sm:$0xff] %v1587
        %1620 = vst [vmem:[#allocation2 + $0xf0] sm:$0xff] %v1588
        %1621 = vst [vmem:[#allocation2 + $0xf8] sm:$0xff] %v1589
        %s1622 = sadd.s32 %s224, 1
        %s1623 = smul.u32 %s1622, 24
        %s1624 = scalar_lea.vmem %s215, %s1623
        %v1625 = vld [vmem:[%s1624] sm:$0xff]
        %v1626 = vld [vmem:[%s1624 + $0x8] sm:$0xff]
        %v1627 = vld [vmem:[%s1624 + $0x18] sm:$0xff]
        %v1628 = vld [vmem:[%s1624 + $0x20] sm:$0xff]
        %v1629 = vld [vmem:[%s1624 + $0x30] sm:$0xff]
        %v1630 = vld [vmem:[%s1624 + $0x38] sm:$0xff]
        %v1631 = vld [vmem:[%s1624 + $0x48] sm:$0xff]
        %v1632 = vld [vmem:[%s1624 + $0x50] sm:$0xff]
        %v1633 = vld [vmem:[%s1624 + $0x60] sm:$0xff]
        %v1634 = vld [vmem:[%s1624 + $0x68] sm:$0xff]
        %v1635 = vld [vmem:[%s1624 + $0x78] sm:$0xff]
        %v1636 = vld [vmem:[%s1624 + $0x80] sm:$0xff]
        %v1637 = vld [vmem:[%s1624 + $0x90] sm:$0xff]
        %v1638 = vld [vmem:[%s1624 + $0x98] sm:$0xff]
        %v1639 = vld [vmem:[%s1624 + $0xa8] sm:$0xff]
        %v1640 = vld [vmem:[%s1624 + $0xb0] sm:$0xff]
        %v1641 = vld [vmem:[%s1624 + $0xc0] sm:$0xff]
        %v1642 = vld [vmem:[%s1624 + $0xc8] sm:$0xff]
        %v1643 = vld [vmem:[%s1624 + $0xd8] sm:$0xff]
        %v1644 = vld [vmem:[%s1624 + $0xe0] sm:$0xff]
        %v1645 = vld [vmem:[%s1624 + $0xf0] sm:$0xff]
        %v1646 = vld [vmem:[%s1624 + $0xf8] sm:$0xff]
        %v1647 = vld [vmem:[%s1624 + $0x108] sm:$0xff]
        %v1648 = vld [vmem:[%s1624 + $0x110] sm:$0xff]
        %v1649 = vld [vmem:[%s1624 + $0x120] sm:$0xff]
        %v1650 = vld [vmem:[%s1624 + $0x128] sm:$0xff]
        %v1651 = vld [vmem:[%s1624 + $0x138] sm:$0xff]
        %v1652 = vld [vmem:[%s1624 + $0x140] sm:$0xff]
        %v1653 = vld [vmem:[%s1624 + $0x150] sm:$0xff]
        %v1654 = vld [vmem:[%s1624 + $0x158] sm:$0xff]
        %v1655 = vld [vmem:[%s1624 + $0x168] sm:$0xff]
        %v1656 = vld [vmem:[%s1624 + $0x170] sm:$0xff]
        %v1657 = vld [vmem:[#allocation2] sm:$0xff]
        %v1658 = vld [vmem:[#allocation2 + $0x8] sm:$0xff]
        %v1659 = vld [vmem:[#allocation2 + $0x10] sm:$0xff]
        %v1660 = vld [vmem:[#allocation2 + $0x18] sm:$0xff]
        %v1661 = vld [vmem:[#allocation2 + $0x20] sm:$0xff]
        %v1662 = vld [vmem:[#allocation2 + $0x28] sm:$0xff]
        %v1663 = vld [vmem:[#allocation2 + $0x30] sm:$0xff]
        %v1664 = vld [vmem:[#allocation2 + $0x38] sm:$0xff]
        %v1665 = vld [vmem:[#allocation2 + $0x40] sm:$0xff]
        %v1666 = vld [vmem:[#allocation2 + $0x48] sm:$0xff]
        %v1667 = vld [vmem:[#allocation2 + $0x50] sm:$0xff]
        %v1668 = vld [vmem:[#allocation2 + $0x58] sm:$0xff]
        %v1669 = vld [vmem:[#allocation2 + $0x60] sm:$0xff]
        %v1670 = vld [vmem:[#allocation2 + $0x68] sm:$0xff]
        %v1671 = vld [vmem:[#allocation2 + $0x70] sm:$0xff]
        %v1672 = vld [vmem:[#allocation2 + $0x78] sm:$0xff]
        %v1673 = vld [vmem:[#allocation2 + $0x80] sm:$0xff]
        %v1674 = vld [vmem:[#allocation2 + $0x88] sm:$0xff]
        %v1675 = vld [vmem:[#allocation2 + $0x90] sm:$0xff]
        %v1676 = vld [vmem:[#allocation2 + $0x98] sm:$0xff]
        %v1677 = vld [vmem:[#allocation2 + $0xa0] sm:$0xff]
        %v1678 = vld [vmem:[#allocation2 + $0xa8] sm:$0xff]
        %v1679 = vld [vmem:[#allocation2 + $0xb0] sm:$0xff]
        %v1680 = vld [vmem:[#allocation2 + $0xb8] sm:$0xff]
        %v1681 = vld [vmem:[#allocation2 + $0xc0] sm:$0xff]
        %v1682 = vld [vmem:[#allocation2 + $0xc8] sm:$0xff]
        %v1683 = vld [vmem:[#allocation2 + $0xd0] sm:$0xff]
        %v1684 = vld [vmem:[#allocation2 + $0xd8] sm:$0xff]
        %v1685 = vld [vmem:[#allocation2 + $0xe0] sm:$0xff]
        %v1686 = vld [vmem:[#allocation2 + $0xe8] sm:$0xff]
        %v1687 = vld [vmem:[#allocation2 + $0xf0] sm:$0xff]
        %v1688 = vld [vmem:[#allocation2 + $0xf8] sm:$0xff]
        %s1689 = scalar_lea.vmem %s219, 12
        %v1690 = vld [vmem:[%s1689] sm:$0xf]
        %v1692 = vsel %vm324, %v1625, 0
        %v1695 = vsel %vm324, %v1626, 0
        %v1698 = vsel %vm324, %v1627, 0
        %v1701 = vsel %vm324, %v1628, 0
        %v1704 = vsel %vm324, %v1629, 0
        %v1707 = vsel %vm324, %v1630, 0
        %v1710 = vsel %vm324, %v1631, 0
        %v1713 = vsel %vm324, %v1632, 0
        %v1716 = vsel %vm324, %v1633, 0
        %v1719 = vsel %vm324, %v1634, 0
        %v1722 = vsel %vm324, %v1635, 0
        %v1725 = vsel %vm324, %v1636, 0
        %v1728 = vsel %vm324, %v1637, 0
        %v1731 = vsel %vm324, %v1638, 0
        %v1734 = vsel %vm324, %v1639, 0
        %v1737 = vsel %vm324, %v1640, 0
        %v1740 = vsel %vm324, %v1641, 0
        %v1743 = vsel %vm324, %v1642, 0
        %v1746 = vsel %vm324, %v1643, 0
        %v1749 = vsel %vm324, %v1644, 0
        %v1752 = vsel %vm324, %v1645, 0
        %v1755 = vsel %vm324, %v1646, 0
        %v1758 = vsel %vm324, %v1647, 0
        %v1761 = vsel %vm324, %v1648, 0
        %v1764 = vsel %vm324, %v1649, 0
        %v1767 = vsel %vm324, %v1650, 0
        %v1770 = vsel %vm324, %v1651, 0
        %v1773 = vsel %vm324, %v1652, 0
        %v1776 = vsel %vm324, %v1653, 0
        %v1779 = vsel %vm324, %v1654, 0
        %v1782 = vsel %vm324, %v1655, 0
        %v1785 = vsel %vm324, %v1656, 0
        %v1788 = vsel %vm421, %v1690, 0
        %1790 = vmatprep.subr.mxu0 0.0
        %1791 = vmatpush1.msra.mxu0 0.0
        %1792 = vmatprep.subr.mxu0 0.0
        %1793 = vmatpush1.msra.mxu0 0.0
        %1794 = vmatprep.subr.mxu0 0.0
        %1795 = vmatpush1.msra.mxu0 0.0
        %1796 = vmatprep.subr.mxu0 0.0
        %1797 = vmatpush1.msra.mxu0 0.0
        %1798 = vmatprep.subr.mxu0 0.0
        %1799 = vmatpush1.msra.mxu0 0.0
        %1800 = vmatprep.subr.mxu0 0.0
        %1801 = vmatpush1.msra.mxu0 0.0
        %1802 = vmatprep.subr.mxu0 0.0
        %1803 = vmatpush1.msra.mxu0 0.0
        %1804 = vmatprep.subr.mxu0 0.0
        %1805 = vmatpush1.msra.mxu0 0.0
        %1806 = vmatprep.subr.mxu0 0.0
        %1807 = vmatpush1.msra.mxu0 0.0
        %1808 = vmatprep.subr.mxu0 0.0
        %1809 = vmatpush1.msra.mxu0 0.0
        %1810 = vmatprep.subr.mxu0 0.0
        %1811 = vmatpush1.msra.mxu0 0.0
        %1812 = vmatprep.subr.mxu0 0.0
        %1813 = vmatpush1.msra.mxu0 0.0
        %1814 = vmatprep.subr.mxu0 0.0
        %1815 = vmatpush1.msra.mxu0 0.0
        %1816 = vmatprep.subr.mxu0 0.0
        %1817 = vmatpush1.msra.mxu0 0.0
        %1818 = vmatprep.subr.mxu0 0.0
        %1819 = vmatpush1.msra.mxu0 0.0
        %1820 = vmatprep.subr.mxu0 0.0
        %1821 = vmatpush1.msra.mxu0 %v1788
        %1822 = vmatprep.subr.mxu0 0.0
        %1823 = vmatpush2.msra.mxu0 0.0
        %1824 = vmatprep.subr.mxu0 0.0
        %1825 = vmatpush2.msra.mxu0 0.0
        %1826 = vmatprep.subr.mxu0 0.0
        %1827 = vmatpush2.msra.mxu0 0.0
        %1828 = vmatprep.subr.mxu0 0.0
        %1829 = vmatpush2.msra.mxu0 0.0
        %1830 = vmatprep.subr.mxu0 0.0
        %1831 = vmatpush2.msra.mxu0 0.0
        %1832 = vmatprep.subr.mxu0 0.0
        %1833 = vmatpush2.msra.mxu0 0.0
        %1834 = vmatprep.subr.mxu0 0.0
        %1835 = vmatpush2.msra.mxu0 0.0
        %1836 = vmatprep.subr.mxu0 0.0
        %1837 = vmatpush2.msra.mxu0 0.0
        %1838 = vmatprep.subr.mxu0 0.0
        %1839 = vmatpush2.msra.mxu0 0.0
        %1840 = vmatprep.subr.mxu0 0.0
        %1841 = vmatpush2.msra.mxu0 0.0
        %1842 = vmatprep.subr.mxu0 0.0
        %1843 = vmatpush2.msra.mxu0 0.0
        %1844 = vmatprep.subr.mxu0 0.0
        %1845 = vmatpush2.msra.mxu0 0.0
        %1846 = vmatprep.subr.mxu0 0.0
        %1847 = vmatpush2.msra.mxu0 0.0
        %1848 = vmatprep.subr.mxu0 0.0
        %1849 = vmatpush2.msra.mxu0 0.0
        %1850 = vmatprep.subr.mxu0 0.0
        %1851 = vmatpush2.msra.mxu0 0.0
        %1852 = vmatprep.subr.mxu0 0.0
        %1853 = vmatpush2.msra.mxu0 0.0
        %1854 = vmatprep.mubr.f32.mxu0 0.0
        %1855 = vmatmul.mubr.f32.gmra.mxu0 %v1692
        %v1856 = vpop.f32.mrf.mxu0
        %v1857 = vadd.f32 0.0, %v1856
        %v1858 = vpop.f32.mrf.mxu0
        %1859 = vmatprep.mubr.f32.mxu0 0.0
        %1860 = vmatmul.mubr.f32.gmra.mxu0 %v1695
        %v1861 = vpop.f32.mrf.mxu0
        %v1862 = vadd.f32 0.0, %v1861
        %v1863 = vpop.f32.mrf.mxu0
        %1864 = vmatprep.mubr.f32.mxu0 0.0
        %1865 = vmatmul.mubr.f32.gmra.mxu0 %v1698
        %v1866 = vpop.f32.mrf.mxu0
        %v1867 = vadd.f32 0.0, %v1866
        %v1868 = vpop.f32.mrf.mxu0
        %1869 = vmatprep.mubr.f32.mxu0 0.0
        %1870 = vmatmul.mubr.f32.gmra.mxu0 %v1701
        %v1871 = vpop.f32.mrf.mxu0
        %v1872 = vadd.f32 0.0, %v1871
        %v1873 = vpop.f32.mrf.mxu0
        %1874 = vmatprep.mubr.f32.mxu0 0.0
        %1875 = vmatmul.mubr.f32.gmra.mxu0 %v1704
        %v1876 = vpop.f32.mrf.mxu0
        %v1877 = vadd.f32 0.0, %v1876
        %v1878 = vpop.f32.mrf.mxu0
        %1879 = vmatprep.mubr.f32.mxu0 0.0
        %1880 = vmatmul.mubr.f32.gmra.mxu0 %v1707
        %v1881 = vpop.f32.mrf.mxu0
        %v1882 = vadd.f32 0.0, %v1881
        %v1883 = vpop.f32.mrf.mxu0
        %1884 = vmatprep.mubr.f32.mxu0 0.0
        %1885 = vmatmul.mubr.f32.gmra.mxu0 %v1710
        %v1886 = vpop.f32.mrf.mxu0
        %v1887 = vadd.f32 0.0, %v1886
        %v1888 = vpop.f32.mrf.mxu0
        %1889 = vmatprep.mubr.f32.mxu0 0.0
        %1890 = vmatmul.mubr.f32.gmra.mxu0 %v1713
        %v1891 = vpop.f32.mrf.mxu0
        %v1892 = vadd.f32 0.0, %v1891
        %v1893 = vpop.f32.mrf.mxu0
        %1894 = vmatprep.mubr.f32.mxu0 0.0
        %1895 = vmatmul.mubr.f32.gmra.mxu0 %v1716
        %v1896 = vpop.f32.mrf.mxu0
        %v1897 = vadd.f32 0.0, %v1896
        %v1898 = vpop.f32.mrf.mxu0
        %1899 = vmatprep.mubr.f32.mxu0 0.0
        %1900 = vmatmul.mubr.f32.gmra.mxu0 %v1719
        %v1901 = vpop.f32.mrf.mxu0
        %v1902 = vadd.f32 0.0, %v1901
        %v1903 = vpop.f32.mrf.mxu0
        %1904 = vmatprep.mubr.f32.mxu0 0.0
        %1905 = vmatmul.mubr.f32.gmra.mxu0 %v1722
        %v1906 = vpop.f32.mrf.mxu0
        %v1907 = vadd.f32 0.0, %v1906
        %v1908 = vpop.f32.mrf.mxu0
        %1909 = vmatprep.mubr.f32.mxu0 0.0
        %1910 = vmatmul.mubr.f32.gmra.mxu0 %v1725
        %v1911 = vpop.f32.mrf.mxu0
        %v1912 = vadd.f32 0.0, %v1911
        %v1913 = vpop.f32.mrf.mxu0
        %1914 = vmatprep.mubr.f32.mxu0 0.0
        %1915 = vmatmul.mubr.f32.gmra.mxu0 %v1728
        %v1916 = vpop.f32.mrf.mxu0
        %v1917 = vadd.f32 0.0, %v1916
        %v1918 = vpop.f32.mrf.mxu0
        %1919 = vmatprep.mubr.f32.mxu0 0.0
        %1920 = vmatmul.mubr.f32.gmra.mxu0 %v1731
        %v1921 = vpop.f32.mrf.mxu0
        %v1922 = vadd.f32 0.0, %v1921
        %v1923 = vpop.f32.mrf.mxu0
        %1924 = vmatprep.mubr.f32.mxu0 0.0
        %1925 = vmatmul.mubr.f32.gmra.mxu0 %v1734
        %v1926 = vpop.f32.mrf.mxu0
        %v1927 = vadd.f32 0.0, %v1926
        %v1928 = vpop.f32.mrf.mxu0
        %1929 = vmatprep.mubr.f32.mxu0 0.0
        %1930 = vmatmul.mubr.f32.gmra.mxu0 %v1737
        %v1931 = vpop.f32.mrf.mxu0
        %v1932 = vadd.f32 0.0, %v1931
        %v1933 = vpop.f32.mrf.mxu0
        %1934 = vmatprep.mubr.f32.mxu0 0.0
        %1935 = vmatmul.mubr.f32.gmra.mxu0 %v1740
        %v1936 = vpop.f32.mrf.mxu0
        %v1937 = vadd.f32 0.0, %v1936
        %v1938 = vpop.f32.mrf.mxu0
        %1939 = vmatprep.mubr.f32.mxu0 0.0
        %1940 = vmatmul.mubr.f32.gmra.mxu0 %v1743
        %v1941 = vpop.f32.mrf.mxu0
        %v1942 = vadd.f32 0.0, %v1941
        %v1943 = vpop.f32.mrf.mxu0
        %1944 = vmatprep.mubr.f32.mxu0 0.0
        %1945 = vmatmul.mubr.f32.gmra.mxu0 %v1746
        %v1946 = vpop.f32.mrf.mxu0
        %v1947 = vadd.f32 0.0, %v1946
        %v1948 = vpop.f32.mrf.mxu0
        %1949 = vmatprep.mubr.f32.mxu0 0.0
        %1950 = vmatmul.mubr.f32.gmra.mxu0 %v1749
        %v1951 = vpop.f32.mrf.mxu0
        %v1952 = vadd.f32 0.0, %v1951
        %v1953 = vpop.f32.mrf.mxu0
        %1954 = vmatprep.mubr.f32.mxu0 0.0
        %1955 = vmatmul.mubr.f32.gmra.mxu0 %v1752
        %v1956 = vpop.f32.mrf.mxu0
        %v1957 = vadd.f32 0.0, %v1956
        %v1958 = vpop.f32.mrf.mxu0
        %1959 = vmatprep.mubr.f32.mxu0 0.0
        %1960 = vmatmul.mubr.f32.gmra.mxu0 %v1755
        %v1961 = vpop.f32.mrf.mxu0
        %v1962 = vadd.f32 0.0, %v1961
        %v1963 = vpop.f32.mrf.mxu0
        %1964 = vmatprep.mubr.f32.mxu0 0.0
        %1965 = vmatmul.mubr.f32.gmra.mxu0 %v1758
        %v1966 = vpop.f32.mrf.mxu0
        %v1967 = vadd.f32 0.0, %v1966
        %v1968 = vpop.f32.mrf.mxu0
        %1969 = vmatprep.mubr.f32.mxu0 0.0
        %1970 = vmatmul.mubr.f32.gmra.mxu0 %v1761
        %v1971 = vpop.f32.mrf.mxu0
        %v1972 = vadd.f32 0.0, %v1971
        %v1973 = vpop.f32.mrf.mxu0
        %1974 = vmatprep.mubr.f32.mxu0 0.0
        %1975 = vmatmul.mubr.f32.gmra.mxu0 %v1764
        %v1976 = vpop.f32.mrf.mxu0
        %v1977 = vadd.f32 0.0, %v1976
        %v1978 = vpop.f32.mrf.mxu0
        %1979 = vmatprep.mubr.f32.mxu0 0.0
        %1980 = vmatmul.mubr.f32.gmra.mxu0 %v1767
        %v1981 = vpop.f32.mrf.mxu0
        %v1982 = vadd.f32 0.0, %v1981
        %v1983 = vpop.f32.mrf.mxu0
        %1984 = vmatprep.mubr.f32.mxu0 0.0
        %1985 = vmatmul.mubr.f32.gmra.mxu0 %v1770
        %v1986 = vpop.f32.mrf.mxu0
        %v1987 = vadd.f32 0.0, %v1986
        %v1988 = vpop.f32.mrf.mxu0
        %1989 = vmatprep.mubr.f32.mxu0 0.0
        %1990 = vmatmul.mubr.f32.gmra.mxu0 %v1773
        %v1991 = vpop.f32.mrf.mxu0
        %v1992 = vadd.f32 0.0, %v1991
        %v1993 = vpop.f32.mrf.mxu0
        %1994 = vmatprep.mubr.f32.mxu0 0.0
        %1995 = vmatmul.mubr.f32.gmra.mxu0 %v1776
        %v1996 = vpop.f32.mrf.mxu0
        %v1997 = vadd.f32 0.0, %v1996
        %v1998 = vpop.f32.mrf.mxu0
        %1999 = vmatprep.mubr.f32.mxu0 0.0
        %2000 = vmatmul.mubr.f32.gmra.mxu0 %v1779
        %v2001 = vpop.f32.mrf.mxu0
        %v2002 = vadd.f32 0.0, %v2001
        %v2003 = vpop.f32.mrf.mxu0
        %2004 = vmatprep.mubr.f32.mxu0 0.0
        %2005 = vmatmul.mubr.f32.gmra.mxu0 %v1782
        %v2006 = vpop.f32.mrf.mxu0
        %v2007 = vadd.f32 0.0, %v2006
        %v2008 = vpop.f32.mrf.mxu0
        %2009 = vmatprep.mubr.f32.mxu0 0.0
        %2010 = vmatmul.mubr.f32.gmra.mxu0 %v1785
        %v2011 = vpop.f32.mrf.mxu0
        %v2012 = vadd.f32 0.0, %v2011
        %v2013 = vpop.f32.mrf.mxu0
        %2014 = vdwg.mxu0
        %v2015 = vadd.f32 %v1657, %v1857
        %v2016 = vadd.f32 %v1658, %v1862
        %v2017 = vadd.f32 %v1659, %v1867
        %v2018 = vadd.f32 %v1660, %v1872
        %v2019 = vadd.f32 %v1661, %v1877
        %v2020 = vadd.f32 %v1662, %v1882
        %v2021 = vadd.f32 %v1663, %v1887
        %v2022 = vadd.f32 %v1664, %v1892
        %v2023 = vadd.f32 %v1665, %v1897
        %v2024 = vadd.f32 %v1666, %v1902
        %v2025 = vadd.f32 %v1667, %v1907
        %v2026 = vadd.f32 %v1668, %v1912
        %v2027 = vadd.f32 %v1669, %v1917
        %v2028 = vadd.f32 %v1670, %v1922
        %v2029 = vadd.f32 %v1671, %v1927
        %v2030 = vadd.f32 %v1672, %v1932
        %v2031 = vadd.f32 %v1673, %v1937
        %v2032 = vadd.f32 %v1674, %v1942
        %v2033 = vadd.f32 %v1675, %v1947
        %v2034 = vadd.f32 %v1676, %v1952
        %v2035 = vadd.f32 %v1677, %v1957
        %v2036 = vadd.f32 %v1678, %v1962
        %v2037 = vadd.f32 %v1679, %v1967
        %v2038 = vadd.f32 %v1680, %v1972
        %v2039 = vadd.f32 %v1681, %v1977
        %v2040 = vadd.f32 %v1682, %v1982
        %v2041 = vadd.f32 %v1683, %v1987
        %v2042 = vadd.f32 %v1684, %v1992
        %v2043 = vadd.f32 %v1685, %v1997
        %v2044 = vadd.f32 %v1686, %v2002
        %v2045 = vadd.f32 %v1687, %v2007
        %v2046 = vadd.f32 %v1688, %v2012
        %2047 = vst [vmem:[#allocation2] sm:$0xff] %v2015
        %2048 = vst [vmem:[#allocation2 + $0x8] sm:$0xff] %v2016
        %2049 = vst [vmem:[#allocation2 + $0x10] sm:$0xff] %v2017
        %2050 = vst [vmem:[#allocation2 + $0x18] sm:$0xff] %v2018
        %2051 = vst [vmem:[#allocation2 + $0x20] sm:$0xff] %v2019
        %2052 = vst [vmem:[#allocation2 + $0x28] sm:$0xff] %v2020
        %2053 = vst [vmem:[#allocation2 + $0x30] sm:$0xff] %v2021
        %2054 = vst [vmem:[#allocation2 + $0x38] sm:$0xff] %v2022
        %2055 = vst [vmem:[#allocation2 + $0x40] sm:$0xff] %v2023
        %2056 = vst [vmem:[#allocation2 + $0x48] sm:$0xff] %v2024
        %2057 = vst [vmem:[#allocation2 + $0x50] sm:$0xff] %v2025
        %2058 = vst [vmem:[#allocation2 + $0x58] sm:$0xff] %v2026
        %2059 = vst [vmem:[#allocation2 + $0x60] sm:$0xff] %v2027
        %2060 = vst [vmem:[#allocation2 + $0x68] sm:$0xff] %v2028
        %2061 = vst [vmem:[#allocation2 + $0x70] sm:$0xff] %v2029
        %2062 = vst [vmem:[#allocation2 + $0x78] sm:$0xff] %v2030
        %2063 = vst [vmem:[#allocation2 + $0x80] sm:$0xff] %v2031
        %2064 = vst [vmem:[#allocation2 + $0x88] sm:$0xff] %v2032
        %2065 = vst [vmem:[#allocation2 + $0x90] sm:$0xff] %v2033
        %2066 = vst [vmem:[#allocation2 + $0x98] sm:$0xff] %v2034
        %2067 = vst [vmem:[#allocation2 + $0xa0] sm:$0xff] %v2035
        %2068 = vst [vmem:[#allocation2 + $0xa8] sm:$0xff] %v2036
        %2069 = vst [vmem:[#allocation2 + $0xb0] sm:$0xff] %v2037
        %2070 = vst [vmem:[#allocation2 + $0xb8] sm:$0xff] %v2038
        %2071 = vst [vmem:[#allocation2 + $0xc0] sm:$0xff] %v2039
        %2072 = vst [vmem:[#allocation2 + $0xc8] sm:$0xff] %v2040
        %2073 = vst [vmem:[#allocation2 + $0xd0] sm:$0xff] %v2041
        %2074 = vst [vmem:[#allocation2 + $0xd8] sm:$0xff] %v2042
        %2075 = vst [vmem:[#allocation2 + $0xe0] sm:$0xff] %v2043
        %2076 = vst [vmem:[#allocation2 + $0xe8] sm:$0xff] %v2044
        %2077 = vst [vmem:[#allocation2 + $0xf0] sm:$0xff] %v2045
        %2078 = vst [vmem:[#allocation2 + $0xf8] sm:$0xff] %v2046
        %v2079 = vld [vmem:[%s1624 + $0x1] sm:$0xff]
        %v2080 = vld [vmem:[%s1624 + $0x9] sm:$0xff]
        %v2081 = vld [vmem:[%s1624 + $0x19] sm:$0xff]
        %v2082 = vld [vmem:[%s1624 + $0x21] sm:$0xff]
        %v2083 = vld [vmem:[%s1624 + $0x31] sm:$0xff]
        %v2084 = vld [vmem:[%s1624 + $0x39] sm:$0xff]
        %v2085 = vld [vmem:[%s1624 + $0x49] sm:$0xff]
        %v2086 = vld [vmem:[%s1624 + $0x51] sm:$0xff]
        %v2087 = vld [vmem:[%s1624 + $0x61] sm:$0xff]
        %v2088 = vld [vmem:[%s1624 + $0x69] sm:$0xff]
        %v2089 = vld [vmem:[%s1624 + $0x79] sm:$0xff]
        %v2090 = vld [vmem:[%s1624 + $0x81] sm:$0xff]
        %v2091 = vld [vmem:[%s1624 + $0x91] sm:$0xff]
        %v2092 = vld [vmem:[%s1624 + $0x99] sm:$0xff]
        %v2093 = vld [vmem:[%s1624 + $0xa9] sm:$0xff]
        %v2094 = vld [vmem:[%s1624 + $0xb1] sm:$0xff]
        %v2095 = vld [vmem:[%s1624 + $0xc1] sm:$0xff]
        %v2096 = vld [vmem:[%s1624 + $0xc9] sm:$0xff]
        %v2097 = vld [vmem:[%s1624 + $0xd9] sm:$0xff]
        %v2098 = vld [vmem:[%s1624 + $0xe1] sm:$0xff]
        %v2099 = vld [vmem:[%s1624 + $0xf1] sm:$0xff]
        %v2100 = vld [vmem:[%s1624 + $0xf9] sm:$0xff]
        %v2101 = vld [vmem:[%s1624 + $0x109] sm:$0xff]
        %v2102 = vld [vmem:[%s1624 + $0x111] sm:$0xff]
        %v2103 = vld [vmem:[%s1624 + $0x121] sm:$0xff]
        %v2104 = vld [vmem:[%s1624 + $0x129] sm:$0xff]
        %v2105 = vld [vmem:[%s1624 + $0x139] sm:$0xff]
        %v2106 = vld [vmem:[%s1624 + $0x141] sm:$0xff]
        %v2107 = vld [vmem:[%s1624 + $0x151] sm:$0xff]
        %v2108 = vld [vmem:[%s1624 + $0x159] sm:$0xff]
        %v2109 = vld [vmem:[%s1624 + $0x169] sm:$0xff]
        %v2110 = vld [vmem:[%s1624 + $0x171] sm:$0xff]
        %v2111 = vld [vmem:[#allocation2] sm:$0xff]
        %v2112 = vld [vmem:[#allocation2 + $0x8] sm:$0xff]
        %v2113 = vld [vmem:[#allocation2 + $0x10] sm:$0xff]
        %v2114 = vld [vmem:[#allocation2 + $0x18] sm:$0xff]
        %v2115 = vld [vmem:[#allocation2 + $0x20] sm:$0xff]
        %v2116 = vld [vmem:[#allocation2 + $0x28] sm:$0xff]
        %v2117 = vld [vmem:[#allocation2 + $0x30] sm:$0xff]
        %v2118 = vld [vmem:[#allocation2 + $0x38] sm:$0xff]
        %v2119 = vld [vmem:[#allocation2 + $0x40] sm:$0xff]
        %v2120 = vld [vmem:[#allocation2 + $0x48] sm:$0xff]
        %v2121 = vld [vmem:[#allocation2 + $0x50] sm:$0xff]
        %v2122 = vld [vmem:[#allocation2 + $0x58] sm:$0xff]
        %v2123 = vld [vmem:[#allocation2 + $0x60] sm:$0xff]
        %v2124 = vld [vmem:[#allocation2 + $0x68] sm:$0xff]
        %v2125 = vld [vmem:[#allocation2 + $0x70] sm:$0xff]
        %v2126 = vld [vmem:[#allocation2 + $0x78] sm:$0xff]
        %v2127 = vld [vmem:[#allocation2 + $0x80] sm:$0xff]
        %v2128 = vld [vmem:[#allocation2 + $0x88] sm:$0xff]
        %v2129 = vld [vmem:[#allocation2 + $0x90] sm:$0xff]
        %v2130 = vld [vmem:[#allocation2 + $0x98] sm:$0xff]
        %v2131 = vld [vmem:[#allocation2 + $0xa0] sm:$0xff]
        %v2132 = vld [vmem:[#allocation2 + $0xa8] sm:$0xff]
        %v2133 = vld [vmem:[#allocation2 + $0xb0] sm:$0xff]
        %v2134 = vld [vmem:[#allocation2 + $0xb8] sm:$0xff]
        %v2135 = vld [vmem:[#allocation2 + $0xc0] sm:$0xff]
        %v2136 = vld [vmem:[#allocation2 + $0xc8] sm:$0xff]
        %v2137 = vld [vmem:[#allocation2 + $0xd0] sm:$0xff]
        %v2138 = vld [vmem:[#allocation2 + $0xd8] sm:$0xff]
        %v2139 = vld [vmem:[#allocation2 + $0xe0] sm:$0xff]
        %v2140 = vld [vmem:[#allocation2 + $0xe8] sm:$0xff]
        %v2141 = vld [vmem:[#allocation2 + $0xf0] sm:$0xff]
        %v2142 = vld [vmem:[#allocation2 + $0xf8] sm:$0xff]
        %s2143 = scalar_lea.vmem %s219, 16
        %v2144 = vld [vmem:[%s2143] sm:$0xf]
        %v2146 = vsel %vm324, %v2079, 0
        %v2149 = vsel %vm324, %v2080, 0
        %v2152 = vsel %vm324, %v2081, 0
        %v2155 = vsel %vm324, %v2082, 0
        %v2158 = vsel %vm324, %v2083, 0
        %v2161 = vsel %vm324, %v2084, 0
        %v2164 = vsel %vm324, %v2085, 0
        %v2167 = vsel %vm324, %v2086, 0
        %v2170 = vsel %vm324, %v2087, 0
        %v2173 = vsel %vm324, %v2088, 0
        %v2176 = vsel %vm324, %v2089, 0
        %v2179 = vsel %vm324, %v2090, 0
        %v2182 = vsel %vm324, %v2091, 0
        %v2185 = vsel %vm324, %v2092, 0
        %v2188 = vsel %vm324, %v2093, 0
        %v2191 = vsel %vm324, %v2094, 0
        %v2194 = vsel %vm324, %v2095, 0
        %v2197 = vsel %vm324, %v2096, 0
        %v2200 = vsel %vm324, %v2097, 0
        %v2203 = vsel %vm324, %v2098, 0
        %v2206 = vsel %vm324, %v2099, 0
        %v2209 = vsel %vm324, %v2100, 0
        %v2212 = vsel %vm324, %v2101, 0
        %v2215 = vsel %vm324, %v2102, 0
        %v2218 = vsel %vm324, %v2103, 0
        %v2221 = vsel %vm324, %v2104, 0
        %v2224 = vsel %vm324, %v2105, 0
        %v2227 = vsel %vm324, %v2106, 0
        %v2230 = vsel %vm324, %v2107, 0
        %v2233 = vsel %vm324, %v2108, 0
        %v2236 = vsel %vm324, %v2109, 0
        %v2239 = vsel %vm324, %v2110, 0
        %v2242 = vsel %vm421, %v2144, 0
        %2244 = vmatprep.subr.mxu0 0.0
        %2245 = vmatpush1.msra.mxu0 0.0
        %2246 = vmatprep.subr.mxu0 0.0
        %2247 = vmatpush1.msra.mxu0 0.0
        %2248 = vmatprep.subr.mxu0 0.0
        %2249 = vmatpush1.msra.mxu0 0.0
        %2250 = vmatprep.subr.mxu0 0.0
        %2251 = vmatpush1.msra.mxu0 0.0
        %2252 = vmatprep.subr.mxu0 0.0
        %2253 = vmatpush1.msra.mxu0 0.0
        %2254 = vmatprep.subr.mxu0 0.0
        %2255 = vmatpush1.msra.mxu0 0.0
        %2256 = vmatprep.subr.mxu0 0.0
        %2257 = vmatpush1.msra.mxu0 0.0
        %2258 = vmatprep.subr.mxu0 0.0
        %2259 = vmatpush1.msra.mxu0 0.0
        %2260 = vmatprep.subr.mxu0 0.0
        %2261 = vmatpush1.msra.mxu0 0.0
        %2262 = vmatprep.subr.mxu0 0.0
        %2263 = vmatpush1.msra.mxu0 0.0
        %2264 = vmatprep.subr.mxu0 0.0
        %2265 = vmatpush1.msra.mxu0 0.0
        %2266 = vmatprep.subr.mxu0 0.0
        %2267 = vmatpush1.msra.mxu0 0.0
        %2268 = vmatprep.subr.mxu0 0.0
        %2269 = vmatpush1.msra.mxu0 0.0
        %2270 = vmatprep.subr.mxu0 0.0
        %2271 = vmatpush1.msra.mxu0 0.0
        %2272 = vmatprep.subr.mxu0 0.0
        %2273 = vmatpush1.msra.mxu0 0.0
        %2274 = vmatprep.subr.mxu0 0.0
        %2275 = vmatpush1.msra.mxu0 %v2242
        %2276 = vmatprep.subr.mxu0 0.0
        %2277 = vmatpush2.msra.mxu0 0.0
        %2278 = vmatprep.subr.mxu0 0.0
        %2279 = vmatpush2.msra.mxu0 0.0
        %2280 = vmatprep.subr.mxu0 0.0
        %2281 = vmatpush2.msra.mxu0 0.0
        %2282 = vmatprep.subr.mxu0 0.0
        %2283 = vmatpush2.msra.mxu0 0.0
        %2284 = vmatprep.subr.mxu0 0.0
        %2285 = vmatpush2.msra.mxu0 0.0
        %2286 = vmatprep.subr.mxu0 0.0
        %2287 = vmatpush2.msra.mxu0 0.0
        %2288 = vmatprep.subr.mxu0 0.0
        %2289 = vmatpush2.msra.mxu0 0.0
        %2290 = vmatprep.subr.mxu0 0.0
        %2291 = vmatpush2.msra.mxu0 0.0
        %2292 = vmatprep.subr.mxu0 0.0
        %2293 = vmatpush2.msra.mxu0 0.0
        %2294 = vmatprep.subr.mxu0 0.0
        %2295 = vmatpush2.msra.mxu0 0.0
        %2296 = vmatprep.subr.mxu0 0.0
        %2297 = vmatpush2.msra.mxu0 0.0
        %2298 = vmatprep.subr.mxu0 0.0
        %2299 = vmatpush2.msra.mxu0 0.0
        %2300 = vmatprep.subr.mxu0 0.0
        %2301 = vmatpush2.msra.mxu0 0.0
        %2302 = vmatprep.subr.mxu0 0.0
        %2303 = vmatpush2.msra.mxu0 0.0
        %2304 = vmatprep.subr.mxu0 0.0
        %2305 = vmatpush2.msra.mxu0 0.0
        %2306 = vmatprep.subr.mxu0 0.0
        %2307 = vmatpush2.msra.mxu0 0.0
        %2308 = vmatprep.mubr.f32.mxu0 0.0
        %2309 = vmatmul.mubr.f32.gmra.mxu0 %v2146
        %v2310 = vpop.f32.mrf.mxu0
        %v2311 = vadd.f32 0.0, %v2310
        %v2312 = vpop.f32.mrf.mxu0
        %2313 = vmatprep.mubr.f32.mxu0 0.0
        %2314 = vmatmul.mubr.f32.gmra.mxu0 %v2149
        %v2315 = vpop.f32.mrf.mxu0
        %v2316 = vadd.f32 0.0, %v2315
        %v2317 = vpop.f32.mrf.mxu0
        %2318 = vmatprep.mubr.f32.mxu0 0.0
        %2319 = vmatmul.mubr.f32.gmra.mxu0 %v2152
        %v2320 = vpop.f32.mrf.mxu0
        %v2321 = vadd.f32 0.0, %v2320
        %v2322 = vpop.f32.mrf.mxu0
        %2323 = vmatprep.mubr.f32.mxu0 0.0
        %2324 = vmatmul.mubr.f32.gmra.mxu0 %v2155
        %v2325 = vpop.f32.mrf.mxu0
        %v2326 = vadd.f32 0.0, %v2325
        %v2327 = vpop.f32.mrf.mxu0
        %2328 = vmatprep.mubr.f32.mxu0 0.0
        %2329 = vmatmul.mubr.f32.gmra.mxu0 %v2158
        %v2330 = vpop.f32.mrf.mxu0
        %v2331 = vadd.f32 0.0, %v2330
        %v2332 = vpop.f32.mrf.mxu0
        %2333 = vmatprep.mubr.f32.mxu0 0.0
        %2334 = vmatmul.mubr.f32.gmra.mxu0 %v2161
        %v2335 = vpop.f32.mrf.mxu0
        %v2336 = vadd.f32 0.0, %v2335
        %v2337 = vpop.f32.mrf.mxu0
        %2338 = vmatprep.mubr.f32.mxu0 0.0
        %2339 = vmatmul.mubr.f32.gmra.mxu0 %v2164
        %v2340 = vpop.f32.mrf.mxu0
        %v2341 = vadd.f32 0.0, %v2340
        %v2342 = vpop.f32.mrf.mxu0
        %2343 = vmatprep.mubr.f32.mxu0 0.0
        %2344 = vmatmul.mubr.f32.gmra.mxu0 %v2167
        %v2345 = vpop.f32.mrf.mxu0
        %v2346 = vadd.f32 0.0, %v2345
        %v2347 = vpop.f32.mrf.mxu0
        %2348 = vmatprep.mubr.f32.mxu0 0.0
        %2349 = vmatmul.mubr.f32.gmra.mxu0 %v2170
        %v2350 = vpop.f32.mrf.mxu0
        %v2351 = vadd.f32 0.0, %v2350
        %v2352 = vpop.f32.mrf.mxu0
        %2353 = vmatprep.mubr.f32.mxu0 0.0
        %2354 = vmatmul.mubr.f32.gmra.mxu0 %v2173
        %v2355 = vpop.f32.mrf.mxu0
        %v2356 = vadd.f32 0.0, %v2355
        %v2357 = vpop.f32.mrf.mxu0
        %2358 = vmatprep.mubr.f32.mxu0 0.0
        %2359 = vmatmul.mubr.f32.gmra.mxu0 %v2176
        %v2360 = vpop.f32.mrf.mxu0
        %v2361 = vadd.f32 0.0, %v2360
        %v2362 = vpop.f32.mrf.mxu0
        %2363 = vmatprep.mubr.f32.mxu0 0.0
        %2364 = vmatmul.mubr.f32.gmra.mxu0 %v2179
        %v2365 = vpop.f32.mrf.mxu0
        %v2366 = vadd.f32 0.0, %v2365
        %v2367 = vpop.f32.mrf.mxu0
        %2368 = vmatprep.mubr.f32.mxu0 0.0
        %2369 = vmatmul.mubr.f32.gmra.mxu0 %v2182
        %v2370 = vpop.f32.mrf.mxu0
        %v2371 = vadd.f32 0.0, %v2370
        %v2372 = vpop.f32.mrf.mxu0
        %2373 = vmatprep.mubr.f32.mxu0 0.0
        %2374 = vmatmul.mubr.f32.gmra.mxu0 %v2185
        %v2375 = vpop.f32.mrf.mxu0
        %v2376 = vadd.f32 0.0, %v2375
        %v2377 = vpop.f32.mrf.mxu0
        %2378 = vmatprep.mubr.f32.mxu0 0.0
        %2379 = vmatmul.mubr.f32.gmra.mxu0 %v2188
        %v2380 = vpop.f32.mrf.mxu0
        %v2381 = vadd.f32 0.0, %v2380
        %v2382 = vpop.f32.mrf.mxu0
        %2383 = vmatprep.mubr.f32.mxu0 0.0
        %2384 = vmatmul.mubr.f32.gmra.mxu0 %v2191
        %v2385 = vpop.f32.mrf.mxu0
        %v2386 = vadd.f32 0.0, %v2385
        %v2387 = vpop.f32.mrf.mxu0
        %2388 = vmatprep.mubr.f32.mxu0 0.0
        %2389 = vmatmul.mubr.f32.gmra.mxu0 %v2194
        %v2390 = vpop.f32.mrf.mxu0
        %v2391 = vadd.f32 0.0, %v2390
        %v2392 = vpop.f32.mrf.mxu0
        %2393 = vmatprep.mubr.f32.mxu0 0.0
        %2394 = vmatmul.mubr.f32.gmra.mxu0 %v2197
        %v2395 = vpop.f32.mrf.mxu0
        %v2396 = vadd.f32 0.0, %v2395
        %v2397 = vpop.f32.mrf.mxu0
        %2398 = vmatprep.mubr.f32.mxu0 0.0
        %2399 = vmatmul.mubr.f32.gmra.mxu0 %v2200
        %v2400 = vpop.f32.mrf.mxu0
        %v2401 = vadd.f32 0.0, %v2400
        %v2402 = vpop.f32.mrf.mxu0
        %2403 = vmatprep.mubr.f32.mxu0 0.0
        %2404 = vmatmul.mubr.f32.gmra.mxu0 %v2203
        %v2405 = vpop.f32.mrf.mxu0
        %v2406 = vadd.f32 0.0, %v2405
        %v2407 = vpop.f32.mrf.mxu0
        %2408 = vmatprep.mubr.f32.mxu0 0.0
        %2409 = vmatmul.mubr.f32.gmra.mxu0 %v2206
        %v2410 = vpop.f32.mrf.mxu0
        %v2411 = vadd.f32 0.0, %v2410
        %v2412 = vpop.f32.mrf.mxu0
        %2413 = vmatprep.mubr.f32.mxu0 0.0
        %2414 = vmatmul.mubr.f32.gmra.mxu0 %v2209
        %v2415 = vpop.f32.mrf.mxu0
        %v2416 = vadd.f32 0.0, %v2415
        %v2417 = vpop.f32.mrf.mxu0
        %2418 = vmatprep.mubr.f32.mxu0 0.0
        %2419 = vmatmul.mubr.f32.gmra.mxu0 %v2212
        %v2420 = vpop.f32.mrf.mxu0
        %v2421 = vadd.f32 0.0, %v2420
        %v2422 = vpop.f32.mrf.mxu0
        %2423 = vmatprep.mubr.f32.mxu0 0.0
        %2424 = vmatmul.mubr.f32.gmra.mxu0 %v2215
        %v2425 = vpop.f32.mrf.mxu0
        %v2426 = vadd.f32 0.0, %v2425
        %v2427 = vpop.f32.mrf.mxu0
        %2428 = vmatprep.mubr.f32.mxu0 0.0
        %2429 = vmatmul.mubr.f32.gmra.mxu0 %v2218
        %v2430 = vpop.f32.mrf.mxu0
        %v2431 = vadd.f32 0.0, %v2430
        %v2432 = vpop.f32.mrf.mxu0
        %2433 = vmatprep.mubr.f32.mxu0 0.0
        %2434 = vmatmul.mubr.f32.gmra.mxu0 %v2221
        %v2435 = vpop.f32.mrf.mxu0
        %v2436 = vadd.f32 0.0, %v2435
        %v2437 = vpop.f32.mrf.mxu0
        %2438 = vmatprep.mubr.f32.mxu0 0.0
        %2439 = vmatmul.mubr.f32.gmra.mxu0 %v2224
        %v2440 = vpop.f32.mrf.mxu0
        %v2441 = vadd.f32 0.0, %v2440
        %v2442 = vpop.f32.mrf.mxu0
        %2443 = vmatprep.mubr.f32.mxu0 0.0
        %2444 = vmatmul.mubr.f32.gmra.mxu0 %v2227
        %v2445 = vpop.f32.mrf.mxu0
        %v2446 = vadd.f32 0.0, %v2445
        %v2447 = vpop.f32.mrf.mxu0
        %2448 = vmatprep.mubr.f32.mxu0 0.0
        %2449 = vmatmul.mubr.f32.gmra.mxu0 %v2230
        %v2450 = vpop.f32.mrf.mxu0
        %v2451 = vadd.f32 0.0, %v2450
        %v2452 = vpop.f32.mrf.mxu0
        %2453 = vmatprep.mubr.f32.mxu0 0.0
        %2454 = vmatmul.mubr.f32.gmra.mxu0 %v2233
        %v2455 = vpop.f32.mrf.mxu0
        %v2456 = vadd.f32 0.0, %v2455
        %v2457 = vpop.f32.mrf.mxu0
        %2458 = vmatprep.mubr.f32.mxu0 0.0
        %2459 = vmatmul.mubr.f32.gmra.mxu0 %v2236
        %v2460 = vpop.f32.mrf.mxu0
        %v2461 = vadd.f32 0.0, %v2460
        %v2462 = vpop.f32.mrf.mxu0
        %2463 = vmatprep.mubr.f32.mxu0 0.0
        %2464 = vmatmul.mubr.f32.gmra.mxu0 %v2239
        %v2465 = vpop.f32.mrf.mxu0
        %v2466 = vadd.f32 0.0, %v2465
        %v2467 = vpop.f32.mrf.mxu0
        %2468 = vdwg.mxu0
        %v2469 = vadd.f32 %v2111, %v2311
        %v2470 = vadd.f32 %v2112, %v2316
        %v2471 = vadd.f32 %v2113, %v2321
        %v2472 = vadd.f32 %v2114, %v2326
        %v2473 = vadd.f32 %v2115, %v2331
        %v2474 = vadd.f32 %v2116, %v2336
        %v2475 = vadd.f32 %v2117, %v2341
        %v2476 = vadd.f32 %v2118, %v2346
        %v2477 = vadd.f32 %v2119, %v2351
        %v2478 = vadd.f32 %v2120, %v2356
        %v2479 = vadd.f32 %v2121, %v2361
        %v2480 = vadd.f32 %v2122, %v2366
        %v2481 = vadd.f32 %v2123, %v2371
        %v2482 = vadd.f32 %v2124, %v2376
        %v2483 = vadd.f32 %v2125, %v2381
        %v2484 = vadd.f32 %v2126, %v2386
        %v2485 = vadd.f32 %v2127, %v2391
        %v2486 = vadd.f32 %v2128, %v2396
        %v2487 = vadd.f32 %v2129, %v2401
        %v2488 = vadd.f32 %v2130, %v2406
        %v2489 = vadd.f32 %v2131, %v2411
        %v2490 = vadd.f32 %v2132, %v2416
        %v2491 = vadd.f32 %v2133, %v2421
        %v2492 = vadd.f32 %v2134, %v2426
        %v2493 = vadd.f32 %v2135, %v2431
        %v2494 = vadd.f32 %v2136, %v2436
        %v2495 = vadd.f32 %v2137, %v2441
        %v2496 = vadd.f32 %v2138, %v2446
        %v2497 = vadd.f32 %v2139, %v2451
        %v2498 = vadd.f32 %v2140, %v2456
        %v2499 = vadd.f32 %v2141, %v2461
        %v2500 = vadd.f32 %v2142, %v2466
        %2501 = vst [vmem:[#allocation2] sm:$0xff] %v2469
        %2502 = vst [vmem:[#allocation2 + $0x8] sm:$0xff] %v2470
        %2503 = vst [vmem:[#allocation2 + $0x10] sm:$0xff] %v2471
        %2504 = vst [vmem:[#allocation2 + $0x18] sm:$0xff] %v2472
        %2505 = vst [vmem:[#allocation2 + $0x20] sm:$0xff] %v2473
        %2506 = vst [vmem:[#allocation2 + $0x28] sm:$0xff] %v2474
        %2507 = vst [vmem:[#allocation2 + $0x30] sm:$0xff] %v2475
        %2508 = vst [vmem:[#allocation2 + $0x38] sm:$0xff] %v2476
        %2509 = vst [vmem:[#allocation2 + $0x40] sm:$0xff] %v2477
        %2510 = vst [vmem:[#allocation2 + $0x48] sm:$0xff] %v2478
        %2511 = vst [vmem:[#allocation2 + $0x50] sm:$0xff] %v2479
        %2512 = vst [vmem:[#allocation2 + $0x58] sm:$0xff] %v2480
        %2513 = vst [vmem:[#allocation2 + $0x60] sm:$0xff] %v2481
        %2514 = vst [vmem:[#allocation2 + $0x68] sm:$0xff] %v2482
        %2515 = vst [vmem:[#allocation2 + $0x70] sm:$0xff] %v2483
        %2516 = vst [vmem:[#allocation2 + $0x78] sm:$0xff] %v2484
        %2517 = vst [vmem:[#allocation2 + $0x80] sm:$0xff] %v2485
        %2518 = vst [vmem:[#allocation2 + $0x88] sm:$0xff] %v2486
        %2519 = vst [vmem:[#allocation2 + $0x90] sm:$0xff] %v2487
        %2520 = vst [vmem:[#allocation2 + $0x98] sm:$0xff] %v2488
        %2521 = vst [vmem:[#allocation2 + $0xa0] sm:$0xff] %v2489
        %2522 = vst [vmem:[#allocation2 + $0xa8] sm:$0xff] %v2490
        %2523 = vst [vmem:[#allocation2 + $0xb0] sm:$0xff] %v2491
        %2524 = vst [vmem:[#allocation2 + $0xb8] sm:$0xff] %v2492
        %2525 = vst [vmem:[#allocation2 + $0xc0] sm:$0xff] %v2493
        %2526 = vst [vmem:[#allocation2 + $0xc8] sm:$0xff] %v2494
        %2527 = vst [vmem:[#allocation2 + $0xd0] sm:$0xff] %v2495
        %2528 = vst [vmem:[#allocation2 + $0xd8] sm:$0xff] %v2496
        %2529 = vst [vmem:[#allocation2 + $0xe0] sm:$0xff] %v2497
        %2530 = vst [vmem:[#allocation2 + $0xe8] sm:$0xff] %v2498
        %2531 = vst [vmem:[#allocation2 + $0xf0] sm:$0xff] %v2499
        %2532 = vst [vmem:[#allocation2 + $0xf8] sm:$0xff] %v2500
        %v2533 = vld [vmem:[%s1624 + $0x2] sm:$0xff]
        %v2534 = vld [vmem:[%s1624 + $0xa] sm:$0xff]
        %v2535 = vld [vmem:[%s1624 + $0x1a] sm:$0xff]
        %v2536 = vld [vmem:[%s1624 + $0x22] sm:$0xff]
        %v2537 = vld [vmem:[%s1624 + $0x32] sm:$0xff]
        %v2538 = vld [vmem:[%s1624 + $0x3a] sm:$0xff]
        %v2539 = vld [vmem:[%s1624 + $0x4a] sm:$0xff]
        %v2540 = vld [vmem:[%s1624 + $0x52] sm:$0xff]
        %v2541 = vld [vmem:[%s1624 + $0x62] sm:$0xff]
        %v2542 = vld [vmem:[%s1624 + $0x6a] sm:$0xff]
        %v2543 = vld [vmem:[%s1624 + $0x7a] sm:$0xff]
        %v2544 = vld [vmem:[%s1624 + $0x82] sm:$0xff]
        %v2545 = vld [vmem:[%s1624 + $0x92] sm:$0xff]
        %v2546 = vld [vmem:[%s1624 + $0x9a] sm:$0xff]
        %v2547 = vld [vmem:[%s1624 + $0xaa] sm:$0xff]
        %v2548 = vld [vmem:[%s1624 + $0xb2] sm:$0xff]
        %v2549 = vld [vmem:[%s1624 + $0xc2] sm:$0xff]
        %v2550 = vld [vmem:[%s1624 + $0xca] sm:$0xff]
        %v2551 = vld [vmem:[%s1624 + $0xda] sm:$0xff]
        %v2552 = vld [vmem:[%s1624 + $0xe2] sm:$0xff]
        %v2553 = vld [vmem:[%s1624 + $0xf2] sm:$0xff]
        %v2554 = vld [vmem:[%s1624 + $0xfa] sm:$0xff]
        %v2555 = vld [vmem:[%s1624 + $0x10a] sm:$0xff]
        %v2556 = vld [vmem:[%s1624 + $0x112] sm:$0xff]
        %v2557 = vld [vmem:[%s1624 + $0x122] sm:$0xff]
        %v2558 = vld [vmem:[%s1624 + $0x12a] sm:$0xff]
        %v2559 = vld [vmem:[%s1624 + $0x13a] sm:$0xff]
        %v2560 = vld [vmem:[%s1624 + $0x142] sm:$0xff]
        %v2561 = vld [vmem:[%s1624 + $0x152] sm:$0xff]
        %v2562 = vld [vmem:[%s1624 + $0x15a] sm:$0xff]
        %v2563 = vld [vmem:[%s1624 + $0x16a] sm:$0xff]
        %v2564 = vld [vmem:[%s1624 + $0x172] sm:$0xff]
        %v2565 = vld [vmem:[#allocation2] sm:$0xff]
        %v2566 = vld [vmem:[#allocation2 + $0x8] sm:$0xff]
        %v2567 = vld [vmem:[#allocation2 + $0x10] sm:$0xff]
        %v2568 = vld [vmem:[#allocation2 + $0x18] sm:$0xff]
        %v2569 = vld [vmem:[#allocation2 + $0x20] sm:$0xff]
        %v2570 = vld [vmem:[#allocation2 + $0x28] sm:$0xff]
        %v2571 = vld [vmem:[#allocation2 + $0x30] sm:$0xff]
        %v2572 = vld [vmem:[#allocation2 + $0x38] sm:$0xff]
        %v2573 = vld [vmem:[#allocation2 + $0x40] sm:$0xff]
        %v2574 = vld [vmem:[#allocation2 + $0x48] sm:$0xff]
        %v2575 = vld [vmem:[#allocation2 + $0x50] sm:$0xff]
        %v2576 = vld [vmem:[#allocation2 + $0x58] sm:$0xff]
        %v2577 = vld [vmem:[#allocation2 + $0x60] sm:$0xff]
        %v2578 = vld [vmem:[#allocation2 + $0x68] sm:$0xff]
        %v2579 = vld [vmem:[#allocation2 + $0x70] sm:$0xff]
        %v2580 = vld [vmem:[#allocation2 + $0x78] sm:$0xff]
        %v2581 = vld [vmem:[#allocation2 + $0x80] sm:$0xff]
        %v2582 = vld [vmem:[#allocation2 + $0x88] sm:$0xff]
        %v2583 = vld [vmem:[#allocation2 + $0x90] sm:$0xff]
        %v2584 = vld [vmem:[#allocation2 + $0x98] sm:$0xff]
        %v2585 = vld [vmem:[#allocation2 + $0xa0] sm:$0xff]
        %v2586 = vld [vmem:[#allocation2 + $0xa8] sm:$0xff]
        %v2587 = vld [vmem:[#allocation2 + $0xb0] sm:$0xff]
        %v2588 = vld [vmem:[#allocation2 + $0xb8] sm:$0xff]
        %v2589 = vld [vmem:[#allocation2 + $0xc0] sm:$0xff]
        %v2590 = vld [vmem:[#allocation2 + $0xc8] sm:$0xff]
        %v2591 = vld [vmem:[#allocation2 + $0xd0] sm:$0xff]
        %v2592 = vld [vmem:[#allocation2 + $0xd8] sm:$0xff]
        %v2593 = vld [vmem:[#allocation2 + $0xe0] sm:$0xff]
        %v2594 = vld [vmem:[#allocation2 + $0xe8] sm:$0xff]
        %v2595 = vld [vmem:[#allocation2 + $0xf0] sm:$0xff]
        %v2596 = vld [vmem:[#allocation2 + $0xf8] sm:$0xff]
        %s2597 = scalar_lea.vmem %s219, 20
        %v2598 = vld [vmem:[%s2597] sm:$0xf]
        %v2600 = vsel %vm324, %v2533, 0
        %v2603 = vsel %vm324, %v2534, 0
        %v2606 = vsel %vm324, %v2535, 0
        %v2609 = vsel %vm324, %v2536, 0
        %v2612 = vsel %vm324, %v2537, 0
        %v2615 = vsel %vm324, %v2538, 0
        %v2618 = vsel %vm324, %v2539, 0
        %v2621 = vsel %vm324, %v2540, 0
        %v2624 = vsel %vm324, %v2541, 0
        %v2627 = vsel %vm324, %v2542, 0
        %v2630 = vsel %vm324, %v2543, 0
        %v2633 = vsel %vm324, %v2544, 0
        %v2636 = vsel %vm324, %v2545, 0
        %v2639 = vsel %vm324, %v2546, 0
        %v2642 = vsel %vm324, %v2547, 0
        %v2645 = vsel %vm324, %v2548, 0
        %v2648 = vsel %vm324, %v2549, 0
        %v2651 = vsel %vm324, %v2550, 0
        %v2654 = vsel %vm324, %v2551, 0
        %v2657 = vsel %vm324, %v2552, 0
        %v2660 = vsel %vm324, %v2553, 0
        %v2663 = vsel %vm324, %v2554, 0
        %v2666 = vsel %vm324, %v2555, 0
        %v2669 = vsel %vm324, %v2556, 0
        %v2672 = vsel %vm324, %v2557, 0
        %v2675 = vsel %vm324, %v2558, 0
        %v2678 = vsel %vm324, %v2559, 0
        %v2681 = vsel %vm324, %v2560, 0
        %v2684 = vsel %vm324, %v2561, 0
        %v2687 = vsel %vm324, %v2562, 0
        %v2690 = vsel %vm324, %v2563, 0
        %v2693 = vsel %vm324, %v2564, 0
        %v2696 = vsel %vm421, %v2598, 0
        %2698 = vmatprep.subr.mxu0 0.0
        %2699 = vmatpush1.msra.mxu0 0.0
        %2700 = vmatprep.subr.mxu0 0.0
        %2701 = vmatpush1.msra.mxu0 0.0
        %2702 = vmatprep.subr.mxu0 0.0
        %2703 = vmatpush1.msra.mxu0 0.0
        %2704 = vmatprep.subr.mxu0 0.0
        %2705 = vmatpush1.msra.mxu0 0.0
        %2706 = vmatprep.subr.mxu0 0.0
        %2707 = vmatpush1.msra.mxu0 0.0
        %2708 = vmatprep.subr.mxu0 0.0
        %2709 = vmatpush1.msra.mxu0 0.0
        %2710 = vmatprep.subr.mxu0 0.0
        %2711 = vmatpush1.msra.mxu0 0.0
        %2712 = vmatprep.subr.mxu0 0.0
        %2713 = vmatpush1.msra.mxu0 0.0
        %2714 = vmatprep.subr.mxu0 0.0
        %2715 = vmatpush1.msra.mxu0 0.0
        %2716 = vmatprep.subr.mxu0 0.0
        %2717 = vmatpush1.msra.mxu0 0.0
        %2718 = vmatprep.subr.mxu0 0.0
        %2719 = vmatpush1.msra.mxu0 0.0
        %2720 = vmatprep.subr.mxu0 0.0
        %2721 = vmatpush1.msra.mxu0 0.0
        %2722 = vmatprep.subr.mxu0 0.0
        %2723 = vmatpush1.msra.mxu0 0.0
        %2724 = vmatprep.subr.mxu0 0.0
        %2725 = vmatpush1.msra.mxu0 0.0
        %2726 = vmatprep.subr.mxu0 0.0
        %2727 = vmatpush1.msra.mxu0 0.0
        %2728 = vmatprep.subr.mxu0 0.0
        %2729 = vmatpush1.msra.mxu0 %v2696
        %2730 = vmatprep.subr.mxu0 0.0
        %2731 = vmatpush2.msra.mxu0 0.0
        %2732 = vmatprep.subr.mxu0 0.0
        %2733 = vmatpush2.msra.mxu0 0.0
        %2734 = vmatprep.subr.mxu0 0.0
        %2735 = vmatpush2.msra.mxu0 0.0
        %2736 = vmatprep.subr.mxu0 0.0
        %2737 = vmatpush2.msra.mxu0 0.0
        %2738 = vmatprep.subr.mxu0 0.0
        %2739 = vmatpush2.msra.mxu0 0.0
        %2740 = vmatprep.subr.mxu0 0.0
        %2741 = vmatpush2.msra.mxu0 0.0
        %2742 = vmatprep.subr.mxu0 0.0
        %2743 = vmatpush2.msra.mxu0 0.0
        %2744 = vmatprep.subr.mxu0 0.0
        %2745 = vmatpush2.msra.mxu0 0.0
        %2746 = vmatprep.subr.mxu0 0.0
        %2747 = vmatpush2.msra.mxu0 0.0
        %2748 = vmatprep.subr.mxu0 0.0
        %2749 = vmatpush2.msra.mxu0 0.0
        %2750 = vmatprep.subr.mxu0 0.0
        %2751 = vmatpush2.msra.mxu0 0.0
        %2752 = vmatprep.subr.mxu0 0.0
        %2753 = vmatpush2.msra.mxu0 0.0
        %2754 = vmatprep.subr.mxu0 0.0
        %2755 = vmatpush2.msra.mxu0 0.0
        %2756 = vmatprep.subr.mxu0 0.0
        %2757 = vmatpush2.msra.mxu0 0.0
        %2758 = vmatprep.subr.mxu0 0.0
        %2759 = vmatpush2.msra.mxu0 0.0
        %2760 = vmatprep.subr.mxu0 0.0
        %2761 = vmatpush2.msra.mxu0 0.0
        %2762 = vmatprep.mubr.f32.mxu0 0.0
        %2763 = vmatmul.mubr.f32.gmra.mxu0 %v2600
        %v2764 = vpop.f32.mrf.mxu0
        %v2765 = vadd.f32 0.0, %v2764
        %v2766 = vpop.f32.mrf.mxu0
        %2767 = vmatprep.mubr.f32.mxu0 0.0
        %2768 = vmatmul.mubr.f32.gmra.mxu0 %v2603
        %v2769 = vpop.f32.mrf.mxu0
        %v2770 = vadd.f32 0.0, %v2769
        %v2771 = vpop.f32.mrf.mxu0
        %2772 = vmatprep.mubr.f32.mxu0 0.0
        %2773 = vmatmul.mubr.f32.gmra.mxu0 %v2606
        %v2774 = vpop.f32.mrf.mxu0
        %v2775 = vadd.f32 0.0, %v2774
        %v2776 = vpop.f32.mrf.mxu0
        %2777 = vmatprep.mubr.f32.mxu0 0.0
        %2778 = vmatmul.mubr.f32.gmra.mxu0 %v2609
        %v2779 = vpop.f32.mrf.mxu0
        %v2780 = vadd.f32 0.0, %v2779
        %v2781 = vpop.f32.mrf.mxu0
        %2782 = vmatprep.mubr.f32.mxu0 0.0
        %2783 = vmatmul.mubr.f32.gmra.mxu0 %v2612
        %v2784 = vpop.f32.mrf.mxu0
        %v2785 = vadd.f32 0.0, %v2784
        %v2786 = vpop.f32.mrf.mxu0
        %2787 = vmatprep.mubr.f32.mxu0 0.0
        %2788 = vmatmul.mubr.f32.gmra.mxu0 %v2615
        %v2789 = vpop.f32.mrf.mxu0
        %v2790 = vadd.f32 0.0, %v2789
        %v2791 = vpop.f32.mrf.mxu0
        %2792 = vmatprep.mubr.f32.mxu0 0.0
        %2793 = vmatmul.mubr.f32.gmra.mxu0 %v2618
        %v2794 = vpop.f32.mrf.mxu0
        %v2795 = vadd.f32 0.0, %v2794
        %v2796 = vpop.f32.mrf.mxu0
        %2797 = vmatprep.mubr.f32.mxu0 0.0
        %2798 = vmatmul.mubr.f32.gmra.mxu0 %v2621
        %v2799 = vpop.f32.mrf.mxu0
        %v2800 = vadd.f32 0.0, %v2799
        %v2801 = vpop.f32.mrf.mxu0
        %2802 = vmatprep.mubr.f32.mxu0 0.0
        %2803 = vmatmul.mubr.f32.gmra.mxu0 %v2624
        %v2804 = vpop.f32.mrf.mxu0
        %v2805 = vadd.f32 0.0, %v2804
        %v2806 = vpop.f32.mrf.mxu0
        %2807 = vmatprep.mubr.f32.mxu0 0.0
        %2808 = vmatmul.mubr.f32.gmra.mxu0 %v2627
        %v2809 = vpop.f32.mrf.mxu0
        %v2810 = vadd.f32 0.0, %v2809
        %v2811 = vpop.f32.mrf.mxu0
        %2812 = vmatprep.mubr.f32.mxu0 0.0
        %2813 = vmatmul.mubr.f32.gmra.mxu0 %v2630
        %v2814 = vpop.f32.mrf.mxu0
        %v2815 = vadd.f32 0.0, %v2814
        %v2816 = vpop.f32.mrf.mxu0
        %2817 = vmatprep.mubr.f32.mxu0 0.0
        %2818 = vmatmul.mubr.f32.gmra.mxu0 %v2633
        %v2819 = vpop.f32.mrf.mxu0
        %v2820 = vadd.f32 0.0, %v2819
        %v2821 = vpop.f32.mrf.mxu0
        %2822 = vmatprep.mubr.f32.mxu0 0.0
        %2823 = vmatmul.mubr.f32.gmra.mxu0 %v2636
        %v2824 = vpop.f32.mrf.mxu0
        %v2825 = vadd.f32 0.0, %v2824
        %v2826 = vpop.f32.mrf.mxu0
        %2827 = vmatprep.mubr.f32.mxu0 0.0
        %2828 = vmatmul.mubr.f32.gmra.mxu0 %v2639
        %v2829 = vpop.f32.mrf.mxu0
        %v2830 = vadd.f32 0.0, %v2829
        %v2831 = vpop.f32.mrf.mxu0
        %2832 = vmatprep.mubr.f32.mxu0 0.0
        %2833 = vmatmul.mubr.f32.gmra.mxu0 %v2642
        %v2834 = vpop.f32.mrf.mxu0
        %v2835 = vadd.f32 0.0, %v2834
        %v2836 = vpop.f32.mrf.mxu0
        %2837 = vmatprep.mubr.f32.mxu0 0.0
        %2838 = vmatmul.mubr.f32.gmra.mxu0 %v2645
        %v2839 = vpop.f32.mrf.mxu0
        %v2840 = vadd.f32 0.0, %v2839
        %v2841 = vpop.f32.mrf.mxu0
        %2842 = vmatprep.mubr.f32.mxu0 0.0
        %2843 = vmatmul.mubr.f32.gmra.mxu0 %v2648
        %v2844 = vpop.f32.mrf.mxu0
        %v2845 = vadd.f32 0.0, %v2844
        %v2846 = vpop.f32.mrf.mxu0
        %2847 = vmatprep.mubr.f32.mxu0 0.0
        %2848 = vmatmul.mubr.f32.gmra.mxu0 %v2651
        %v2849 = vpop.f32.mrf.mxu0
        %v2850 = vadd.f32 0.0, %v2849
        %v2851 = vpop.f32.mrf.mxu0
        %2852 = vmatprep.mubr.f32.mxu0 0.0
        %2853 = vmatmul.mubr.f32.gmra.mxu0 %v2654
        %v2854 = vpop.f32.mrf.mxu0
        %v2855 = vadd.f32 0.0, %v2854
        %v2856 = vpop.f32.mrf.mxu0
        %2857 = vmatprep.mubr.f32.mxu0 0.0
        %2858 = vmatmul.mubr.f32.gmra.mxu0 %v2657
        %v2859 = vpop.f32.mrf.mxu0
        %v2860 = vadd.f32 0.0, %v2859
        %v2861 = vpop.f32.mrf.mxu0
        %2862 = vmatprep.mubr.f32.mxu0 0.0
        %2863 = vmatmul.mubr.f32.gmra.mxu0 %v2660
        %v2864 = vpop.f32.mrf.mxu0
        %v2865 = vadd.f32 0.0, %v2864
        %v2866 = vpop.f32.mrf.mxu0
        %2867 = vmatprep.mubr.f32.mxu0 0.0
        %2868 = vmatmul.mubr.f32.gmra.mxu0 %v2663
        %v2869 = vpop.f32.mrf.mxu0
        %v2870 = vadd.f32 0.0, %v2869
        %v2871 = vpop.f32.mrf.mxu0
        %2872 = vmatprep.mubr.f32.mxu0 0.0
        %2873 = vmatmul.mubr.f32.gmra.mxu0 %v2666
        %v2874 = vpop.f32.mrf.mxu0
        %v2875 = vadd.f32 0.0, %v2874
        %v2876 = vpop.f32.mrf.mxu0
        %2877 = vmatprep.mubr.f32.mxu0 0.0
        %2878 = vmatmul.mubr.f32.gmra.mxu0 %v2669
        %v2879 = vpop.f32.mrf.mxu0
        %v2880 = vadd.f32 0.0, %v2879
        %v2881 = vpop.f32.mrf.mxu0
        %2882 = vmatprep.mubr.f32.mxu0 0.0
        %2883 = vmatmul.mubr.f32.gmra.mxu0 %v2672
        %v2884 = vpop.f32.mrf.mxu0
        %v2885 = vadd.f32 0.0, %v2884
        %v2886 = vpop.f32.mrf.mxu0
        %2887 = vmatprep.mubr.f32.mxu0 0.0
        %2888 = vmatmul.mubr.f32.gmra.mxu0 %v2675
        %v2889 = vpop.f32.mrf.mxu0
        %v2890 = vadd.f32 0.0, %v2889
        %v2891 = vpop.f32.mrf.mxu0
        %2892 = vmatprep.mubr.f32.mxu0 0.0
        %2893 = vmatmul.mubr.f32.gmra.mxu0 %v2678
        %v2894 = vpop.f32.mrf.mxu0
        %v2895 = vadd.f32 0.0, %v2894
        %v2896 = vpop.f32.mrf.mxu0
        %2897 = vmatprep.mubr.f32.mxu0 0.0
        %2898 = vmatmul.mubr.f32.gmra.mxu0 %v2681
        %v2899 = vpop.f32.mrf.mxu0
        %v2900 = vadd.f32 0.0, %v2899
        %v2901 = vpop.f32.mrf.mxu0
        %2902 = vmatprep.mubr.f32.mxu0 0.0
        %2903 = vmatmul.mubr.f32.gmra.mxu0 %v2684
        %v2904 = vpop.f32.mrf.mxu0
        %v2905 = vadd.f32 0.0, %v2904
        %v2906 = vpop.f32.mrf.mxu0
        %2907 = vmatprep.mubr.f32.mxu0 0.0
        %2908 = vmatmul.mubr.f32.gmra.mxu0 %v2687
        %v2909 = vpop.f32.mrf.mxu0
        %v2910 = vadd.f32 0.0, %v2909
        %v2911 = vpop.f32.mrf.mxu0
        %2912 = vmatprep.mubr.f32.mxu0 0.0
        %2913 = vmatmul.mubr.f32.gmra.mxu0 %v2690
        %v2914 = vpop.f32.mrf.mxu0
        %v2915 = vadd.f32 0.0, %v2914
        %v2916 = vpop.f32.mrf.mxu0
        %2917 = vmatprep.mubr.f32.mxu0 0.0
        %2918 = vmatmul.mubr.f32.gmra.mxu0 %v2693
        %v2919 = vpop.f32.mrf.mxu0
        %v2920 = vadd.f32 0.0, %v2919
        %v2921 = vpop.f32.mrf.mxu0
        %2922 = vdwg.mxu0
        %v2923 = vadd.f32 %v2565, %v2765
        %v2924 = vadd.f32 %v2566, %v2770
        %v2925 = vadd.f32 %v2567, %v2775
        %v2926 = vadd.f32 %v2568, %v2780
        %v2927 = vadd.f32 %v2569, %v2785
        %v2928 = vadd.f32 %v2570, %v2790
        %v2929 = vadd.f32 %v2571, %v2795
        %v2930 = vadd.f32 %v2572, %v2800
        %v2931 = vadd.f32 %v2573, %v2805
        %v2932 = vadd.f32 %v2574, %v2810
        %v2933 = vadd.f32 %v2575, %v2815
        %v2934 = vadd.f32 %v2576, %v2820
        %v2935 = vadd.f32 %v2577, %v2825
        %v2936 = vadd.f32 %v2578, %v2830
        %v2937 = vadd.f32 %v2579, %v2835
        %v2938 = vadd.f32 %v2580, %v2840
        %v2939 = vadd.f32 %v2581, %v2845
        %v2940 = vadd.f32 %v2582, %v2850
        %v2941 = vadd.f32 %v2583, %v2855
        %v2942 = vadd.f32 %v2584, %v2860
        %v2943 = vadd.f32 %v2585, %v2865
        %v2944 = vadd.f32 %v2586, %v2870
        %v2945 = vadd.f32 %v2587, %v2875
        %v2946 = vadd.f32 %v2588, %v2880
        %v2947 = vadd.f32 %v2589, %v2885
        %v2948 = vadd.f32 %v2590, %v2890
        %v2949 = vadd.f32 %v2591, %v2895
        %v2950 = vadd.f32 %v2592, %v2900
        %v2951 = vadd.f32 %v2593, %v2905
        %v2952 = vadd.f32 %v2594, %v2910
        %v2953 = vadd.f32 %v2595, %v2915
        %v2954 = vadd.f32 %v2596, %v2920
        %2955 = vst [vmem:[#allocation2] sm:$0xff] %v2923
        %2956 = vst [vmem:[#allocation2 + $0x8] sm:$0xff] %v2924
        %2957 = vst [vmem:[#allocation2 + $0x10] sm:$0xff] %v2925
        %2958 = vst [vmem:[#allocation2 + $0x18] sm:$0xff] %v2926
        %2959 = vst [vmem:[#allocation2 + $0x20] sm:$0xff] %v2927
        %2960 = vst [vmem:[#allocation2 + $0x28] sm:$0xff] %v2928
        %2961 = vst [vmem:[#allocation2 + $0x30] sm:$0xff] %v2929
        %2962 = vst [vmem:[#allocation2 + $0x38] sm:$0xff] %v2930
        %2963 = vst [vmem:[#allocation2 + $0x40] sm:$0xff] %v2931
        %2964 = vst [vmem:[#allocation2 + $0x48] sm:$0xff] %v2932
        %2965 = vst [vmem:[#allocation2 + $0x50] sm:$0xff] %v2933
        %2966 = vst [vmem:[#allocation2 + $0x58] sm:$0xff] %v2934
        %2967 = vst [vmem:[#allocation2 + $0x60] sm:$0xff] %v2935
        %2968 = vst [vmem:[#allocation2 + $0x68] sm:$0xff] %v2936
        %2969 = vst [vmem:[#allocation2 + $0x70] sm:$0xff] %v2937
        %2970 = vst [vmem:[#allocation2 + $0x78] sm:$0xff] %v2938
        %2971 = vst [vmem:[#allocation2 + $0x80] sm:$0xff] %v2939
        %2972 = vst [vmem:[#allocation2 + $0x88] sm:$0xff] %v2940
        %2973 = vst [vmem:[#allocation2 + $0x90] sm:$0xff] %v2941
        %2974 = vst [vmem:[#allocation2 + $0x98] sm:$0xff] %v2942
        %2975 = vst [vmem:[#allocation2 + $0xa0] sm:$0xff] %v2943
        %2976 = vst [vmem:[#allocation2 + $0xa8] sm:$0xff] %v2944
        %2977 = vst [vmem:[#allocation2 + $0xb0] sm:$0xff] %v2945
        %2978 = vst [vmem:[#allocation2 + $0xb8] sm:$0xff] %v2946
        %2979 = vst [vmem:[#allocation2 + $0xc0] sm:$0xff] %v2947
        %2980 = vst [vmem:[#allocation2 + $0xc8] sm:$0xff] %v2948
        %2981 = vst [vmem:[#allocation2 + $0xd0] sm:$0xff] %v2949
        %2982 = vst [vmem:[#allocation2 + $0xd8] sm:$0xff] %v2950
        %2983 = vst [vmem:[#allocation2 + $0xe0] sm:$0xff] %v2951
        %2984 = vst [vmem:[#allocation2 + $0xe8] sm:$0xff] %v2952
        %2985 = vst [vmem:[#allocation2 + $0xf0] sm:$0xff] %v2953
        %2986 = vst [vmem:[#allocation2 + $0xf8] sm:$0xff] %v2954
        %s2987 = sadd.s32 %s224, 2
        %s2988 = smul.u32 %s2987, 24
        %s2989 = scalar_lea.vmem %s215, %s2988
        %v2990 = vld [vmem:[%s2989] sm:$0xff]
        %v2991 = vld [vmem:[%s2989 + $0x8] sm:$0xff]
        %v2992 = vld [vmem:[%s2989 + $0x18] sm:$0xff]
        %v2993 = vld [vmem:[%s2989 + $0x20] sm:$0xff]
        %v2994 = vld [vmem:[%s2989 + $0x30] sm:$0xff]
        %v2995 = vld [vmem:[%s2989 + $0x38] sm:$0xff]
        %v2996 = vld [vmem:[%s2989 + $0x48] sm:$0xff]
        %v2997 = vld [vmem:[%s2989 + $0x50] sm:$0xff]
        %v2998 = vld [vmem:[%s2989 + $0x60] sm:$0xff]
        %v2999 = vld [vmem:[%s2989 + $0x68] sm:$0xff]
        %v3000 = vld [vmem:[%s2989 + $0x78] sm:$0xff]
        %v3001 = vld [vmem:[%s2989 + $0x80] sm:$0xff]
        %v3002 = vld [vmem:[%s2989 + $0x90] sm:$0xff]
        %v3003 = vld [vmem:[%s2989 + $0x98] sm:$0xff]
        %v3004 = vld [vmem:[%s2989 + $0xa8] sm:$0xff]
        %v3005 = vld [vmem:[%s2989 + $0xb0] sm:$0xff]
        %v3006 = vld [vmem:[%s2989 + $0xc0] sm:$0xff]
        %v3007 = vld [vmem:[%s2989 + $0xc8] sm:$0xff]
        %v3008 = vld [vmem:[%s2989 + $0xd8] sm:$0xff]
        %v3009 = vld [vmem:[%s2989 + $0xe0] sm:$0xff]
        %v3010 = vld [vmem:[%s2989 + $0xf0] sm:$0xff]
        %v3011 = vld [vmem:[%s2989 + $0xf8] sm:$0xff]
        %v3012 = vld [vmem:[%s2989 + $0x108] sm:$0xff]
        %v3013 = vld [vmem:[%s2989 + $0x110] sm:$0xff]
        %v3014 = vld [vmem:[%s2989 + $0x120] sm:$0xff]
        %v3015 = vld [vmem:[%s2989 + $0x128] sm:$0xff]
        %v3016 = vld [vmem:[%s2989 + $0x138] sm:$0xff]
        %v3017 = vld [vmem:[%s2989 + $0x140] sm:$0xff]
        %v3018 = vld [vmem:[%s2989 + $0x150] sm:$0xff]
        %v3019 = vld [vmem:[%s2989 + $0x158] sm:$0xff]
        %v3020 = vld [vmem:[%s2989 + $0x168] sm:$0xff]
        %v3021 = vld [vmem:[%s2989 + $0x170] sm:$0xff]
        %v3022 = vld [vmem:[#allocation2] sm:$0xff]
        %v3023 = vld [vmem:[#allocation2 + $0x8] sm:$0xff]
        %v3024 = vld [vmem:[#allocation2 + $0x10] sm:$0xff]
        %v3025 = vld [vmem:[#allocation2 + $0x18] sm:$0xff]
        %v3026 = vld [vmem:[#allocation2 + $0x20] sm:$0xff]
        %v3027 = vld [vmem:[#allocation2 + $0x28] sm:$0xff]
        %v3028 = vld [vmem:[#allocation2 + $0x30] sm:$0xff]
        %v3029 = vld [vmem:[#allocation2 + $0x38] sm:$0xff]
        %v3030 = vld [vmem:[#allocation2 + $0x40] sm:$0xff]
        %v3031 = vld [vmem:[#allocation2 + $0x48] sm:$0xff]
        %v3032 = vld [vmem:[#allocation2 + $0x50] sm:$0xff]
        %v3033 = vld [vmem:[#allocation2 + $0x58] sm:$0xff]
        %v3034 = vld [vmem:[#allocation2 + $0x60] sm:$0xff]
        %v3035 = vld [vmem:[#allocation2 + $0x68] sm:$0xff]
        %v3036 = vld [vmem:[#allocation2 + $0x70] sm:$0xff]
        %v3037 = vld [vmem:[#allocation2 + $0x78] sm:$0xff]
        %v3038 = vld [vmem:[#allocation2 + $0x80] sm:$0xff]
        %v3039 = vld [vmem:[#allocation2 + $0x88] sm:$0xff]
        %v3040 = vld [vmem:[#allocation2 + $0x90] sm:$0xff]
        %v3041 = vld [vmem:[#allocation2 + $0x98] sm:$0xff]
        %v3042 = vld [vmem:[#allocation2 + $0xa0] sm:$0xff]
        %v3043 = vld [vmem:[#allocation2 + $0xa8] sm:$0xff]
        %v3044 = vld [vmem:[#allocation2 + $0xb0] sm:$0xff]
        %v3045 = vld [vmem:[#allocation2 + $0xb8] sm:$0xff]
        %v3046 = vld [vmem:[#allocation2 + $0xc0] sm:$0xff]
        %v3047 = vld [vmem:[#allocation2 + $0xc8] sm:$0xff]
        %v3048 = vld [vmem:[#allocation2 + $0xd0] sm:$0xff]
        %v3049 = vld [vmem:[#allocation2 + $0xd8] sm:$0xff]
        %v3050 = vld [vmem:[#allocation2 + $0xe0] sm:$0xff]
        %v3051 = vld [vmem:[#allocation2 + $0xe8] sm:$0xff]
        %v3052 = vld [vmem:[#allocation2 + $0xf0] sm:$0xff]
        %v3053 = vld [vmem:[#allocation2 + $0xf8] sm:$0xff]
        %s3054 = scalar_lea.vmem %s219, 24
        %v3055 = vld [vmem:[%s3054] sm:$0xf]
        %v3057 = vsel %vm324, %v2990, 0
        %v3060 = vsel %vm324, %v2991, 0
        %v3063 = vsel %vm324, %v2992, 0
        %v3066 = vsel %vm324, %v2993, 0
        %v3069 = vsel %vm324, %v2994, 0
        %v3072 = vsel %vm324, %v2995, 0
        %v3075 = vsel %vm324, %v2996, 0
        %v3078 = vsel %vm324, %v2997, 0
        %v3081 = vsel %vm324, %v2998, 0
        %v3084 = vsel %vm324, %v2999, 0
        %v3087 = vsel %vm324, %v3000, 0
        %v3090 = vsel %vm324, %v3001, 0
        %v3093 = vsel %vm324, %v3002, 0
        %v3096 = vsel %vm324, %v3003, 0
        %v3099 = vsel %vm324, %v3004, 0
        %v3102 = vsel %vm324, %v3005, 0
        %v3105 = vsel %vm324, %v3006, 0
        %v3108 = vsel %vm324, %v3007, 0
        %v3111 = vsel %vm324, %v3008, 0
        %v3114 = vsel %vm324, %v3009, 0
        %v3117 = vsel %vm324, %v3010, 0
        %v3120 = vsel %vm324, %v3011, 0
        %v3123 = vsel %vm324, %v3012, 0
        %v3126 = vsel %vm324, %v3013, 0
        %v3129 = vsel %vm324, %v3014, 0
        %v3132 = vsel %vm324, %v3015, 0
        %v3135 = vsel %vm324, %v3016, 0
        %v3138 = vsel %vm324, %v3017, 0
        %v3141 = vsel %vm324, %v3018, 0
        %v3144 = vsel %vm324, %v3019, 0
        %v3147 = vsel %vm324, %v3020, 0
        %v3150 = vsel %vm324, %v3021, 0
        %v3153 = vsel %vm421, %v3055, 0
        %3155 = vmatprep.subr.mxu0 0.0
        %3156 = vmatpush1.msra.mxu0 0.0
        %3157 = vmatprep.subr.mxu0 0.0
        %3158 = vmatpush1.msra.mxu0 0.0
        %3159 = vmatprep.subr.mxu0 0.0
        %3160 = vmatpush1.msra.mxu0 0.0
        %3161 = vmatprep.subr.mxu0 0.0
        %3162 = vmatpush1.msra.mxu0 0.0
        %3163 = vmatprep.subr.mxu0 0.0
        %3164 = vmatpush1.msra.mxu0 0.0
        %3165 = vmatprep.subr.mxu0 0.0
        %3166 = vmatpush1.msra.mxu0 0.0
        %3167 = vmatprep.subr.mxu0 0.0
        %3168 = vmatpush1.msra.mxu0 0.0
        %3169 = vmatprep.subr.mxu0 0.0
        %3170 = vmatpush1.msra.mxu0 0.0
        %3171 = vmatprep.subr.mxu0 0.0
        %3172 = vmatpush1.msra.mxu0 0.0
        %3173 = vmatprep.subr.mxu0 0.0
        %3174 = vmatpush1.msra.mxu0 0.0
        %3175 = vmatprep.subr.mxu0 0.0
        %3176 = vmatpush1.msra.mxu0 0.0
        %3177 = vmatprep.subr.mxu0 0.0
        %3178 = vmatpush1.msra.mxu0 0.0
        %3179 = vmatprep.subr.mxu0 0.0
        %3180 = vmatpush1.msra.mxu0 0.0
        %3181 = vmatprep.subr.mxu0 0.0
        %3182 = vmatpush1.msra.mxu0 0.0
        %3183 = vmatprep.subr.mxu0 0.0
        %3184 = vmatpush1.msra.mxu0 0.0
        %3185 = vmatprep.subr.mxu0 0.0
        %3186 = vmatpush1.msra.mxu0 %v3153
        %3187 = vmatprep.subr.mxu0 0.0
        %3188 = vmatpush2.msra.mxu0 0.0
        %3189 = vmatprep.subr.mxu0 0.0
        %3190 = vmatpush2.msra.mxu0 0.0
        %3191 = vmatprep.subr.mxu0 0.0
        %3192 = vmatpush2.msra.mxu0 0.0
        %3193 = vmatprep.subr.mxu0 0.0
        %3194 = vmatpush2.msra.mxu0 0.0
        %3195 = vmatprep.subr.mxu0 0.0
        %3196 = vmatpush2.msra.mxu0 0.0
        %3197 = vmatprep.subr.mxu0 0.0
        %3198 = vmatpush2.msra.mxu0 0.0
        %3199 = vmatprep.subr.mxu0 0.0
        %3200 = vmatpush2.msra.mxu0 0.0
        %3201 = vmatprep.subr.mxu0 0.0
        %3202 = vmatpush2.msra.mxu0 0.0
        %3203 = vmatprep.subr.mxu0 0.0
        %3204 = vmatpush2.msra.mxu0 0.0
        %3205 = vmatprep.subr.mxu0 0.0
        %3206 = vmatpush2.msra.mxu0 0.0
        %3207 = vmatprep.subr.mxu0 0.0
        %3208 = vmatpush2.msra.mxu0 0.0
        %3209 = vmatprep.subr.mxu0 0.0
        %3210 = vmatpush2.msra.mxu0 0.0
        %3211 = vmatprep.subr.mxu0 0.0
        %3212 = vmatpush2.msra.mxu0 0.0
        %3213 = vmatprep.subr.mxu0 0.0
        %3214 = vmatpush2.msra.mxu0 0.0
        %3215 = vmatprep.subr.mxu0 0.0
        %3216 = vmatpush2.msra.mxu0 0.0
        %3217 = vmatprep.subr.mxu0 0.0
        %3218 = vmatpush2.msra.mxu0 0.0
        %3219 = vmatprep.mubr.f32.mxu0 0.0
        %3220 = vmatmul.mubr.f32.gmra.mxu0 %v3057
        %v3221 = vpop.f32.mrf.mxu0
        %v3222 = vadd.f32 0.0, %v3221
        %v3223 = vpop.f32.mrf.mxu0
        %3224 = vmatprep.mubr.f32.mxu0 0.0
        %3225 = vmatmul.mubr.f32.gmra.mxu0 %v3060
        %v3226 = vpop.f32.mrf.mxu0
        %v3227 = vadd.f32 0.0, %v3226
        %v3228 = vpop.f32.mrf.mxu0
        %3229 = vmatprep.mubr.f32.mxu0 0.0
        %3230 = vmatmul.mubr.f32.gmra.mxu0 %v3063
        %v3231 = vpop.f32.mrf.mxu0
        %v3232 = vadd.f32 0.0, %v3231
        %v3233 = vpop.f32.mrf.mxu0
        %3234 = vmatprep.mubr.f32.mxu0 0.0
        %3235 = vmatmul.mubr.f32.gmra.mxu0 %v3066
        %v3236 = vpop.f32.mrf.mxu0
        %v3237 = vadd.f32 0.0, %v3236
        %v3238 = vpop.f32.mrf.mxu0
        %3239 = vmatprep.mubr.f32.mxu0 0.0
        %3240 = vmatmul.mubr.f32.gmra.mxu0 %v3069
        %v3241 = vpop.f32.mrf.mxu0
        %v3242 = vadd.f32 0.0, %v3241
        %v3243 = vpop.f32.mrf.mxu0
        %3244 = vmatprep.mubr.f32.mxu0 0.0
        %3245 = vmatmul.mubr.f32.gmra.mxu0 %v3072
        %v3246 = vpop.f32.mrf.mxu0
        %v3247 = vadd.f32 0.0, %v3246
        %v3248 = vpop.f32.mrf.mxu0
        %3249 = vmatprep.mubr.f32.mxu0 0.0
        %3250 = vmatmul.mubr.f32.gmra.mxu0 %v3075
        %v3251 = vpop.f32.mrf.mxu0
        %v3252 = vadd.f32 0.0, %v3251
        %v3253 = vpop.f32.mrf.mxu0
        %3254 = vmatprep.mubr.f32.mxu0 0.0
        %3255 = vmatmul.mubr.f32.gmra.mxu0 %v3078
        %v3256 = vpop.f32.mrf.mxu0
        %v3257 = vadd.f32 0.0, %v3256
        %v3258 = vpop.f32.mrf.mxu0
        %3259 = vmatprep.mubr.f32.mxu0 0.0
        %3260 = vmatmul.mubr.f32.gmra.mxu0 %v3081
        %v3261 = vpop.f32.mrf.mxu0
        %v3262 = vadd.f32 0.0, %v3261
        %v3263 = vpop.f32.mrf.mxu0
        %3264 = vmatprep.mubr.f32.mxu0 0.0
        %3265 = vmatmul.mubr.f32.gmra.mxu0 %v3084
        %v3266 = vpop.f32.mrf.mxu0
        %v3267 = vadd.f32 0.0, %v3266
        %v3268 = vpop.f32.mrf.mxu0
        %3269 = vmatprep.mubr.f32.mxu0 0.0
        %3270 = vmatmul.mubr.f32.gmra.mxu0 %v3087
        %v3271 = vpop.f32.mrf.mxu0
        %v3272 = vadd.f32 0.0, %v3271
        %v3273 = vpop.f32.mrf.mxu0
        %3274 = vmatprep.mubr.f32.mxu0 0.0
        %3275 = vmatmul.mubr.f32.gmra.mxu0 %v3090
        %v3276 = vpop.f32.mrf.mxu0
        %v3277 = vadd.f32 0.0, %v3276
        %v3278 = vpop.f32.mrf.mxu0
        %3279 = vmatprep.mubr.f32.mxu0 0.0
        %3280 = vmatmul.mubr.f32.gmra.mxu0 %v3093
        %v3281 = vpop.f32.mrf.mxu0
        %v3282 = vadd.f32 0.0, %v3281
        %v3283 = vpop.f32.mrf.mxu0
        %3284 = vmatprep.mubr.f32.mxu0 0.0
        %3285 = vmatmul.mubr.f32.gmra.mxu0 %v3096
        %v3286 = vpop.f32.mrf.mxu0
        %v3287 = vadd.f32 0.0, %v3286
        %v3288 = vpop.f32.mrf.mxu0
        %3289 = vmatprep.mubr.f32.mxu0 0.0
        %3290 = vmatmul.mubr.f32.gmra.mxu0 %v3099
        %v3291 = vpop.f32.mrf.mxu0
        %v3292 = vadd.f32 0.0, %v3291
        %v3293 = vpop.f32.mrf.mxu0
        %3294 = vmatprep.mubr.f32.mxu0 0.0
        %3295 = vmatmul.mubr.f32.gmra.mxu0 %v3102
        %v3296 = vpop.f32.mrf.mxu0
        %v3297 = vadd.f32 0.0, %v3296
        %v3298 = vpop.f32.mrf.mxu0
        %3299 = vmatprep.mubr.f32.mxu0 0.0
        %3300 = vmatmul.mubr.f32.gmra.mxu0 %v3105
        %v3301 = vpop.f32.mrf.mxu0
        %v3302 = vadd.f32 0.0, %v3301
        %v3303 = vpop.f32.mrf.mxu0
        %3304 = vmatprep.mubr.f32.mxu0 0.0
        %3305 = vmatmul.mubr.f32.gmra.mxu0 %v3108
        %v3306 = vpop.f32.mrf.mxu0
        %v3307 = vadd.f32 0.0, %v3306
        %v3308 = vpop.f32.mrf.mxu0
        %3309 = vmatprep.mubr.f32.mxu0 0.0
        %3310 = vmatmul.mubr.f32.gmra.mxu0 %v3111
        %v3311 = vpop.f32.mrf.mxu0
        %v3312 = vadd.f32 0.0, %v3311
        %v3313 = vpop.f32.mrf.mxu0
        %3314 = vmatprep.mubr.f32.mxu0 0.0
        %3315 = vmatmul.mubr.f32.gmra.mxu0 %v3114
        %v3316 = vpop.f32.mrf.mxu0
        %v3317 = vadd.f32 0.0, %v3316
        %v3318 = vpop.f32.mrf.mxu0
        %3319 = vmatprep.mubr.f32.mxu0 0.0
        %3320 = vmatmul.mubr.f32.gmra.mxu0 %v3117
        %v3321 = vpop.f32.mrf.mxu0
        %v3322 = vadd.f32 0.0, %v3321
        %v3323 = vpop.f32.mrf.mxu0
        %3324 = vmatprep.mubr.f32.mxu0 0.0
        %3325 = vmatmul.mubr.f32.gmra.mxu0 %v3120
        %v3326 = vpop.f32.mrf.mxu0
        %v3327 = vadd.f32 0.0, %v3326
        %v3328 = vpop.f32.mrf.mxu0
        %3329 = vmatprep.mubr.f32.mxu0 0.0
        %3330 = vmatmul.mubr.f32.gmra.mxu0 %v3123
        %v3331 = vpop.f32.mrf.mxu0
        %v3332 = vadd.f32 0.0, %v3331
        %v3333 = vpop.f32.mrf.mxu0
        %3334 = vmatprep.mubr.f32.mxu0 0.0
        %3335 = vmatmul.mubr.f32.gmra.mxu0 %v3126
        %v3336 = vpop.f32.mrf.mxu0
        %v3337 = vadd.f32 0.0, %v3336
        %v3338 = vpop.f32.mrf.mxu0
        %3339 = vmatprep.mubr.f32.mxu0 0.0
        %3340 = vmatmul.mubr.f32.gmra.mxu0 %v3129
        %v3341 = vpop.f32.mrf.mxu0
        %v3342 = vadd.f32 0.0, %v3341
        %v3343 = vpop.f32.mrf.mxu0
        %3344 = vmatprep.mubr.f32.mxu0 0.0
        %3345 = vmatmul.mubr.f32.gmra.mxu0 %v3132
        %v3346 = vpop.f32.mrf.mxu0
        %v3347 = vadd.f32 0.0, %v3346
        %v3348 = vpop.f32.mrf.mxu0
        %3349 = vmatprep.mubr.f32.mxu0 0.0
        %3350 = vmatmul.mubr.f32.gmra.mxu0 %v3135
        %v3351 = vpop.f32.mrf.mxu0
        %v3352 = vadd.f32 0.0, %v3351
        %v3353 = vpop.f32.mrf.mxu0
        %3354 = vmatprep.mubr.f32.mxu0 0.0
        %3355 = vmatmul.mubr.f32.gmra.mxu0 %v3138
        %v3356 = vpop.f32.mrf.mxu0
        %v3357 = vadd.f32 0.0, %v3356
        %v3358 = vpop.f32.mrf.mxu0
        %3359 = vmatprep.mubr.f32.mxu0 0.0
        %3360 = vmatmul.mubr.f32.gmra.mxu0 %v3141
        %v3361 = vpop.f32.mrf.mxu0
        %v3362 = vadd.f32 0.0, %v3361
        %v3363 = vpop.f32.mrf.mxu0
        %3364 = vmatprep.mubr.f32.mxu0 0.0
        %3365 = vmatmul.mubr.f32.gmra.mxu0 %v3144
        %v3366 = vpop.f32.mrf.mxu0
        %v3367 = vadd.f32 0.0, %v3366
        %v3368 = vpop.f32.mrf.mxu0
        %3369 = vmatprep.mubr.f32.mxu0 0.0
        %3370 = vmatmul.mubr.f32.gmra.mxu0 %v3147
        %v3371 = vpop.f32.mrf.mxu0
        %v3372 = vadd.f32 0.0, %v3371
        %v3373 = vpop.f32.mrf.mxu0
        %3374 = vmatprep.mubr.f32.mxu0 0.0
        %3375 = vmatmul.mubr.f32.gmra.mxu0 %v3150
        %v3376 = vpop.f32.mrf.mxu0
        %v3377 = vadd.f32 0.0, %v3376
        %v3378 = vpop.f32.mrf.mxu0
        %3379 = vdwg.mxu0
        %v3380 = vadd.f32 %v3022, %v3222
        %v3381 = vadd.f32 %v3023, %v3227
        %v3382 = vadd.f32 %v3024, %v3232
        %v3383 = vadd.f32 %v3025, %v3237
        %v3384 = vadd.f32 %v3026, %v3242
        %v3385 = vadd.f32 %v3027, %v3247
        %v3386 = vadd.f32 %v3028, %v3252
        %v3387 = vadd.f32 %v3029, %v3257
        %v3388 = vadd.f32 %v3030, %v3262
        %v3389 = vadd.f32 %v3031, %v3267
        %v3390 = vadd.f32 %v3032, %v3272
        %v3391 = vadd.f32 %v3033, %v3277
        %v3392 = vadd.f32 %v3034, %v3282
        %v3393 = vadd.f32 %v3035, %v3287
        %v3394 = vadd.f32 %v3036, %v3292
        %v3395 = vadd.f32 %v3037, %v3297
        %v3396 = vadd.f32 %v3038, %v3302
        %v3397 = vadd.f32 %v3039, %v3307
        %v3398 = vadd.f32 %v3040, %v3312
        %v3399 = vadd.f32 %v3041, %v3317
        %v3400 = vadd.f32 %v3042, %v3322
        %v3401 = vadd.f32 %v3043, %v3327
        %v3402 = vadd.f32 %v3044, %v3332
        %v3403 = vadd.f32 %v3045, %v3337
        %v3404 = vadd.f32 %v3046, %v3342
        %v3405 = vadd.f32 %v3047, %v3347
        %v3406 = vadd.f32 %v3048, %v3352
        %v3407 = vadd.f32 %v3049, %v3357
        %v3408 = vadd.f32 %v3050, %v3362
        %v3409 = vadd.f32 %v3051, %v3367
        %v3410 = vadd.f32 %v3052, %v3372
        %v3411 = vadd.f32 %v3053, %v3377
        %3412 = vst [vmem:[#allocation2] sm:$0xff] %v3380
        %3413 = vst [vmem:[#allocation2 + $0x8] sm:$0xff] %v3381
        %3414 = vst [vmem:[#allocation2 + $0x10] sm:$0xff] %v3382
        %3415 = vst [vmem:[#allocation2 + $0x18] sm:$0xff] %v3383
        %3416 = vst [vmem:[#allocation2 + $0x20] sm:$0xff] %v3384
        %3417 = vst [vmem:[#allocation2 + $0x28] sm:$0xff] %v3385
        %3418 = vst [vmem:[#allocation2 + $0x30] sm:$0xff] %v3386
        %3419 = vst [vmem:[#allocation2 + $0x38] sm:$0xff] %v3387
        %3420 = vst [vmem:[#allocation2 + $0x40] sm:$0xff] %v3388
        %3421 = vst [vmem:[#allocation2 + $0x48] sm:$0xff] %v3389
        %3422 = vst [vmem:[#allocation2 + $0x50] sm:$0xff] %v3390
        %3423 = vst [vmem:[#allocation2 + $0x58] sm:$0xff] %v3391
        %3424 = vst [vmem:[#allocation2 + $0x60] sm:$0xff] %v3392
        %3425 = vst [vmem:[#allocation2 + $0x68] sm:$0xff] %v3393
        %3426 = vst [vmem:[#allocation2 + $0x70] sm:$0xff] %v3394
        %3427 = vst [vmem:[#allocation2 + $0x78] sm:$0xff] %v3395
        %3428 = vst [vmem:[#allocation2 + $0x80] sm:$0xff] %v3396
        %3429 = vst [vmem:[#allocation2 + $0x88] sm:$0xff] %v3397
        %3430 = vst [vmem:[#allocation2 + $0x90] sm:$0xff] %v3398
        %3431 = vst [vmem:[#allocation2 + $0x98] sm:$0xff] %v3399
        %3432 = vst [vmem:[#allocation2 + $0xa0] sm:$0xff] %v3400
        %3433 = vst [vmem:[#allocation2 + $0xa8] sm:$0xff] %v3401
        %3434 = vst [vmem:[#allocation2 + $0xb0] sm:$0xff] %v3402
        %3435 = vst [vmem:[#allocation2 + $0xb8] sm:$0xff] %v3403
        %3436 = vst [vmem:[#allocation2 + $0xc0] sm:$0xff] %v3404
        %3437 = vst [vmem:[#allocation2 + $0xc8] sm:$0xff] %v3405
        %3438 = vst [vmem:[#allocation2 + $0xd0] sm:$0xff] %v3406
        %3439 = vst [vmem:[#allocation2 + $0xd8] sm:$0xff] %v3407
        %3440 = vst [vmem:[#allocation2 + $0xe0] sm:$0xff] %v3408
        %3441 = vst [vmem:[#allocation2 + $0xe8] sm:$0xff] %v3409
        %3442 = vst [vmem:[#allocation2 + $0xf0] sm:$0xff] %v3410
        %3443 = vst [vmem:[#allocation2 + $0xf8] sm:$0xff] %v3411
        %v3444 = vld [vmem:[%s2989 + $0x1] sm:$0xff]
        %v3445 = vld [vmem:[%s2989 + $0x9] sm:$0xff]
        %v3446 = vld [vmem:[%s2989 + $0x19] sm:$0xff]
        %v3447 = vld [vmem:[%s2989 + $0x21] sm:$0xff]
        %v3448 = vld [vmem:[%s2989 + $0x31] sm:$0xff]
        %v3449 = vld [vmem:[%s2989 + $0x39] sm:$0xff]
        %v3450 = vld [vmem:[%s2989 + $0x49] sm:$0xff]
        %v3451 = vld [vmem:[%s2989 + $0x51] sm:$0xff]
        %v3452 = vld [vmem:[%s2989 + $0x61] sm:$0xff]
        %v3453 = vld [vmem:[%s2989 + $0x69] sm:$0xff]
        %v3454 = vld [vmem:[%s2989 + $0x79] sm:$0xff]
        %v3455 = vld [vmem:[%s2989 + $0x81] sm:$0xff]
        %v3456 = vld [vmem:[%s2989 + $0x91] sm:$0xff]
        %v3457 = vld [vmem:[%s2989 + $0x99] sm:$0xff]
        %v3458 = vld [vmem:[%s2989 + $0xa9] sm:$0xff]
        %v3459 = vld [vmem:[%s2989 + $0xb1] sm:$0xff]
        %v3460 = vld [vmem:[%s2989 + $0xc1] sm:$0xff]
        %v3461 = vld [vmem:[%s2989 + $0xc9] sm:$0xff]
        %v3462 = vld [vmem:[%s2989 + $0xd9] sm:$0xff]
        %v3463 = vld [vmem:[%s2989 + $0xe1] sm:$0xff]
        %v3464 = vld [vmem:[%s2989 + $0xf1] sm:$0xff]
        %v3465 = vld [vmem:[%s2989 + $0xf9] sm:$0xff]
        %v3466 = vld [vmem:[%s2989 + $0x109] sm:$0xff]
        %v3467 = vld [vmem:[%s2989 + $0x111] sm:$0xff]
        %v3468 = vld [vmem:[%s2989 + $0x121] sm:$0xff]
        %v3469 = vld [vmem:[%s2989 + $0x129] sm:$0xff]
        %v3470 = vld [vmem:[%s2989 + $0x139] sm:$0xff]
        %v3471 = vld [vmem:[%s2989 + $0x141] sm:$0xff]
        %v3472 = vld [vmem:[%s2989 + $0x151] sm:$0xff]
        %v3473 = vld [vmem:[%s2989 + $0x159] sm:$0xff]
        %v3474 = vld [vmem:[%s2989 + $0x169] sm:$0xff]
        %v3475 = vld [vmem:[%s2989 + $0x171] sm:$0xff]
        %v3476 = vld [vmem:[#allocation2] sm:$0xff]
        %v3477 = vld [vmem:[#allocation2 + $0x8] sm:$0xff]
        %v3478 = vld [vmem:[#allocation2 + $0x10] sm:$0xff]
        %v3479 = vld [vmem:[#allocation2 + $0x18] sm:$0xff]
        %v3480 = vld [vmem:[#allocation2 + $0x20] sm:$0xff]
        %v3481 = vld [vmem:[#allocation2 + $0x28] sm:$0xff]
        %v3482 = vld [vmem:[#allocation2 + $0x30] sm:$0xff]
        %v3483 = vld [vmem:[#allocation2 + $0x38] sm:$0xff]
        %v3484 = vld [vmem:[#allocation2 + $0x40] sm:$0xff]
        %v3485 = vld [vmem:[#allocation2 + $0x48] sm:$0xff]
        %v3486 = vld [vmem:[#allocation2 + $0x50] sm:$0xff]
        %v3487 = vld [vmem:[#allocation2 + $0x58] sm:$0xff]
        %v3488 = vld [vmem:[#allocation2 + $0x60] sm:$0xff]
        %v3489 = vld [vmem:[#allocation2 + $0x68] sm:$0xff]
        %v3490 = vld [vmem:[#allocation2 + $0x70] sm:$0xff]
        %v3491 = vld [vmem:[#allocation2 + $0x78] sm:$0xff]
        %v3492 = vld [vmem:[#allocation2 + $0x80] sm:$0xff]
        %v3493 = vld [vmem:[#allocation2 + $0x88] sm:$0xff]
        %v3494 = vld [vmem:[#allocation2 + $0x90] sm:$0xff]
        %v3495 = vld [vmem:[#allocation2 + $0x98] sm:$0xff]
        %v3496 = vld [vmem:[#allocation2 + $0xa0] sm:$0xff]
        %v3497 = vld [vmem:[#allocation2 + $0xa8] sm:$0xff]
        %v3498 = vld [vmem:[#allocation2 + $0xb0] sm:$0xff]
        %v3499 = vld [vmem:[#allocation2 + $0xb8] sm:$0xff]
        %v3500 = vld [vmem:[#allocation2 + $0xc0] sm:$0xff]
        %v3501 = vld [vmem:[#allocation2 + $0xc8] sm:$0xff]
        %v3502 = vld [vmem:[#allocation2 + $0xd0] sm:$0xff]
        %v3503 = vld [vmem:[#allocation2 + $0xd8] sm:$0xff]
        %v3504 = vld [vmem:[#allocation2 + $0xe0] sm:$0xff]
        %v3505 = vld [vmem:[#allocation2 + $0xe8] sm:$0xff]
        %v3506 = vld [vmem:[#allocation2 + $0xf0] sm:$0xff]
        %v3507 = vld [vmem:[#allocation2 + $0xf8] sm:$0xff]
        %s3508 = scalar_lea.vmem %s219, 28
        %v3509 = vld [vmem:[%s3508] sm:$0xf]
        %v3511 = vsel %vm324, %v3444, 0
        %v3514 = vsel %vm324, %v3445, 0
        %v3517 = vsel %vm324, %v3446, 0
        %v3520 = vsel %vm324, %v3447, 0
        %v3523 = vsel %vm324, %v3448, 0
        %v3526 = vsel %vm324, %v3449, 0
        %v3529 = vsel %vm324, %v3450, 0
        %v3532 = vsel %vm324, %v3451, 0
        %v3535 = vsel %vm324, %v3452, 0
        %v3538 = vsel %vm324, %v3453, 0
        %v3541 = vsel %vm324, %v3454, 0
        %v3544 = vsel %vm324, %v3455, 0
        %v3547 = vsel %vm324, %v3456, 0
        %v3550 = vsel %vm324, %v3457, 0
        %v3553 = vsel %vm324, %v3458, 0
        %v3556 = vsel %vm324, %v3459, 0
        %v3559 = vsel %vm324, %v3460, 0
        %v3562 = vsel %vm324, %v3461, 0
        %v3565 = vsel %vm324, %v3462, 0
        %v3568 = vsel %vm324, %v3463, 0
        %v3571 = vsel %vm324, %v3464, 0
        %v3574 = vsel %vm324, %v3465, 0
        %v3577 = vsel %vm324, %v3466, 0
        %v3580 = vsel %vm324, %v3467, 0
        %v3583 = vsel %vm324, %v3468, 0
        %v3586 = vsel %vm324, %v3469, 0
        %v3589 = vsel %vm324, %v3470, 0
        %v3592 = vsel %vm324, %v3471, 0
        %v3595 = vsel %vm324, %v3472, 0
        %v3598 = vsel %vm324, %v3473, 0
        %v3601 = vsel %vm324, %v3474, 0
        %v3604 = vsel %vm324, %v3475, 0
        %v3607 = vsel %vm421, %v3509, 0
        %3609 = vmatprep.subr.mxu0 0.0
        %3610 = vmatpush1.msra.mxu0 0.0
        %3611 = vmatprep.subr.mxu0 0.0
        %3612 = vmatpush1.msra.mxu0 0.0
        %3613 = vmatprep.subr.mxu0 0.0
        %3614 = vmatpush1.msra.mxu0 0.0
        %3615 = vmatprep.subr.mxu0 0.0
        %3616 = vmatpush1.msra.mxu0 0.0
        %3617 = vmatprep.subr.mxu0 0.0
        %3618 = vmatpush1.msra.mxu0 0.0
        %3619 = vmatprep.subr.mxu0 0.0
        %3620 = vmatpush1.msra.mxu0 0.0
        %3621 = vmatprep.subr.mxu0 0.0
        %3622 = vmatpush1.msra.mxu0 0.0
        %3623 = vmatprep.subr.mxu0 0.0
        %3624 = vmatpush1.msra.mxu0 0.0
        %3625 = vmatprep.subr.mxu0 0.0
        %3626 = vmatpush1.msra.mxu0 0.0
        %3627 = vmatprep.subr.mxu0 0.0
        %3628 = vmatpush1.msra.mxu0 0.0
        %3629 = vmatprep.subr.mxu0 0.0
        %3630 = vmatpush1.msra.mxu0 0.0
        %3631 = vmatprep.subr.mxu0 0.0
        %3632 = vmatpush1.msra.mxu0 0.0
        %3633 = vmatprep.subr.mxu0 0.0
        %3634 = vmatpush1.msra.mxu0 0.0
        %3635 = vmatprep.subr.mxu0 0.0
        %3636 = vmatpush1.msra.mxu0 0.0
        %3637 = vmatprep.subr.mxu0 0.0
        %3638 = vmatpush1.msra.mxu0 0.0
        %3639 = vmatprep.subr.mxu0 0.0
        %3640 = vmatpush1.msra.mxu0 %v3607
        %3641 = vmatprep.subr.mxu0 0.0
        %3642 = vmatpush2.msra.mxu0 0.0
        %3643 = vmatprep.subr.mxu0 0.0
        %3644 = vmatpush2.msra.mxu0 0.0
        %3645 = vmatprep.subr.mxu0 0.0
        %3646 = vmatpush2.msra.mxu0 0.0
        %3647 = vmatprep.subr.mxu0 0.0
        %3648 = vmatpush2.msra.mxu0 0.0
        %3649 = vmatprep.subr.mxu0 0.0
        %3650 = vmatpush2.msra.mxu0 0.0
        %3651 = vmatprep.subr.mxu0 0.0
        %3652 = vmatpush2.msra.mxu0 0.0
        %3653 = vmatprep.subr.mxu0 0.0
        %3654 = vmatpush2.msra.mxu0 0.0
        %3655 = vmatprep.subr.mxu0 0.0
        %3656 = vmatpush2.msra.mxu0 0.0
        %3657 = vmatprep.subr.mxu0 0.0
        %3658 = vmatpush2.msra.mxu0 0.0
        %3659 = vmatprep.subr.mxu0 0.0
        %3660 = vmatpush2.msra.mxu0 0.0
        %3661 = vmatprep.subr.mxu0 0.0
        %3662 = vmatpush2.msra.mxu0 0.0
        %3663 = vmatprep.subr.mxu0 0.0
        %3664 = vmatpush2.msra.mxu0 0.0
        %3665 = vmatprep.subr.mxu0 0.0
        %3666 = vmatpush2.msra.mxu0 0.0
        %3667 = vmatprep.subr.mxu0 0.0
        %3668 = vmatpush2.msra.mxu0 0.0
        %3669 = vmatprep.subr.mxu0 0.0
        %3670 = vmatpush2.msra.mxu0 0.0
        %3671 = vmatprep.subr.mxu0 0.0
        %3672 = vmatpush2.msra.mxu0 0.0
        %3673 = vmatprep.mubr.f32.mxu0 0.0
        %3674 = vmatmul.mubr.f32.gmra.mxu0 %v3511
        %v3675 = vpop.f32.mrf.mxu0
        %v3676 = vadd.f32 0.0, %v3675
        %v3677 = vpop.f32.mrf.mxu0
        %3678 = vmatprep.mubr.f32.mxu0 0.0
        %3679 = vmatmul.mubr.f32.gmra.mxu0 %v3514
        %v3680 = vpop.f32.mrf.mxu0
        %v3681 = vadd.f32 0.0, %v3680
        %v3682 = vpop.f32.mrf.mxu0
        %3683 = vmatprep.mubr.f32.mxu0 0.0
        %3684 = vmatmul.mubr.f32.gmra.mxu0 %v3517
        %v3685 = vpop.f32.mrf.mxu0
        %v3686 = vadd.f32 0.0, %v3685
        %v3687 = vpop.f32.mrf.mxu0
        %3688 = vmatprep.mubr.f32.mxu0 0.0
        %3689 = vmatmul.mubr.f32.gmra.mxu0 %v3520
        %v3690 = vpop.f32.mrf.mxu0
        %v3691 = vadd.f32 0.0, %v3690
        %v3692 = vpop.f32.mrf.mxu0
        %3693 = vmatprep.mubr.f32.mxu0 0.0
        %3694 = vmatmul.mubr.f32.gmra.mxu0 %v3523
        %v3695 = vpop.f32.mrf.mxu0
        %v3696 = vadd.f32 0.0, %v3695
        %v3697 = vpop.f32.mrf.mxu0
        %3698 = vmatprep.mubr.f32.mxu0 0.0
        %3699 = vmatmul.mubr.f32.gmra.mxu0 %v3526
        %v3700 = vpop.f32.mrf.mxu0
        %v3701 = vadd.f32 0.0, %v3700
        %v3702 = vpop.f32.mrf.mxu0
        %3703 = vmatprep.mubr.f32.mxu0 0.0
        %3704 = vmatmul.mubr.f32.gmra.mxu0 %v3529
        %v3705 = vpop.f32.mrf.mxu0
        %v3706 = vadd.f32 0.0, %v3705
        %v3707 = vpop.f32.mrf.mxu0
        %3708 = vmatprep.mubr.f32.mxu0 0.0
        %3709 = vmatmul.mubr.f32.gmra.mxu0 %v3532
        %v3710 = vpop.f32.mrf.mxu0
        %v3711 = vadd.f32 0.0, %v3710
        %v3712 = vpop.f32.mrf.mxu0
        %3713 = vmatprep.mubr.f32.mxu0 0.0
        %3714 = vmatmul.mubr.f32.gmra.mxu0 %v3535
        %v3715 = vpop.f32.mrf.mxu0
        %v3716 = vadd.f32 0.0, %v3715
        %v3717 = vpop.f32.mrf.mxu0
        %3718 = vmatprep.mubr.f32.mxu0 0.0
        %3719 = vmatmul.mubr.f32.gmra.mxu0 %v3538
        %v3720 = vpop.f32.mrf.mxu0
        %v3721 = vadd.f32 0.0, %v3720
        %v3722 = vpop.f32.mrf.mxu0
        %3723 = vmatprep.mubr.f32.mxu0 0.0
        %3724 = vmatmul.mubr.f32.gmra.mxu0 %v3541
        %v3725 = vpop.f32.mrf.mxu0
        %v3726 = vadd.f32 0.0, %v3725
        %v3727 = vpop.f32.mrf.mxu0
        %3728 = vmatprep.mubr.f32.mxu0 0.0
        %3729 = vmatmul.mubr.f32.gmra.mxu0 %v3544
        %v3730 = vpop.f32.mrf.mxu0
        %v3731 = vadd.f32 0.0, %v3730
        %v3732 = vpop.f32.mrf.mxu0
        %3733 = vmatprep.mubr.f32.mxu0 0.0
        %3734 = vmatmul.mubr.f32.gmra.mxu0 %v3547
        %v3735 = vpop.f32.mrf.mxu0
        %v3736 = vadd.f32 0.0, %v3735
        %v3737 = vpop.f32.mrf.mxu0
        %3738 = vmatprep.mubr.f32.mxu0 0.0
        %3739 = vmatmul.mubr.f32.gmra.mxu0 %v3550
        %v3740 = vpop.f32.mrf.mxu0
        %v3741 = vadd.f32 0.0, %v3740
        %v3742 = vpop.f32.mrf.mxu0
        %3743 = vmatprep.mubr.f32.mxu0 0.0
        %3744 = vmatmul.mubr.f32.gmra.mxu0 %v3553
        %v3745 = vpop.f32.mrf.mxu0
        %v3746 = vadd.f32 0.0, %v3745
        %v3747 = vpop.f32.mrf.mxu0
        %3748 = vmatprep.mubr.f32.mxu0 0.0
        %3749 = vmatmul.mubr.f32.gmra.mxu0 %v3556
        %v3750 = vpop.f32.mrf.mxu0
        %v3751 = vadd.f32 0.0, %v3750
        %v3752 = vpop.f32.mrf.mxu0
        %3753 = vmatprep.mubr.f32.mxu0 0.0
        %3754 = vmatmul.mubr.f32.gmra.mxu0 %v3559
        %v3755 = vpop.f32.mrf.mxu0
        %v3756 = vadd.f32 0.0, %v3755
        %v3757 = vpop.f32.mrf.mxu0
        %3758 = vmatprep.mubr.f32.mxu0 0.0
        %3759 = vmatmul.mubr.f32.gmra.mxu0 %v3562
        %v3760 = vpop.f32.mrf.mxu0
        %v3761 = vadd.f32 0.0, %v3760
        %v3762 = vpop.f32.mrf.mxu0
        %3763 = vmatprep.mubr.f32.mxu0 0.0
        %3764 = vmatmul.mubr.f32.gmra.mxu0 %v3565
        %v3765 = vpop.f32.mrf.mxu0
        %v3766 = vadd.f32 0.0, %v3765
        %v3767 = vpop.f32.mrf.mxu0
        %3768 = vmatprep.mubr.f32.mxu0 0.0
        %3769 = vmatmul.mubr.f32.gmra.mxu0 %v3568
        %v3770 = vpop.f32.mrf.mxu0
        %v3771 = vadd.f32 0.0, %v3770
        %v3772 = vpop.f32.mrf.mxu0
        %3773 = vmatprep.mubr.f32.mxu0 0.0
        %3774 = vmatmul.mubr.f32.gmra.mxu0 %v3571
        %v3775 = vpop.f32.mrf.mxu0
        %v3776 = vadd.f32 0.0, %v3775
        %v3777 = vpop.f32.mrf.mxu0
        %3778 = vmatprep.mubr.f32.mxu0 0.0
        %3779 = vmatmul.mubr.f32.gmra.mxu0 %v3574
        %v3780 = vpop.f32.mrf.mxu0
        %v3781 = vadd.f32 0.0, %v3780
        %v3782 = vpop.f32.mrf.mxu0
        %3783 = vmatprep.mubr.f32.mxu0 0.0
        %3784 = vmatmul.mubr.f32.gmra.mxu0 %v3577
        %v3785 = vpop.f32.mrf.mxu0
        %v3786 = vadd.f32 0.0, %v3785
        %v3787 = vpop.f32.mrf.mxu0
        %3788 = vmatprep.mubr.f32.mxu0 0.0
        %3789 = vmatmul.mubr.f32.gmra.mxu0 %v3580
        %v3790 = vpop.f32.mrf.mxu0
        %v3791 = vadd.f32 0.0, %v3790
        %v3792 = vpop.f32.mrf.mxu0
        %3793 = vmatprep.mubr.f32.mxu0 0.0
        %3794 = vmatmul.mubr.f32.gmra.mxu0 %v3583
        %v3795 = vpop.f32.mrf.mxu0
        %v3796 = vadd.f32 0.0, %v3795
        %v3797 = vpop.f32.mrf.mxu0
        %3798 = vmatprep.mubr.f32.mxu0 0.0
        %3799 = vmatmul.mubr.f32.gmra.mxu0 %v3586
        %v3800 = vpop.f32.mrf.mxu0
        %v3801 = vadd.f32 0.0, %v3800
        %v3802 = vpop.f32.mrf.mxu0
        %3803 = vmatprep.mubr.f32.mxu0 0.0
        %3804 = vmatmul.mubr.f32.gmra.mxu0 %v3589
        %v3805 = vpop.f32.mrf.mxu0
        %v3806 = vadd.f32 0.0, %v3805
        %v3807 = vpop.f32.mrf.mxu0
        %3808 = vmatprep.mubr.f32.mxu0 0.0
        %3809 = vmatmul.mubr.f32.gmra.mxu0 %v3592
        %v3810 = vpop.f32.mrf.mxu0
        %v3811 = vadd.f32 0.0, %v3810
        %v3812 = vpop.f32.mrf.mxu0
        %3813 = vmatprep.mubr.f32.mxu0 0.0
        %3814 = vmatmul.mubr.f32.gmra.mxu0 %v3595
        %v3815 = vpop.f32.mrf.mxu0
        %v3816 = vadd.f32 0.0, %v3815
        %v3817 = vpop.f32.mrf.mxu0
        %3818 = vmatprep.mubr.f32.mxu0 0.0
        %3819 = vmatmul.mubr.f32.gmra.mxu0 %v3598
        %v3820 = vpop.f32.mrf.mxu0
        %v3821 = vadd.f32 0.0, %v3820
        %v3822 = vpop.f32.mrf.mxu0
        %3823 = vmatprep.mubr.f32.mxu0 0.0
        %3824 = vmatmul.mubr.f32.gmra.mxu0 %v3601
        %v3825 = vpop.f32.mrf.mxu0
        %v3826 = vadd.f32 0.0, %v3825
        %v3827 = vpop.f32.mrf.mxu0
        %3828 = vmatprep.mubr.f32.mxu0 0.0
        %3829 = vmatmul.mubr.f32.gmra.mxu0 %v3604
        %v3830 = vpop.f32.mrf.mxu0
        %v3831 = vadd.f32 0.0, %v3830
        %v3832 = vpop.f32.mrf.mxu0
        %3833 = vdwg.mxu0
        %v3834 = vadd.f32 %v3476, %v3676
        %v3835 = vadd.f32 %v3477, %v3681
        %v3836 = vadd.f32 %v3478, %v3686
        %v3837 = vadd.f32 %v3479, %v3691
        %v3838 = vadd.f32 %v3480, %v3696
        %v3839 = vadd.f32 %v3481, %v3701
        %v3840 = vadd.f32 %v3482, %v3706
        %v3841 = vadd.f32 %v3483, %v3711
        %v3842 = vadd.f32 %v3484, %v3716
        %v3843 = vadd.f32 %v3485, %v3721
        %v3844 = vadd.f32 %v3486, %v3726
        %v3845 = vadd.f32 %v3487, %v3731
        %v3846 = vadd.f32 %v3488, %v3736
        %v3847 = vadd.f32 %v3489, %v3741
        %v3848 = vadd.f32 %v3490, %v3746
        %v3849 = vadd.f32 %v3491, %v3751
        %v3850 = vadd.f32 %v3492, %v3756
        %v3851 = vadd.f32 %v3493, %v3761
        %v3852 = vadd.f32 %v3494, %v3766
        %v3853 = vadd.f32 %v3495, %v3771
        %v3854 = vadd.f32 %v3496, %v3776
        %v3855 = vadd.f32 %v3497, %v3781
        %v3856 = vadd.f32 %v3498, %v3786
        %v3857 = vadd.f32 %v3499, %v3791
        %v3858 = vadd.f32 %v3500, %v3796
        %v3859 = vadd.f32 %v3501, %v3801
        %v3860 = vadd.f32 %v3502, %v3806
        %v3861 = vadd.f32 %v3503, %v3811
        %v3862 = vadd.f32 %v3504, %v3816
        %v3863 = vadd.f32 %v3505, %v3821
        %v3864 = vadd.f32 %v3506, %v3826
        %v3865 = vadd.f32 %v3507, %v3831
        %3866 = vst [vmem:[#allocation2] sm:$0xff] %v3834
        %3867 = vst [vmem:[#allocation2 + $0x8] sm:$0xff] %v3835
        %3868 = vst [vmem:[#allocation2 + $0x10] sm:$0xff] %v3836
        %3869 = vst [vmem:[#allocation2 + $0x18] sm:$0xff] %v3837
        %3870 = vst [vmem:[#allocation2 + $0x20] sm:$0xff] %v3838
        %3871 = vst [vmem:[#allocation2 + $0x28] sm:$0xff] %v3839
        %3872 = vst [vmem:[#allocation2 + $0x30] sm:$0xff] %v3840
        %3873 = vst [vmem:[#allocation2 + $0x38] sm:$0xff] %v3841
        %3874 = vst [vmem:[#allocation2 + $0x40] sm:$0xff] %v3842
        %3875 = vst [vmem:[#allocation2 + $0x48] sm:$0xff] %v3843
        %3876 = vst [vmem:[#allocation2 + $0x50] sm:$0xff] %v3844
        %3877 = vst [vmem:[#allocation2 + $0x58] sm:$0xff] %v3845
        %3878 = vst [vmem:[#allocation2 + $0x60] sm:$0xff] %v3846
        %3879 = vst [vmem:[#allocation2 + $0x68] sm:$0xff] %v3847
        %3880 = vst [vmem:[#allocation2 + $0x70] sm:$0xff] %v3848
        %3881 = vst [vmem:[#allocation2 + $0x78] sm:$0xff] %v3849
        %3882 = vst [vmem:[#allocation2 + $0x80] sm:$0xff] %v3850
        %3883 = vst [vmem:[#allocation2 + $0x88] sm:$0xff] %v3851
        %3884 = vst [vmem:[#allocation2 + $0x90] sm:$0xff] %v3852
        %3885 = vst [vmem:[#allocation2 + $0x98] sm:$0xff] %v3853
        %3886 = vst [vmem:[#allocation2 + $0xa0] sm:$0xff] %v3854
        %3887 = vst [vmem:[#allocation2 + $0xa8] sm:$0xff] %v3855
        %3888 = vst [vmem:[#allocation2 + $0xb0] sm:$0xff] %v3856
        %3889 = vst [vmem:[#allocation2 + $0xb8] sm:$0xff] %v3857
        %3890 = vst [vmem:[#allocation2 + $0xc0] sm:$0xff] %v3858
        %3891 = vst [vmem:[#allocation2 + $0xc8] sm:$0xff] %v3859
        %3892 = vst [vmem:[#allocation2 + $0xd0] sm:$0xff] %v3860
        %3893 = vst [vmem:[#allocation2 + $0xd8] sm:$0xff] %v3861
        %3894 = vst [vmem:[#allocation2 + $0xe0] sm:$0xff] %v3862
        %3895 = vst [vmem:[#allocation2 + $0xe8] sm:$0xff] %v3863
        %3896 = vst [vmem:[#allocation2 + $0xf0] sm:$0xff] %v3864
        %3897 = vst [vmem:[#allocation2 + $0xf8] sm:$0xff] %v3865
        %v3898 = vld [vmem:[%s2989 + $0x2] sm:$0xff]
        %v3899 = vld [vmem:[%s2989 + $0xa] sm:$0xff]
        %v3900 = vld [vmem:[%s2989 + $0x1a] sm:$0xff]
        %v3901 = vld [vmem:[%s2989 + $0x22] sm:$0xff]
        %v3902 = vld [vmem:[%s2989 + $0x32] sm:$0xff]
        %v3903 = vld [vmem:[%s2989 + $0x3a] sm:$0xff]
        %v3904 = vld [vmem:[%s2989 + $0x4a] sm:$0xff]
        %v3905 = vld [vmem:[%s2989 + $0x52] sm:$0xff]
        %v3906 = vld [vmem:[%s2989 + $0x62] sm:$0xff]
        %v3907 = vld [vmem:[%s2989 + $0x6a] sm:$0xff]
        %v3908 = vld [vmem:[%s2989 + $0x7a] sm:$0xff]
        %v3909 = vld [vmem:[%s2989 + $0x82] sm:$0xff]
        %v3910 = vld [vmem:[%s2989 + $0x92] sm:$0xff]
        %v3911 = vld [vmem:[%s2989 + $0x9a] sm:$0xff]
        %v3912 = vld [vmem:[%s2989 + $0xaa] sm:$0xff]
        %v3913 = vld [vmem:[%s2989 + $0xb2] sm:$0xff]
        %v3914 = vld [vmem:[%s2989 + $0xc2] sm:$0xff]
        %v3915 = vld [vmem:[%s2989 + $0xca] sm:$0xff]
        %v3916 = vld [vmem:[%s2989 + $0xda] sm:$0xff]
        %v3917 = vld [vmem:[%s2989 + $0xe2] sm:$0xff]
        %v3918 = vld [vmem:[%s2989 + $0xf2] sm:$0xff]
        %v3919 = vld [vmem:[%s2989 + $0xfa] sm:$0xff]
        %v3920 = vld [vmem:[%s2989 + $0x10a] sm:$0xff]
        %v3921 = vld [vmem:[%s2989 + $0x112] sm:$0xff]
        %v3922 = vld [vmem:[%s2989 + $0x122] sm:$0xff]
        %v3923 = vld [vmem:[%s2989 + $0x12a] sm:$0xff]
        %v3924 = vld [vmem:[%s2989 + $0x13a] sm:$0xff]
        %v3925 = vld [vmem:[%s2989 + $0x142] sm:$0xff]
        %v3926 = vld [vmem:[%s2989 + $0x152] sm:$0xff]
        %v3927 = vld [vmem:[%s2989 + $0x15a] sm:$0xff]
        %v3928 = vld [vmem:[%s2989 + $0x16a] sm:$0xff]
        %v3929 = vld [vmem:[%s2989 + $0x172] sm:$0xff]
        %v3930 = vld [vmem:[#allocation2] sm:$0xff]
        %v3931 = vld [vmem:[#allocation2 + $0x8] sm:$0xff]
        %v3932 = vld [vmem:[#allocation2 + $0x10] sm:$0xff]
        %v3933 = vld [vmem:[#allocation2 + $0x18] sm:$0xff]
        %v3934 = vld [vmem:[#allocation2 + $0x20] sm:$0xff]
        %v3935 = vld [vmem:[#allocation2 + $0x28] sm:$0xff]
        %v3936 = vld [vmem:[#allocation2 + $0x30] sm:$0xff]
        %v3937 = vld [vmem:[#allocation2 + $0x38] sm:$0xff]
        %v3938 = vld [vmem:[#allocation2 + $0x40] sm:$0xff]
        %v3939 = vld [vmem:[#allocation2 + $0x48] sm:$0xff]
        %v3940 = vld [vmem:[#allocation2 + $0x50] sm:$0xff]
        %v3941 = vld [vmem:[#allocation2 + $0x58] sm:$0xff]
        %v3942 = vld [vmem:[#allocation2 + $0x60] sm:$0xff]
        %v3943 = vld [vmem:[#allocation2 + $0x68] sm:$0xff]
        %v3944 = vld [vmem:[#allocation2 + $0x70] sm:$0xff]
        %v3945 = vld [vmem:[#allocation2 + $0x78] sm:$0xff]
        %v3946 = vld [vmem:[#allocation2 + $0x80] sm:$0xff]
        %v3947 = vld [vmem:[#allocation2 + $0x88] sm:$0xff]
        %v3948 = vld [vmem:[#allocation2 + $0x90] sm:$0xff]
        %v3949 = vld [vmem:[#allocation2 + $0x98] sm:$0xff]
        %v3950 = vld [vmem:[#allocation2 + $0xa0] sm:$0xff]
        %v3951 = vld [vmem:[#allocation2 + $0xa8] sm:$0xff]
        %v3952 = vld [vmem:[#allocation2 + $0xb0] sm:$0xff]
        %v3953 = vld [vmem:[#allocation2 + $0xb8] sm:$0xff]
        %v3954 = vld [vmem:[#allocation2 + $0xc0] sm:$0xff]
        %v3955 = vld [vmem:[#allocation2 + $0xc8] sm:$0xff]
        %v3956 = vld [vmem:[#allocation2 + $0xd0] sm:$0xff]
        %v3957 = vld [vmem:[#allocation2 + $0xd8] sm:$0xff]
        %v3958 = vld [vmem:[#allocation2 + $0xe0] sm:$0xff]
        %v3959 = vld [vmem:[#allocation2 + $0xe8] sm:$0xff]
        %v3960 = vld [vmem:[#allocation2 + $0xf0] sm:$0xff]
        %v3961 = vld [vmem:[#allocation2 + $0xf8] sm:$0xff]
        %s3962 = scalar_lea.vmem %s219, 32
        %v3963 = vld [vmem:[%s3962] sm:$0xf]
        %v3965 = vsel %vm324, %v3898, 0
        %v3968 = vsel %vm324, %v3899, 0
        %v3971 = vsel %vm324, %v3900, 0
        %v3974 = vsel %vm324, %v3901, 0
        %v3977 = vsel %vm324, %v3902, 0
        %v3980 = vsel %vm324, %v3903, 0
        %v3983 = vsel %vm324, %v3904, 0
        %v3986 = vsel %vm324, %v3905, 0
        %v3989 = vsel %vm324, %v3906, 0
        %v3992 = vsel %vm324, %v3907, 0
        %v3995 = vsel %vm324, %v3908, 0
        %v3998 = vsel %vm324, %v3909, 0
        %v4001 = vsel %vm324, %v3910, 0
        %v4004 = vsel %vm324, %v3911, 0
        %v4007 = vsel %vm324, %v3912, 0
        %v4010 = vsel %vm324, %v3913, 0
        %v4013 = vsel %vm324, %v3914, 0
        %v4016 = vsel %vm324, %v3915, 0
        %v4019 = vsel %vm324, %v3916, 0
        %v4022 = vsel %vm324, %v3917, 0
        %v4025 = vsel %vm324, %v3918, 0
        %v4028 = vsel %vm324, %v3919, 0
        %v4031 = vsel %vm324, %v3920, 0
        %v4034 = vsel %vm324, %v3921, 0
        %v4037 = vsel %vm324, %v3922, 0
        %v4040 = vsel %vm324, %v3923, 0
        %v4043 = vsel %vm324, %v3924, 0
        %v4046 = vsel %vm324, %v3925, 0
        %v4049 = vsel %vm324, %v3926, 0
        %v4052 = vsel %vm324, %v3927, 0
        %v4055 = vsel %vm324, %v3928, 0
        %v4058 = vsel %vm324, %v3929, 0
        %v4061 = vsel %vm421, %v3963, 0
        %4063 = vmatprep.subr.mxu0 0.0
        %4064 = vmatpush1.msra.mxu0 0.0
        %4065 = vmatprep.subr.mxu0 0.0
        %4066 = vmatpush1.msra.mxu0 0.0
        %4067 = vmatprep.subr.mxu0 0.0
        %4068 = vmatpush1.msra.mxu0 0.0
        %4069 = vmatprep.subr.mxu0 0.0
        %4070 = vmatpush1.msra.mxu0 0.0
        %4071 = vmatprep.subr.mxu0 0.0
        %4072 = vmatpush1.msra.mxu0 0.0
        %4073 = vmatprep.subr.mxu0 0.0
        %4074 = vmatpush1.msra.mxu0 0.0
        %4075 = vmatprep.subr.mxu0 0.0
        %4076 = vmatpush1.msra.mxu0 0.0
        %4077 = vmatprep.subr.mxu0 0.0
        %4078 = vmatpush1.msra.mxu0 0.0
        %4079 = vmatprep.subr.mxu0 0.0
        %4080 = vmatpush1.msra.mxu0 0.0
        %4081 = vmatprep.subr.mxu0 0.0
        %4082 = vmatpush1.msra.mxu0 0.0
        %4083 = vmatprep.subr.mxu0 0.0
        %4084 = vmatpush1.msra.mxu0 0.0
        %4085 = vmatprep.subr.mxu0 0.0
        %4086 = vmatpush1.msra.mxu0 0.0
        %4087 = vmatprep.subr.mxu0 0.0
        %4088 = vmatpush1.msra.mxu0 0.0
        %4089 = vmatprep.subr.mxu0 0.0
        %4090 = vmatpush1.msra.mxu0 0.0
        %4091 = vmatprep.subr.mxu0 0.0
        %4092 = vmatpush1.msra.mxu0 0.0
        %4093 = vmatprep.subr.mxu0 0.0
        %4094 = vmatpush1.msra.mxu0 %v4061
        %4095 = vmatprep.subr.mxu0 0.0
        %4096 = vmatpush2.msra.mxu0 0.0
        %4097 = vmatprep.subr.mxu0 0.0
        %4098 = vmatpush2.msra.mxu0 0.0
        %4099 = vmatprep.subr.mxu0 0.0
        %4100 = vmatpush2.msra.mxu0 0.0
        %4101 = vmatprep.subr.mxu0 0.0
        %4102 = vmatpush2.msra.mxu0 0.0
        %4103 = vmatprep.subr.mxu0 0.0
        %4104 = vmatpush2.msra.mxu0 0.0
        %4105 = vmatprep.subr.mxu0 0.0
        %4106 = vmatpush2.msra.mxu0 0.0
        %4107 = vmatprep.subr.mxu0 0.0
        %4108 = vmatpush2.msra.mxu0 0.0
        %4109 = vmatprep.subr.mxu0 0.0
        %4110 = vmatpush2.msra.mxu0 0.0
        %4111 = vmatprep.subr.mxu0 0.0
        %4112 = vmatpush2.msra.mxu0 0.0
        %4113 = vmatprep.subr.mxu0 0.0
        %4114 = vmatpush2.msra.mxu0 0.0
        %4115 = vmatprep.subr.mxu0 0.0
        %4116 = vmatpush2.msra.mxu0 0.0
        %4117 = vmatprep.subr.mxu0 0.0
        %4118 = vmatpush2.msra.mxu0 0.0
        %4119 = vmatprep.subr.mxu0 0.0
        %4120 = vmatpush2.msra.mxu0 0.0
        %4121 = vmatprep.subr.mxu0 0.0
        %4122 = vmatpush2.msra.mxu0 0.0
        %4123 = vmatprep.subr.mxu0 0.0
        %4124 = vmatpush2.msra.mxu0 0.0
        %4125 = vmatprep.subr.mxu0 0.0
        %4126 = vmatpush2.msra.mxu0 0.0
        %4127 = vmatprep.mubr.f32.mxu0 0.0
        %4128 = vmatmul.mubr.f32.gmra.mxu0 %v3965
        %v4129 = vpop.f32.mrf.mxu0
        %v4130 = vadd.f32 0.0, %v4129
        %v4131 = vpop.f32.mrf.mxu0
        %4132 = vmatprep.mubr.f32.mxu0 0.0
        %4133 = vmatmul.mubr.f32.gmra.mxu0 %v3968
        %v4134 = vpop.f32.mrf.mxu0
        %v4135 = vadd.f32 0.0, %v4134
        %v4136 = vpop.f32.mrf.mxu0
        %4137 = vmatprep.mubr.f32.mxu0 0.0
        %4138 = vmatmul.mubr.f32.gmra.mxu0 %v3971
        %v4139 = vpop.f32.mrf.mxu0
        %v4140 = vadd.f32 0.0, %v4139
        %v4141 = vpop.f32.mrf.mxu0
        %4142 = vmatprep.mubr.f32.mxu0 0.0
        %4143 = vmatmul.mubr.f32.gmra.mxu0 %v3974
        %v4144 = vpop.f32.mrf.mxu0
        %v4145 = vadd.f32 0.0, %v4144
        %v4146 = vpop.f32.mrf.mxu0
        %4147 = vmatprep.mubr.f32.mxu0 0.0
        %4148 = vmatmul.mubr.f32.gmra.mxu0 %v3977
        %v4149 = vpop.f32.mrf.mxu0
        %v4150 = vadd.f32 0.0, %v4149
        %v4151 = vpop.f32.mrf.mxu0
        %4152 = vmatprep.mubr.f32.mxu0 0.0
        %4153 = vmatmul.mubr.f32.gmra.mxu0 %v3980
        %v4154 = vpop.f32.mrf.mxu0
        %v4155 = vadd.f32 0.0, %v4154
        %v4156 = vpop.f32.mrf.mxu0
        %4157 = vmatprep.mubr.f32.mxu0 0.0
        %4158 = vmatmul.mubr.f32.gmra.mxu0 %v3983
        %v4159 = vpop.f32.mrf.mxu0
        %v4160 = vadd.f32 0.0, %v4159
        %v4161 = vpop.f32.mrf.mxu0
        %4162 = vmatprep.mubr.f32.mxu0 0.0
        %4163 = vmatmul.mubr.f32.gmra.mxu0 %v3986
        %v4164 = vpop.f32.mrf.mxu0
        %v4165 = vadd.f32 0.0, %v4164
        %v4166 = vpop.f32.mrf.mxu0
        %4167 = vmatprep.mubr.f32.mxu0 0.0
        %4168 = vmatmul.mubr.f32.gmra.mxu0 %v3989
        %v4169 = vpop.f32.mrf.mxu0
        %v4170 = vadd.f32 0.0, %v4169
        %v4171 = vpop.f32.mrf.mxu0
        %4172 = vmatprep.mubr.f32.mxu0 0.0
        %4173 = vmatmul.mubr.f32.gmra.mxu0 %v3992
        %v4174 = vpop.f32.mrf.mxu0
        %v4175 = vadd.f32 0.0, %v4174
        %v4176 = vpop.f32.mrf.mxu0
        %4177 = vmatprep.mubr.f32.mxu0 0.0
        %4178 = vmatmul.mubr.f32.gmra.mxu0 %v3995
        %v4179 = vpop.f32.mrf.mxu0
        %v4180 = vadd.f32 0.0, %v4179
        %v4181 = vpop.f32.mrf.mxu0
        %4182 = vmatprep.mubr.f32.mxu0 0.0
        %4183 = vmatmul.mubr.f32.gmra.mxu0 %v3998
        %v4184 = vpop.f32.mrf.mxu0
        %v4185 = vadd.f32 0.0, %v4184
        %v4186 = vpop.f32.mrf.mxu0
        %4187 = vmatprep.mubr.f32.mxu0 0.0
        %4188 = vmatmul.mubr.f32.gmra.mxu0 %v4001
        %v4189 = vpop.f32.mrf.mxu0
        %v4190 = vadd.f32 0.0, %v4189
        %v4191 = vpop.f32.mrf.mxu0
        %4192 = vmatprep.mubr.f32.mxu0 0.0
        %4193 = vmatmul.mubr.f32.gmra.mxu0 %v4004
        %v4194 = vpop.f32.mrf.mxu0
        %v4195 = vadd.f32 0.0, %v4194
        %v4196 = vpop.f32.mrf.mxu0
        %4197 = vmatprep.mubr.f32.mxu0 0.0
        %4198 = vmatmul.mubr.f32.gmra.mxu0 %v4007
        %v4199 = vpop.f32.mrf.mxu0
        %v4200 = vadd.f32 0.0, %v4199
        %v4201 = vpop.f32.mrf.mxu0
        %4202 = vmatprep.mubr.f32.mxu0 0.0
        %4203 = vmatmul.mubr.f32.gmra.mxu0 %v4010
        %v4204 = vpop.f32.mrf.mxu0
        %v4205 = vadd.f32 0.0, %v4204
        %v4206 = vpop.f32.mrf.mxu0
        %4207 = vmatprep.mubr.f32.mxu0 0.0
        %4208 = vmatmul.mubr.f32.gmra.mxu0 %v4013
        %v4209 = vpop.f32.mrf.mxu0
        %v4210 = vadd.f32 0.0, %v4209
        %v4211 = vpop.f32.mrf.mxu0
        %4212 = vmatprep.mubr.f32.mxu0 0.0
        %4213 = vmatmul.mubr.f32.gmra.mxu0 %v4016
        %v4214 = vpop.f32.mrf.mxu0
        %v4215 = vadd.f32 0.0, %v4214
        %v4216 = vpop.f32.mrf.mxu0
        %4217 = vmatprep.mubr.f32.mxu0 0.0
        %4218 = vmatmul.mubr.f32.gmra.mxu0 %v4019
        %v4219 = vpop.f32.mrf.mxu0
        %v4220 = vadd.f32 0.0, %v4219
        %v4221 = vpop.f32.mrf.mxu0
        %4222 = vmatprep.mubr.f32.mxu0 0.0
        %4223 = vmatmul.mubr.f32.gmra.mxu0 %v4022
        %v4224 = vpop.f32.mrf.mxu0
        %v4225 = vadd.f32 0.0, %v4224
        %v4226 = vpop.f32.mrf.mxu0
        %4227 = vmatprep.mubr.f32.mxu0 0.0
        %4228 = vmatmul.mubr.f32.gmra.mxu0 %v4025
        %v4229 = vpop.f32.mrf.mxu0
        %v4230 = vadd.f32 0.0, %v4229
        %v4231 = vpop.f32.mrf.mxu0
        %4232 = vmatprep.mubr.f32.mxu0 0.0
        %4233 = vmatmul.mubr.f32.gmra.mxu0 %v4028
        %v4234 = vpop.f32.mrf.mxu0
        %v4235 = vadd.f32 0.0, %v4234
        %v4236 = vpop.f32.mrf.mxu0
        %4237 = vmatprep.mubr.f32.mxu0 0.0
        %4238 = vmatmul.mubr.f32.gmra.mxu0 %v4031
        %v4239 = vpop.f32.mrf.mxu0
        %v4240 = vadd.f32 0.0, %v4239
        %v4241 = vpop.f32.mrf.mxu0
        %4242 = vmatprep.mubr.f32.mxu0 0.0
        %4243 = vmatmul.mubr.f32.gmra.mxu0 %v4034
        %v4244 = vpop.f32.mrf.mxu0
        %v4245 = vadd.f32 0.0, %v4244
        %v4246 = vpop.f32.mrf.mxu0
        %4247 = vmatprep.mubr.f32.mxu0 0.0
        %4248 = vmatmul.mubr.f32.gmra.mxu0 %v4037
        %v4249 = vpop.f32.mrf.mxu0
        %v4250 = vadd.f32 0.0, %v4249
        %v4251 = vpop.f32.mrf.mxu0
        %4252 = vmatprep.mubr.f32.mxu0 0.0
        %4253 = vmatmul.mubr.f32.gmra.mxu0 %v4040
        %v4254 = vpop.f32.mrf.mxu0
        %v4255 = vadd.f32 0.0, %v4254
        %v4256 = vpop.f32.mrf.mxu0
        %4257 = vmatprep.mubr.f32.mxu0 0.0
        %4258 = vmatmul.mubr.f32.gmra.mxu0 %v4043
        %v4259 = vpop.f32.mrf.mxu0
        %v4260 = vadd.f32 0.0, %v4259
        %v4261 = vpop.f32.mrf.mxu0
        %4262 = vmatprep.mubr.f32.mxu0 0.0
        %4263 = vmatmul.mubr.f32.gmra.mxu0 %v4046
        %v4264 = vpop.f32.mrf.mxu0
        %v4265 = vadd.f32 0.0, %v4264
        %v4266 = vpop.f32.mrf.mxu0
        %4267 = vmatprep.mubr.f32.mxu0 0.0
        %4268 = vmatmul.mubr.f32.gmra.mxu0 %v4049
        %v4269 = vpop.f32.mrf.mxu0
        %v4270 = vadd.f32 0.0, %v4269
        %v4271 = vpop.f32.mrf.mxu0
        %4272 = vmatprep.mubr.f32.mxu0 0.0
        %4273 = vmatmul.mubr.f32.gmra.mxu0 %v4052
        %v4274 = vpop.f32.mrf.mxu0
        %v4275 = vadd.f32 0.0, %v4274
        %v4276 = vpop.f32.mrf.mxu0
        %4277 = vmatprep.mubr.f32.mxu0 0.0
        %4278 = vmatmul.mubr.f32.gmra.mxu0 %v4055
        %v4279 = vpop.f32.mrf.mxu0
        %v4280 = vadd.f32 0.0, %v4279
        %v4281 = vpop.f32.mrf.mxu0
        %4282 = vmatprep.mubr.f32.mxu0 0.0
        %4283 = vmatmul.mubr.f32.gmra.mxu0 %v4058
        %v4284 = vpop.f32.mrf.mxu0
        %v4285 = vadd.f32 0.0, %v4284
        %v4286 = vpop.f32.mrf.mxu0
        %4287 = vdwg.mxu0
        %v4288 = vadd.f32 %v3930, %v4130
        %v4289 = vadd.f32 %v3931, %v4135
        %v4290 = vadd.f32 %v3932, %v4140
        %v4291 = vadd.f32 %v3933, %v4145
        %v4292 = vadd.f32 %v3934, %v4150
        %v4293 = vadd.f32 %v3935, %v4155
        %v4294 = vadd.f32 %v3936, %v4160
        %v4295 = vadd.f32 %v3937, %v4165
        %v4296 = vadd.f32 %v3938, %v4170
        %v4297 = vadd.f32 %v3939, %v4175
        %v4298 = vadd.f32 %v3940, %v4180
        %v4299 = vadd.f32 %v3941, %v4185
        %v4300 = vadd.f32 %v3942, %v4190
        %v4301 = vadd.f32 %v3943, %v4195
        %v4302 = vadd.f32 %v3944, %v4200
        %v4303 = vadd.f32 %v3945, %v4205
        %v4304 = vadd.f32 %v3946, %v4210
        %v4305 = vadd.f32 %v3947, %v4215
        %v4306 = vadd.f32 %v3948, %v4220
        %v4307 = vadd.f32 %v3949, %v4225
        %v4308 = vadd.f32 %v3950, %v4230
        %v4309 = vadd.f32 %v3951, %v4235
        %v4310 = vadd.f32 %v3952, %v4240
        %v4311 = vadd.f32 %v3953, %v4245
        %v4312 = vadd.f32 %v3954, %v4250
        %v4313 = vadd.f32 %v3955, %v4255
        %v4314 = vadd.f32 %v3956, %v4260
        %v4315 = vadd.f32 %v3957, %v4265
        %v4316 = vadd.f32 %v3958, %v4270
        %v4317 = vadd.f32 %v3959, %v4275
        %v4318 = vadd.f32 %v3960, %v4280
        %v4319 = vadd.f32 %v3961, %v4285
        %4320 = vst [vmem:[#allocation2] sm:$0xff] %v4288
        %4321 = vst [vmem:[#allocation2 + $0x8] sm:$0xff] %v4289
        %4322 = vst [vmem:[#allocation2 + $0x10] sm:$0xff] %v4290
        %4323 = vst [vmem:[#allocation2 + $0x18] sm:$0xff] %v4291
        %4324 = vst [vmem:[#allocation2 + $0x20] sm:$0xff] %v4292
        %4325 = vst [vmem:[#allocation2 + $0x28] sm:$0xff] %v4293
        %4326 = vst [vmem:[#allocation2 + $0x30] sm:$0xff] %v4294
        %4327 = vst [vmem:[#allocation2 + $0x38] sm:$0xff] %v4295
        %4328 = vst [vmem:[#allocation2 + $0x40] sm:$0xff] %v4296
        %4329 = vst [vmem:[#allocation2 + $0x48] sm:$0xff] %v4297
        %4330 = vst [vmem:[#allocation2 + $0x50] sm:$0xff] %v4298
        %4331 = vst [vmem:[#allocation2 + $0x58] sm:$0xff] %v4299
        %4332 = vst [vmem:[#allocation2 + $0x60] sm:$0xff] %v4300
        %4333 = vst [vmem:[#allocation2 + $0x68] sm:$0xff] %v4301
        %4334 = vst [vmem:[#allocation2 + $0x70] sm:$0xff] %v4302
        %4335 = vst [vmem:[#allocation2 + $0x78] sm:$0xff] %v4303
        %4336 = vst [vmem:[#allocation2 + $0x80] sm:$0xff] %v4304
        %4337 = vst [vmem:[#allocation2 + $0x88] sm:$0xff] %v4305
        %4338 = vst [vmem:[#allocation2 + $0x90] sm:$0xff] %v4306
        %4339 = vst [vmem:[#allocation2 + $0x98] sm:$0xff] %v4307
        %4340 = vst [vmem:[#allocation2 + $0xa0] sm:$0xff] %v4308
        %4341 = vst [vmem:[#allocation2 + $0xa8] sm:$0xff] %v4309
        %4342 = vst [vmem:[#allocation2 + $0xb0] sm:$0xff] %v4310
        %4343 = vst [vmem:[#allocation2 + $0xb8] sm:$0xff] %v4311
        %4344 = vst [vmem:[#allocation2 + $0xc0] sm:$0xff] %v4312
        %4345 = vst [vmem:[#allocation2 + $0xc8] sm:$0xff] %v4313
        %4346 = vst [vmem:[#allocation2 + $0xd0] sm:$0xff] %v4314
        %4347 = vst [vmem:[#allocation2 + $0xd8] sm:$0xff] %v4315
        %4348 = vst [vmem:[#allocation2 + $0xe0] sm:$0xff] %v4316
        %4349 = vst [vmem:[#allocation2 + $0xe8] sm:$0xff] %v4317
        %4350 = vst [vmem:[#allocation2 + $0xf0] sm:$0xff] %v4318
        %4351 = vst [vmem:[#allocation2 + $0xf8] sm:$0xff] %v4319
        %v4352 = vld [vmem:[#allocation2] sm:$0xff]
        %v4353 = vld [vmem:[#allocation2 + $0x8] sm:$0xff]
        %v4354 = vld [vmem:[#allocation2 + $0x10] sm:$0xff]
        %v4355 = vld [vmem:[#allocation2 + $0x18] sm:$0xff]
        %v4356 = vld [vmem:[#allocation2 + $0x20] sm:$0xff]
        %v4357 = vld [vmem:[#allocation2 + $0x28] sm:$0xff]
        %v4358 = vld [vmem:[#allocation2 + $0x30] sm:$0xff]
        %v4359 = vld [vmem:[#allocation2 + $0x38] sm:$0xff]
        %v4360 = vld [vmem:[#allocation2 + $0x40] sm:$0xff]
        %v4361 = vld [vmem:[#allocation2 + $0x48] sm:$0xff]
        %v4362 = vld [vmem:[#allocation2 + $0x50] sm:$0xff]
        %v4363 = vld [vmem:[#allocation2 + $0x58] sm:$0xff]
        %v4364 = vld [vmem:[#allocation2 + $0x60] sm:$0xff]
        %v4365 = vld [vmem:[#allocation2 + $0x68] sm:$0xff]
        %v4366 = vld [vmem:[#allocation2 + $0x70] sm:$0xff]
        %v4367 = vld [vmem:[#allocation2 + $0x78] sm:$0xff]
        %v4368 = vld [vmem:[#allocation2 + $0x80] sm:$0xff]
        %v4369 = vld [vmem:[#allocation2 + $0x88] sm:$0xff]
        %v4370 = vld [vmem:[#allocation2 + $0x90] sm:$0xff]
        %v4371 = vld [vmem:[#allocation2 + $0x98] sm:$0xff]
        %v4372 = vld [vmem:[#allocation2 + $0xa0] sm:$0xff]
        %v4373 = vld [vmem:[#allocation2 + $0xa8] sm:$0xff]
        %v4374 = vld [vmem:[#allocation2 + $0xb0] sm:$0xff]
        %v4375 = vld [vmem:[#allocation2 + $0xb8] sm:$0xff]
        %v4376 = vld [vmem:[#allocation2 + $0xc0] sm:$0xff]
        %v4377 = vld [vmem:[#allocation2 + $0xc8] sm:$0xff]
        %v4378 = vld [vmem:[#allocation2 + $0xd0] sm:$0xff]
        %v4379 = vld [vmem:[#allocation2 + $0xd8] sm:$0xff]
        %v4380 = vld [vmem:[#allocation2 + $0xe0] sm:$0xff]
        %v4381 = vld [vmem:[#allocation2 + $0xe8] sm:$0xff]
        %v4382 = vld [vmem:[#allocation2 + $0xf0] sm:$0xff]
        %v4383 = vld [vmem:[#allocation2 + $0xf8] sm:$0xff]
        %v4384 = vld [vmem:[%s222] sm:$0x1]
        %v4386 = vlaneseq
        %v4387 = vshrl.u32 %v4386, 7
        %v4388 = vsub.s32 0, %v4387
        %v4389 = vrot.slane %v4384, %v4388
        %v4391 = vadd.f32 %v4352, %v4389
        %v4392 = vadd.f32 %v4353, %v4389
        %v4393 = vadd.f32 %v4354, %v4389
        %v4394 = vadd.f32 %v4355, %v4389
        %v4395 = vadd.f32 %v4356, %v4389
        %v4396 = vadd.f32 %v4357, %v4389
        %v4397 = vadd.f32 %v4358, %v4389
        %v4398 = vadd.f32 %v4359, %v4389
        %v4399 = vadd.f32 %v4360, %v4389
        %v4400 = vadd.f32 %v4361, %v4389
        %v4401 = vadd.f32 %v4362, %v4389
        %v4402 = vadd.f32 %v4363, %v4389
        %v4403 = vadd.f32 %v4364, %v4389
        %v4404 = vadd.f32 %v4365, %v4389
        %v4405 = vadd.f32 %v4366, %v4389
        %v4406 = vadd.f32 %v4367, %v4389
        %v4407 = vadd.f32 %v4368, %v4389
        %v4408 = vadd.f32 %v4369, %v4389
        %v4409 = vadd.f32 %v4370, %v4389
        %v4410 = vadd.f32 %v4371, %v4389
        %v4411 = vadd.f32 %v4372, %v4389
        %v4412 = vadd.f32 %v4373, %v4389
        %v4413 = vadd.f32 %v4374, %v4389
        %v4414 = vadd.f32 %v4375, %v4389
        %v4415 = vadd.f32 %v4376, %v4389
        %v4416 = vadd.f32 %v4377, %v4389
        %v4417 = vadd.f32 %v4378, %v4389
        %v4418 = vadd.f32 %v4379, %v4389
        %v4419 = vadd.f32 %v4380, %v4389
        %v4420 = vadd.f32 %v4381, %v4389
        %v4421 = vadd.f32 %v4382, %v4389
        %v4422 = vadd.f32 %v4383, %v4389
        %vm4423 = vcmp.gt.f32.partialorder %v4391, 0.0
        %vm4424 = vcmp.gt.f32.partialorder %v4392, 0.0
        %vm4425 = vcmp.gt.f32.partialorder %v4393, 0.0
        %vm4426 = vcmp.gt.f32.partialorder %v4394, 0.0
        %vm4427 = vcmp.gt.f32.partialorder %v4395, 0.0
        %vm4428 = vcmp.gt.f32.partialorder %v4396, 0.0
        %vm4429 = vcmp.gt.f32.partialorder %v4397, 0.0
        %vm4430 = vcmp.gt.f32.partialorder %v4398, 0.0
        %vm4431 = vcmp.gt.f32.partialorder %v4399, 0.0
        %vm4432 = vcmp.gt.f32.partialorder %v4400, 0.0
        %vm4433 = vcmp.gt.f32.partialorder %v4401, 0.0
        %vm4434 = vcmp.gt.f32.partialorder %v4402, 0.0
        %vm4435 = vcmp.gt.f32.partialorder %v4403, 0.0
        %vm4436 = vcmp.gt.f32.partialorder %v4404, 0.0
        %vm4437 = vcmp.gt.f32.partialorder %v4405, 0.0
        %vm4438 = vcmp.gt.f32.partialorder %v4406, 0.0
        %vm4439 = vcmp.gt.f32.partialorder %v4407, 0.0
        %vm4440 = vcmp.gt.f32.partialorder %v4408, 0.0
        %vm4441 = vcmp.gt.f32.partialorder %v4409, 0.0
        %vm4442 = vcmp.gt.f32.partialorder %v4410, 0.0
        %vm4443 = vcmp.gt.f32.partialorder %v4411, 0.0
        %vm4444 = vcmp.gt.f32.partialorder %v4412, 0.0
        %vm4445 = vcmp.gt.f32.partialorder %v4413, 0.0
        %vm4446 = vcmp.gt.f32.partialorder %v4414, 0.0
        %vm4447 = vcmp.gt.f32.partialorder %v4415, 0.0
        %vm4448 = vcmp.gt.f32.partialorder %v4416, 0.0
        %vm4449 = vcmp.gt.f32.partialorder %v4417, 0.0
        %vm4450 = vcmp.gt.f32.partialorder %v4418, 0.0
        %vm4451 = vcmp.gt.f32.partialorder %v4419, 0.0
        %vm4452 = vcmp.gt.f32.partialorder %v4420, 0.0
        %vm4453 = vcmp.gt.f32.partialorder %v4421, 0.0
        %vm4454 = vcmp.gt.f32.partialorder %v4422, 0.0
        %v4455 = vmul.f32 %v4391, 0.1
        %v4456 = vmul.f32 %v4392, 0.1
        %v4457 = vmul.f32 %v4393, 0.1
        %v4458 = vmul.f32 %v4394, 0.1
        %v4459 = vmul.f32 %v4395, 0.1
        %v4460 = vmul.f32 %v4396, 0.1
        %v4461 = vmul.f32 %v4397, 0.1
        %v4462 = vmul.f32 %v4398, 0.1
        %v4463 = vmul.f32 %v4399, 0.1
        %v4464 = vmul.f32 %v4400, 0.1
        %v4465 = vmul.f32 %v4401, 0.1
        %v4466 = vmul.f32 %v4402, 0.1
        %v4467 = vmul.f32 %v4403, 0.1
        %v4468 = vmul.f32 %v4404, 0.1
        %v4469 = vmul.f32 %v4405, 0.1
        %v4470 = vmul.f32 %v4406, 0.1
        %v4471 = vmul.f32 %v4407, 0.1
        %v4472 = vmul.f32 %v4408, 0.1
        %v4473 = vmul.f32 %v4409, 0.1
        %v4474 = vmul.f32 %v4410, 0.1
        %v4475 = vmul.f32 %v4411, 0.1
        %v4476 = vmul.f32 %v4412, 0.1
        %v4477 = vmul.f32 %v4413, 0.1
        %v4478 = vmul.f32 %v4414, 0.1
        %v4479 = vmul.f32 %v4415, 0.1
        %v4480 = vmul.f32 %v4416, 0.1
        %v4481 = vmul.f32 %v4417, 0.1
        %v4482 = vmul.f32 %v4418, 0.1
        %v4483 = vmul.f32 %v4419, 0.1
        %v4484 = vmul.f32 %v4420, 0.1
        %v4485 = vmul.f32 %v4421, 0.1
        %v4486 = vmul.f32 %v4422, 0.1
        %v4487 = vsel %vm4423, %v4391, %v4455
        %v4488 = vsel %vm4424, %v4392, %v4456
        %v4489 = vsel %vm4425, %v4393, %v4457
        %v4490 = vsel %vm4426, %v4394, %v4458
        %v4491 = vsel %vm4427, %v4395, %v4459
        %v4492 = vsel %vm4428, %v4396, %v4460
        %v4493 = vsel %vm4429, %v4397, %v4461
        %v4494 = vsel %vm4430, %v4398, %v4462
        %v4495 = vsel %vm4431, %v4399, %v4463
        %v4496 = vsel %vm4432, %v4400, %v4464
        %v4497 = vsel %vm4433, %v4401, %v4465
        %v4498 = vsel %vm4434, %v4402, %v4466
        %v4499 = vsel %vm4435, %v4403, %v4467
        %v4500 = vsel %vm4436, %v4404, %v4468
        %v4501 = vsel %vm4437, %v4405, %v4469
        %v4502 = vsel %vm4438, %v4406, %v4470
        %v4503 = vsel %vm4439, %v4407, %v4471
        %v4504 = vsel %vm4440, %v4408, %v4472
        %v4505 = vsel %vm4441, %v4409, %v4473
        %v4506 = vsel %vm4442, %v4410, %v4474
        %v4507 = vsel %vm4443, %v4411, %v4475
        %v4508 = vsel %vm4444, %v4412, %v4476
        %v4509 = vsel %vm4445, %v4413, %v4477
        %v4510 = vsel %vm4446, %v4414, %v4478
        %v4511 = vsel %vm4447, %v4415, %v4479
        %v4512 = vsel %vm4448, %v4416, %v4480
        %v4513 = vsel %vm4449, %v4417, %v4481
        %v4514 = vsel %vm4450, %v4418, %v4482
        %v4515 = vsel %vm4451, %v4419, %v4483
        %v4516 = vsel %vm4452, %v4420, %v4484
        %v4517 = vsel %vm4453, %v4421, %v4485
        %v4518 = vsel %vm4454, %v4422, %v4486
        %4519 = vst [vmem:[%s210] sm:$0xff] %v4487
        %4520 = vst [vmem:[%s210 + $0x8] sm:$0xff] %v4488
        %4521 = vst [vmem:[%s210 + $0x10] sm:$0xff] %v4489
        %4522 = vst [vmem:[%s210 + $0x18] sm:$0xff] %v4490
        %4523 = vst [vmem:[%s210 + $0x20] sm:$0xff] %v4491
        %4524 = vst [vmem:[%s210 + $0x28] sm:$0xff] %v4492
        %4525 = vst [vmem:[%s210 + $0x30] sm:$0xff] %v4493
        %4526 = vst [vmem:[%s210 + $0x38] sm:$0xff] %v4494
        %4527 = vst [vmem:[%s210 + $0x40] sm:$0xff] %v4495
        %4528 = vst [vmem:[%s210 + $0x48] sm:$0xff] %v4496
        %4529 = vst [vmem:[%s210 + $0x50] sm:$0xff] %v4497
        %4530 = vst [vmem:[%s210 + $0x58] sm:$0xff] %v4498
        %4531 = vst [vmem:[%s210 + $0x60] sm:$0xff] %v4499
        %4532 = vst [vmem:[%s210 + $0x68] sm:$0xff] %v4500
        %4533 = vst [vmem:[%s210 + $0x70] sm:$0xff] %v4501
        %4534 = vst [vmem:[%s210 + $0x78] sm:$0xff] %v4502
        %4535 = vst [vmem:[%s210 + $0x80] sm:$0xff] %v4503
        %4536 = vst [vmem:[%s210 + $0x88] sm:$0xff] %v4504
        %4537 = vst [vmem:[%s210 + $0x90] sm:$0xff] %v4505
        %4538 = vst [vmem:[%s210 + $0x98] sm:$0xff] %v4506
        %4539 = vst [vmem:[%s210 + $0xa0] sm:$0xff] %v4507
        %4540 = vst [vmem:[%s210 + $0xa8] sm:$0xff] %v4508
        %4541 = vst [vmem:[%s210 + $0xb0] sm:$0xff] %v4509
        %4542 = vst [vmem:[%s210 + $0xb8] sm:$0xff] %v4510
        %4543 = vst [vmem:[%s210 + $0xc0] sm:$0xff] %v4511
        %4544 = vst [vmem:[%s210 + $0xc8] sm:$0xff] %v4512
        %4545 = vst [vmem:[%s210 + $0xd0] sm:$0xff] %v4513
        %4546 = vst [vmem:[%s210 + $0xd8] sm:$0xff] %v4514
        %4547 = vst [vmem:[%s210 + $0xe0] sm:$0xff] %v4515
        %4548 = vst [vmem:[%s210 + $0xe8] sm:$0xff] %v4516
        %4549 = vst [vmem:[%s210 + $0xf0] sm:$0xff] %v4517
        %4550 = vst [vmem:[%s210 + $0xf8] sm:$0xff] %v4518
        %s4551 = sand.u32 %s126, 1
        %s4552 = scalar_lea.sflag [#allocation4], %s4551
        %s4553 = sand.u32 %s126, 1
        %s4554 = smul.addr %s4553, 256
        %s4555 = scalar_lea.vmem [#allocation3], %s4554
        // Predicated region
        $region33: #{tpu_custom_call.1} parent=31 // pred_check
          %p4556 = pneg %p136
        $region34: #{tpu_custom_call.1} parent=31 // pred_check_branch
          %4558 = sbr.rel (%p4556) target = $region36
        $region35: #{tpu_custom_call.1} parent=31 // pred_region
          %s4559 = smul.u32 16, %s23
          %s4561 = ssub.s32 4096, 4096
          %4562 = vsyncadd %s4552, %s4561
          %s4563 = smul.addr %s4559, 2
          %s4564 = sadd.s32 %s24, %s4563
          %s4565 = smul.addr %s22, 32
          %s4566 = sadd.s32 %s4564, %s4565
          %s4567 = smul.addr %s4566, 128
          %s4568 = scalar_lea.hbm %s3, %s4567
          %s4569 = sshll.u32 %s4555, 4
          %s4570 = int_to_ptr.vmem [resolvable:$true] %s4569
          %4575 = dma.vmem_to_hbm [thread:$0]  %s4570, 4096, %s4568, %s4552, 128, 128, 8
        $region36: #{tpu_custom_call.1} parent=31 // pred_fallthru
          _
      $region32: #{tpu_custom_call.1} parent=5 // pred_fallthru
        _
      %p4576 = scmp.le.s32.totalorder 2, %s12
      // Predicated region
      $region37: #{tpu_custom_call.1} parent=5 // pred_check
        %p4577 = pneg %p4576
      $region38: #{tpu_custom_call.1} parent=5 // pred_check_branch
        %4579 = sbr.rel (%p4577) target = $region40
      $region39: #{tpu_custom_call.1} parent=5 // pred_region
        %s4580 = ssub.s32 %s12, 2
        // Predicated region
        $region41: #{tpu_custom_call.1} parent=39 // pred_check
          %p4581 = pneg %p142
        $region42: #{tpu_custom_call.1} parent=39 // pred_check_branch
          %4583 = sbr.rel (%p4581) target = $region44
        $region43: #{tpu_custom_call.1} parent=39 // pred_region
          %s4584 = sand.u32 %s127, 1
          %s4585 = scalar_lea.sflag [#allocation4], %s4584
          %s4586 = sand.u32 %s127, 1
          %s4587 = smul.addr %s4586, 256
          %s4588 = scalar_lea.vmem [#allocation3], %s4587
          %4589 = dma.done %s4585, 4096
        $region44: #{tpu_custom_call.1} parent=39 // pred_fallthru
          _
      $region40: #{tpu_custom_call.1} parent=5 // pred_fallthru
        _
    $region6: #{tpu_custom_call.1} parent=1 // loop_footer
      %s16 = sadd.s32 1, %s12
    $region7: #{tpu_custom_call.1} parent=1 // loop_footer_branch
      %11 = sbr.rel target = $region3
    $region8: #{tpu_custom_call.1} parent=1 // loop_exit
      _
    %4590 = vsyncpa [#allocation4], 1
    %s4591 = scalar_lea.sflag [#allocation4], 1
    %4592 = vsyncpa %s4591, 1

</llo_original>
